<compile_context>
chip_gen: v6e
topology: v6e:2x2x1
jax: 0.10.0
libtpu: 0.0.40
codegen_flags: <defaults>
</compile_context>

<pallas_src>
import functools

import numpy as np
import jax
import jax.numpy as jnp
from jax.experimental import pallas as pl
from jax.experimental.pallas import tpu as pltpu

BN_EPS = 1e-5          # PyTorch BatchNorm2d default eps
OBS_EPS = 1e-7
RI_EPS = 1e-7


# ----------------------------------------------------------------------------
# XLA-side im2col (only used once per forward, for conv1's raw input; also
# used at prep time for the obs-normalization tables)
# ----------------------------------------------------------------------------
def im2col(x, k, stride):
    """x: (B, C, H, W) -> (B*OH*OW, C*k*k), column order (C, kh, kw)."""
    B, C, H, W = x.shape
    OH = (H - k) // stride + 1
    OW = (W - k) // stride + 1
    patches = []
    for i in range(k):
        for j in range(k):
            patches.append(
                x[:, :, i:i + stride * (OH - 1) + 1:stride,
                        j:j + stride * (OW - 1) + 1:stride])
    p = jnp.stack(patches, axis=0).reshape(k, k, B, C, OH, OW)
    p = p.transpose(2, 4, 5, 3, 0, 1)            # (B, OH, OW, C, kh, kw)
    return p.reshape(B * OH * OW, C * k * k), OH, OW


def fold_bn(w, b, gamma, beta, mean, var):
    """Fold inference-mode BatchNorm2d into preceding conv weight/bias."""
    scale = gamma / jnp.sqrt(var + BN_EPS)
    w_f = w * scale[:, None, None, None]
    b_f = (b - mean) * scale + beta
    return w_f, b_f


def conv_dims(D_in):
    _, H, W = D_in
    dim1 = ((H - 8) // 4 + 1, (W - 8) // 4 + 1)
    dim2 = ((dim1[0] - 4) // 2 + 1, (dim1[1] - 4) // 2 + 1)
    dim3 = ((dim2[0] - 3) // 1 + 1, (dim2[1] - 3) // 1 + 1)
    return 64 * dim3[0] * dim3[1]


# ----------------------------------------------------------------------------
# Fused Pallas kernel factory: obs-affine + conv1-3 + fc1-3 + squared error
# ----------------------------------------------------------------------------
def _make_rnd_kernel(*, B, n_hw, dh_pad, obs_normalize):
    """Build the kernel with the exact operand list implied by the config."""

    def kernel(*refs):
        out_ref = refs[-1]
        it = iter(refs[:-1])
        xp_ref = next(it)
        if obs_normalize:
            oa_ref = next(it)
            ob_ref = next(it)
        w1_ref = next(it); b1_ref = next(it)
        s2_ref = next(it); w2_ref = next(it); b2_ref = next(it)
        s3_ref = next(it); w3_ref = next(it); b3_ref = next(it)
        if n_hw > 1:
            sf_ref = next(it)
        wf1_ref = next(it); bf1_ref = next(it)
        wf2_ref = next(it); bf2_ref = next(it)
        wf3_ref = next(it); bf3_ref = next(it)

        f32 = jnp.float32
        cdt = w1_ref.dtype                    # MXU operand dtype (bf16 or f32)

        # ---- fused /255 + obs-normalization:  clip(x*a + b, -5, 5) ---------
        x = xp_ref[...]                                       # (m1p, C*64) f32
        if obs_normalize:
            a_t = jnp.concatenate([oa_ref[...]] * B, axis=0)  # tile by batch
            b_t = jnp.concatenate([ob_ref[...]] * B, axis=0)
            if x.shape[0] > a_t.shape[0]:                     # padded rows
                z = jnp.zeros((x.shape[0] - a_t.shape[0], x.shape[1]), f32)
                a_t = jnp.concatenate([a_t, z], axis=0)
                b_t = jnp.concatenate([b_t, z], axis=0)
            x = jnp.clip(x * a_t + b_t, -5.0, 5.0)
        else:
            x = x * (1.0 / 255.0)

        # ---- conv1 (predict & target concatenated on output lanes) ---------
        a1 = jnp.dot(x.astype(cdt), w1_ref[...], preferred_element_type=f32)
        a1 = jnp.maximum(a1 + b1_ref[...], 0.0).astype(cdt)

        # ---- conv2 / conv3: gather the k*k input patches (one-hot matmuls,
        #      exact in bf16), concatenate them along K, and run ONE big-K
        #      GEMM against the pre-concatenated block-diagonal weights. ------
        # TODO(synk): the one-hot gather matmuls could be replaced by strided
        # sublane slicing of a VMEM scratch (frees the MXU and removes the
        # O(B^2) selection matrices) once Mosaic relayout support is verified.
        def conv_block(a_in, s_ref, w_ref, b_ref):
            pieces = [jnp.dot(s_ref[ij], a_in) for ij in range(s_ref.shape[0])]
            slab = jnp.concatenate(pieces, axis=1)        # (M_out_p, kk*2*Cin)
            a = jnp.dot(slab, w_ref[...], preferred_element_type=f32)
            return jnp.maximum(a + b_ref[...], 0.0)

        a2 = conv_block(a1, s2_ref, w2_ref, b2_ref).astype(cdt)   # (m2p, 128)
        a3 = conv_block(a2, s3_ref, w3_ref, b3_ref).astype(cdt)   # (m3p, 128)

        # ---- fc1 (predict | target concatenated on output lanes) -----------
        if n_hw > 1:
            pieces = [jnp.dot(sf_ref[hw], a3) for hw in range(n_hw)]
            feat = jnp.concatenate(pieces, axis=1)        # (b_pad, n_hw*128)
        else:
            feat = a3                                     # rows already batch-ordered
        f1 = jnp.dot(feat, wf1_ref[...], preferred_element_type=f32) + bf1_ref[...]

        p = jnp.maximum(f1[:, 0:dh_pad], 0.0)             # fc1_predict + ReLU
        t = f1[:, dh_pad:2 * dh_pad]                      # fc1_target (scaled, no ReLU)

        # ---- fc2 / fc3 (predict branch only; fc3 pre-scaled by sqrt(c)) ----
        p = jnp.dot(p.astype(cdt), wf2_ref[...], preferred_element_type=f32)
        p = jnp.maximum(p + bf2_ref[...], 0.0)
        p = jnp.dot(p.astype(cdt), wf3_ref[...], preferred_element_type=f32)
        p = p + bf3_ref[...]

        # ---- r_i = sum((p' - t')^2)  (scale folded into weights); padded
        #      lanes are exactly zero.  Lane-dense broadcast store. ----------
        d = p - t
        r = jnp.sum(d * d, axis=1, keepdims=True)         # (b_pad, 1)
        out_ref[...] = jnp.broadcast_to(r, out_ref.shape)

    return kernel


# ----------------------------------------------------------------------------
# One-time parameter preparation (hoisted out of the per-step graph)
# ----------------------------------------------------------------------------
def prepare_rnd_params(params, D_in, D_hidden, batch_size, *,
                       ri_normalize=True, obs_normalize=True, batch_norm=True,
                       mxu_dtype=jnp.bfloat16):
    C, H, W = D_in
    B = batch_size
    f32 = jnp.float32

    # sublane padding granularity follows the MXU operand dtype
    g = 8 * 4 // jnp.dtype(mxu_dtype).itemsize           # 8 for f32, 16 for bf16

    def pad_rows(n):
        return max(g, ((n + g - 1) // g) * g)

    def get_conv(idx, br):
        w = params[f"conv{idx}_{br}_w"].astype(f32)
        b = params[f"conv{idx}_{br}_b"].astype(f32)
        if batch_norm:
            # TODO(synk): BatchNorm folded with running stats (inference
            # semantics); PyTorch train-mode batch statistics are stateful
            # and not reproduced.
            w, b = fold_bn(w, b,
                           params[f"bn{idx}_{br}_gamma"],
                           params[f"bn{idx}_{br}_beta"],
                           params[f"bn{idx}_{br}_mean"],
                           params[f"bn{idx}_{br}_var"])
        return w, b

    # geometry
    oh1, ow1 = (H - 8) // 4 + 1, (W - 8) // 4 + 1
    oh2, ow2 = (oh1 - 4) // 2 + 1, (ow1 - 4) // 2 + 1
    oh3, ow3 = (oh2 - 3) // 1 + 1, (ow2 - 3) // 1 + 1
    n_hw = oh3 * ow3
    m1, m2, m3 = B * oh1 * ow1, B * oh2 * ow2, B * oh3 * ow3
    m1p, m2p, m3p = pad_rows(m1), pad_rows(m2), pad_rows(m3)
    b_pad = pad_rows(B)
    dh_pad = ((D_hidden + 127) // 128) * 128

    prep = {}

    # ---- conv1: im2col GEMM weights (predict | target on output lanes) ------
    w1p, b1p = get_conv(1, "predict")
    w1t, b1t = get_conv(1, "target")
    c1 = w1p.shape[0]
    prep["w1"] = jnp.concatenate(
        [w1p.reshape(c1, -1).T, w1t.reshape(c1, -1).T], axis=1).astype(mxu_dtype)
    prep["b1"] = jnp.concatenate([b1p, b1t]).reshape(1, -1).astype(f32)

    # ---- fused obs-normalization tables (stored once, tiled by B in-kernel) -
    if obs_normalize:
        mean = params["rms_obs_mean"].astype(f32)
        istd = 1.0 / (jnp.sqrt(params["rms_obs_var"].astype(f32)) + OBS_EPS)
        prep["obs_a"], _, _ = im2col((istd / 255.0)[None], 8, 4)   # (oh1*ow1, C*64)
        prep["obs_b"], _, _ = im2col((-mean * istd)[None], 8, 4)

    # ---- one-hot gather (selection) matrices — exact in bf16 ---------------
    # TODO(synk): these bake B in and scale O(B^2); for large batch switch to
    # a batch-tiled grid (dimension_semantics=("parallel",), uses both v7x
    # TensorCores) with per-sample selection, or to strided-slice gathers.
    def make_sel(OHi, OWi, k, stride, OHo, OWo, Mi_pad, Mo_pad):
        S = np.zeros((k * k, Mo_pad, Mi_pad), np.float32)
        for i in range(k):
            for j in range(k):
                ij = i * k + j
                for b in range(B):
                    for oh in range(OHo):
                        for ow in range(OWo):
                            m = b * OHo * OWo + oh * OWo + ow
                            r = (b * OHi * OWi
                                 + (oh * stride + i) * OWi
                                 + (ow * stride + j))
                            S[ij, m, r] = 1.0
        return jnp.asarray(S, mxu_dtype)

    prep["sel2"] = make_sel(oh1, ow1, 4, 2, oh2, ow2, m1p, m2p)
    prep["sel3"] = make_sel(oh2, ow2, 3, 1, oh3, ow3, m2p, m3p)

    # ---- conv2/conv3: per-position weights concatenated along K ------------
    def conv_weight_cat(idx):
        wp, bp = get_conv(idx, "predict")
        wt, bt = get_conv(idx, "target")
        wpn, wtn = np.asarray(wp, np.float32), np.asarray(wt, np.float32)
        cout, cin, k, _ = wpn.shape
        Wc = np.zeros((k * k * 2 * cin, 2 * cout), np.float32)
        for i in range(k):
            for j in range(k):
                base = (i * k + j) * 2 * cin
                Wc[base:base + cin, 0:cout] = wpn[:, :, i, j].T
                Wc[base + cin:base + 2 * cin, cout:2 * cout] = wtn[:, :, i, j].T
        bias = np.concatenate([np.asarray(bp, np.float32),
                               np.asarray(bt, np.float32)]).reshape(1, -1)
        return jnp.asarray(Wc, mxu_dtype), jnp.asarray(bias)

    prep["w2"], prep["b2"] = conv_weight_cat(2)          # (16*64, 128)
    prep["w3"], prep["b3"] = conv_weight_cat(3)          # (9*128, 128)
    c3out = 64

    # ---- fc1 batch-row gather (only needed when conv3 output is not 1x1) ---
    if n_hw > 1:
        Sf = np.zeros((n_hw, b_pad, m3p), np.float32)
        for b in range(B):
            for hw in range(n_hw):
                Sf[hw, b, b * n_hw + hw] = 1.0
        prep["sel_fc"] = jnp.asarray(Sf, mxu_dtype)

    # ---- fc1 weights: (n_hw*128, 2*dh_pad) = [predict | target] blocks -----
    fc1p_w = np.asarray(params["fc1_predict_w"], np.float32)   # (Dh, 64*n_hw)
    fc1t_w = np.asarray(params["fc1_target_w"], np.float32)
    Wf1 = np.zeros((n_hw * 2 * c3out, 2 * dh_pad), np.float32)
    for hw in range(n_hw):
        base = hw * 2 * c3out
        Wf1[base:base + c3out, 0:D_hidden] = fc1p_w[:, hw::n_hw].T
        Wf1[base + c3out:base + 2 * c3out,
            dh_pad:dh_pad + D_hidden] = fc1t_w[:, hw::n_hw].T
    bf1 = np.zeros((1, 2 * dh_pad), np.float32)
    bf1[0, 0:D_hidden] = np.asarray(params["fc1_predict_b"], np.float32)
    bf1[0, dh_pad:dh_pad + D_hidden] = np.asarray(params["fc1_target_b"],
                                                  np.float32)

    # ---- fold r_i scale:  r_i = mean((p-t)^2)*s = sum((c*p - c*t)^2),
    #      c = sqrt(s / D_hidden); scale fc1_target and fc3 by c. ------------
    if ri_normalize:
        s = 1.0 / (jnp.sqrt(params["rms_ri_var"].astype(f32)) + RI_EPS)
    else:
        s = jnp.float32(1.0)
    sqrt_c = jnp.sqrt(s / D_hidden)

    tsel = np.zeros((1, 2 * dh_pad), np.float32)
    tsel[0, dh_pad:] = 1.0
    lane_scale = 1.0 + (sqrt_c - 1.0) * jnp.asarray(tsel)   # 1 | sqrt_c per lane
    prep["wf1"] = (jnp.asarray(Wf1) * lane_scale).astype(mxu_dtype)
    prep["bf1"] = jnp.asarray(bf1) * lane_scale

    def fc_pad(w, b, scale=None):
        Wp = np.zeros((dh_pad, dh_pad), np.float32)
        Wp[0:D_hidden, 0:D_hidden] = np.asarray(w, np.float32).T
        Bp = np.zeros((1, dh_pad), np.float32)
        Bp[0, 0:D_hidden] = np.asarray(b, np.float32)
        Wj, Bj = jnp.asarray(Wp), jnp.asarray(Bp)
        if scale is not None:
            Wj, Bj = Wj * scale, Bj * scale
        return Wj.astype(mxu_dtype), Bj

    prep["wf2"], prep["bf2"] = fc_pad(params["fc2_predict_w"],
                                      params["fc2_predict_b"])
    prep["wf3"], prep["bf3"] = fc_pad(params["fc3_predict_w"],
                                      params["fc3_predict_b"], sqrt_c)

    meta = dict(B=B, n_hw=n_hw, m1=m1, m1p=m1p, b_pad=b_pad, dh_pad=dh_pad,
                obs_normalize=obs_normalize)
    return prep, meta


# ----------------------------------------------------------------------------
# Forward (RND_CNN.forward, update_ri=False) — ONE pallas_call
# ----------------------------------------------------------------------------
def rnd_cnn_forward(prep, s_next, *, meta):
    B = meta["B"]
    assert s_next.shape[0] == B, "batch size is baked into the prepared gathers"

    # im2col of the RAW input is the only XLA-side layout op; /255, obs-norm,
    # all GEMMs and the reward reduction run inside the fused kernel.
    xp, _, _ = im2col(s_next.astype(jnp.float32), 8, 4)    # (B*OH1*OW1, C*64)
    if xp.shape[0] < meta["m1p"]:
        xp = jnp.pad(xp, ((0, meta["m1p"] - xp.shape[0]), (0, 0)))

    args = [xp]
    if meta["obs_normalize"]:
        args += [prep["obs_a"], prep["obs_b"]]
    args += [prep["w1"], prep["b1"],
             prep["sel2"], prep["w2"], prep["b2"],
             prep["sel3"], prep["w3"], prep["b3"]]
    if meta["n_hw"] > 1:
        args.append(prep["sel_fc"])
    args += [prep["wf1"], prep["bf1"], prep["wf2"], prep["bf2"],
             prep["wf3"], prep["bf3"]]

    kernel = _make_rnd_kernel(B=B, n_hw=meta["n_hw"], dh_pad=meta["dh_pad"],
                              obs_normalize=meta["obs_normalize"])
    vmem = pl.BlockSpec(memory_space=pltpu.MemorySpace.VMEM)

    out = pl.pallas_call(
        kernel,
        out_shape=jax.ShapeDtypeStruct((meta["b_pad"], 128), jnp.float32),
        in_specs=[vmem] * len(args),
        out_specs=vmem,
    )(*args)
    # TODO(synk): for large batch on v7x add a batch-tile grid with
    # dimension_semantics=("parallel",) so both TensorCores are used.
    return out[:B, 0]

    # TODO(synk): ri_update / RewardForwardFilter / RunningMeanStd.update
    # (update_ri=True path) are stateful host-side updates with no clean
    # Pallas equivalent; forward is implemented for update_ri=False.


# ----------------------------------------------------------------------------
# Parameter init (deterministic, non-trivial) + pure-JAX reference
# ----------------------------------------------------------------------------
def init_params(key, D_in, D_hidden):
    C, H, W = D_in
    keys = iter(jax.random.split(key, 64))

    def nrm(shape, scale=0.05):
        return scale * jax.random.normal(next(keys), shape, dtype=jnp.float32)

    def pos(shape):
        return 0.5 + jax.random.uniform(next(keys), shape, dtype=jnp.float32)

    p = {}
    for br in ("predict", "target"):
        p[f"conv1_{br}_w"] = nrm((32, C, 8, 8))
        p[f"conv1_{br}_b"] = nrm((32,))
        p[f"conv2_{br}_w"] = nrm((64, 32, 4, 4))
        p[f"conv2_{br}_b"] = nrm((64,))
        p[f"conv3_{br}_w"] = nrm((64, 64, 3, 3))
        p[f"conv3_{br}_b"] = nrm((64,))
        for idx, ch in ((1, 32), (2, 64), (3, 64)):
            p[f"bn{idx}_{br}_gamma"] = 1.0 + nrm((ch,))
            p[f"bn{idx}_{br}_beta"] = nrm((ch,))
            p[f"bn{idx}_{br}_mean"] = nrm((ch,))
            p[f"bn{idx}_{br}_var"] = pos((ch,))

    feature_size = conv_dims(D_in)
    p["fc1_predict_w"] = nrm((D_hidden, feature_size))
    p["fc1_predict_b"] = nrm((D_hidden,))
    p["fc2_predict_w"] = nrm((D_hidden, D_hidden))
    p["fc2_predict_b"] = nrm((D_hidden,))
    p["fc3_predict_w"] = nrm((D_hidden, D_hidden))
    p["fc3_predict_b"] = nrm((D_hidden,))
    p["fc1_target_w"] = nrm((D_hidden, feature_size))
    p["fc1_target_b"] = nrm((D_hidden,))

    # RunningMeanStd state
    p["rms_obs_mean"] = nrm((C, H, W), scale=0.1)
    p["rms_obs_var"] = pos((C, H, W))
    p["rms_ri_var"] = pos(())
    return p, feature_size


def _reference_forward(params, s_next, obs_normalize=True, ri_normalize=True,
                       batch_norm=True):
    """Pure-JAX (lax.conv) reference of RND_CNN.forward for validation."""
    hi = jax.lax.Precision.HIGHEST
    x = s_next.astype(jnp.float32) / 255.0
    if obs_normalize:
        m = params["rms_obs_mean"][None]
        v = params["rms_obs_var"][None]
        x = jnp.clip((x - m) / (jnp.sqrt(v) + OBS_EPS), -5.0, 5.0)

    def branch_conv(x, br):
        for idx, stride in ((1, 4), (2, 2), (3, 1)):
            w = params[f"conv{idx}_{br}_w"]
            b = params[f"conv{idx}_{br}_b"]
            if batch_norm:
                w, b = fold_bn(w, b,
                               params[f"bn{idx}_{br}_gamma"],
                               params[f"bn{idx}_{br}_beta"],
                               params[f"bn{idx}_{br}_mean"],
                               params[f"bn{idx}_{br}_var"])
            x = jax.lax.conv_general_dilated(
                x, w, (stride, stride), "VALID",
                dimension_numbers=("NCHW", "OIHW", "NCHW"), precision=hi)
            x = jnp.maximum(x + b[None, :, None, None], 0.0)
        return x.reshape(x.shape[0], -1)

    p = branch_conv(x, "predict")
    t = branch_conv(x, "target")
    p = jnp.maximum(jnp.dot(p, params["fc1_predict_w"].T, precision=hi)
                    + params["fc1_predict_b"], 0.0)
    p = jnp.maximum(jnp.dot(p, params["fc2_predict_w"].T, precision=hi)
                    + params["fc2_predict_b"], 0.0)
    p = jnp.dot(p, params["fc3_predict_w"].T, precision=hi) + params["fc3_predict_b"]
    t = jnp.dot(t, params["fc1_target_w"].T, precision=hi) + params["fc1_target_b"]
    r = jnp.mean((p - t) ** 2, axis=1)
    if ri_normalize:
        r = r / (jnp.sqrt(params["rms_ri_var"]) + RI_EPS)
    return r


# ----------------------------------------------------------------------------
if __name__ == "__main__":
    # D_in = (C, H, W); H=W=36 gives conv output dims 8 -> 3 -> 1 (feature 64)
    D_in = (4, 36, 36)
    D_hidden = 32
    B = 2

    key = jax.random.PRNGKey(0)
    pkey, xkey = jax.random.split(key)
    params, feature_size = init_params(pkey, D_in, D_hidden)
    s_next = jax.random.uniform(xkey, (B,) + D_in, dtype=jnp.float32,
                                minval=0.0, maxval=255.0)

    r_ref = _reference_forward(params, s_next)

    # --- f32 MXU path: exact PyTorch-f32 semantics, tight validation --------
    prep32, meta32 = prepare_rnd_params(params, D_in, D_hidden, B,
                                        mxu_dtype=jnp.float32)
    fwd32 = jax.jit(functools.partial(rnd_cnn_forward, meta=meta32))
    r32 = jax.block_until_ready(fwd32(prep32, s_next))
    assert r32.shape == (B,) and r32.dtype == jnp.float32
    assert bool(jnp.allclose(r32, r_ref, rtol=2e-2, atol=1e-4)), (r32, r_ref)

    # --- bf16 MXU path (default fast path on v5e/v6e/v7x; f32 accumulation) -
    prep16, meta16 = prepare_rnd_params(params, D_in, D_hidden, B,
                                        mxu_dtype=jnp.bfloat16)
    fwd16 = jax.jit(functools.partial(rnd_cnn_forward, meta=meta16))
    r16 = jax.block_until_ready(fwd16(prep16, s_next))
    assert r16.shape == (B,) and r16.dtype == jnp.float32
    assert bool(jnp.allclose(r16, r_ref, rtol=1e-1, atol=1e-3)), (r16, r_ref)

    print("KERNEL_OK")
</pallas_src>

<mosaic_0001>
module attributes {stable_mosaic.version = 11 : i64} {
  func.func @kernel(%arg0: memref<128x256xf32, #tpu.memory_space<vmem>>, %arg1: memref<64x256xf32, #tpu.memory_space<vmem>>, %arg2: memref<64x256xf32, #tpu.memory_space<vmem>>, %arg3: memref<256x64xf32, #tpu.memory_space<vmem>>, %arg4: memref<1x64xf32, #tpu.memory_space<vmem>>, %arg5: memref<16x24x128xf32, #tpu.memory_space<vmem>>, %arg6: memref<1024x128xf32, #tpu.memory_space<vmem>>, %arg7: memref<1x128xf32, #tpu.memory_space<vmem>>, %arg8: memref<9x8x24xf32, #tpu.memory_space<vmem>>, %arg9: memref<1152x128xf32, #tpu.memory_space<vmem>>, %arg10: memref<1x128xf32, #tpu.memory_space<vmem>>, %arg11: memref<128x256xf32, #tpu.memory_space<vmem>>, %arg12: memref<1x256xf32, #tpu.memory_space<vmem>>, %arg13: memref<128x128xf32, #tpu.memory_space<vmem>>, %arg14: memref<1x128xf32, #tpu.memory_space<vmem>>, %arg15: memref<128x128xf32, #tpu.memory_space<vmem>>, %arg16: memref<1x128xf32, #tpu.memory_space<vmem>>, %arg17: memref<8x128xf32, #tpu.memory_space<vmem>>) attributes {dimension_semantics = [], scalar_prefetch = 0 : i64, scratch_operands = 0 : i64, tpu.core_type = #tpu.core_type<tc>} {
    %c0 = arith.constant 0 : index
    %c0_0 = arith.constant 0 : index
    %0 = vector.load %arg0[%c0, %c0_0] : memref<128x256xf32, #tpu.memory_space<vmem>>, vector<128x256xf32>
    %c0_1 = arith.constant 0 : index
    %c0_2 = arith.constant 0 : index
    %1 = vector.load %arg1[%c0_1, %c0_2] : memref<64x256xf32, #tpu.memory_space<vmem>>, vector<64x256xf32>
    %2 = tpu.concatenate %1, %1 in 0 : vector<64x256xf32>, vector<64x256xf32> -> vector<128x256xf32>
    %c0_3 = arith.constant 0 : index
    %c0_4 = arith.constant 0 : index
    %3 = vector.load %arg2[%c0_3, %c0_4] : memref<64x256xf32, #tpu.memory_space<vmem>>, vector<64x256xf32>
    %4 = tpu.concatenate %3, %3 in 0 : vector<64x256xf32>, vector<64x256xf32> -> vector<128x256xf32>
    %5 = arith.mulf %0, %2 : vector<128x256xf32>
    %6 = arith.addf %5, %4 : vector<128x256xf32>
    %cst = arith.constant -5.000000e+00 : f32
    %cst_5 = arith.constant 5.000000e+00 : f32
    %7 = vector.broadcast %cst : f32 to vector<128x256xf32>
    %8 = arith.maximumf %7, %6 : vector<128x256xf32>
    %9 = vector.broadcast %cst_5 : f32 to vector<128x256xf32>
    %10 = arith.minimumf %9, %8 : vector<128x256xf32>
    %c0_6 = arith.constant 0 : index
    %c0_7 = arith.constant 0 : index
    %11 = vector.load %arg3[%c0_6, %c0_7] : memref<256x64xf32, #tpu.memory_space<vmem>>, vector<256x64xf32>
    %cst_8 = arith.constant dense<0.000000e+00> : vector<128x64xf32>
    %12 = tpu.matmul %10, %11, %cst_8 {dimension_numbers = #tpu.dot_dimension_numbers<[1], [0], [0], [1], [0, 0, 1, 1], [], []>} : vector<128x256xf32>, vector<256x64xf32>, vector<128x64xf32> -> vector<128x64xf32>
    %c0_9 = arith.constant 0 : index
    %c0_10 = arith.constant 0 : index
    %13 = vector.load %arg4[%c0_9, %c0_10] : memref<1x64xf32, #tpu.memory_space<vmem>>, vector<1x64xf32>
    %14 = vector.broadcast %13 : vector<1x64xf32> to vector<128x64xf32>
    %15 = arith.addf %12, %14 : vector<128x64xf32>
    %cst_11 = arith.constant 0.000000e+00 : f32
    %16 = vector.broadcast %cst_11 : f32 to vector<128x64xf32>
    %17 = arith.maximumf %15, %16 : vector<128x64xf32>
    %c0_12 = arith.constant 0 : index
    %c0_13 = arith.constant 0 : index
    %c0_14 = arith.constant 0 : index
    %18 = vector.load %arg5[%c0_12, %c0_13, %c0_14] : memref<16x24x128xf32, #tpu.memory_space<vmem>>, vector<1x24x128xf32>
    %19 = vector.shape_cast %18 : vector<1x24x128xf32> to vector<24x128xf32>
    %cst_15 = arith.constant dense<0.000000e+00> : vector<24x64xf32>
    %20 = tpu.matmul %19, %17, %cst_15 {dimension_numbers = #tpu.dot_dimension_numbers<[1], [0], [0], [1], [0, 0, 1, 1], [], []>} : vector<24x128xf32>, vector<128x64xf32>, vector<24x64xf32> -> vector<24x64xf32>
    %c1 = arith.constant 1 : index
    %c0_16 = arith.constant 0 : index
    %c0_17 = arith.constant 0 : index
    %21 = vector.load %arg5[%c1, %c0_16, %c0_17] : memref<16x24x128xf32, #tpu.memory_space<vmem>>, vector<1x24x128xf32>
    %22 = vector.shape_cast %21 : vector<1x24x128xf32> to vector<24x128xf32>
    %cst_18 = arith.constant dense<0.000000e+00> : vector<24x64xf32>
    %23 = tpu.matmul %22, %17, %cst_18 {dimension_numbers = #tpu.dot_dimension_numbers<[1], [0], [0], [1], [0, 0, 1, 1], [], []>} : vector<24x128xf32>, vector<128x64xf32>, vector<24x64xf32> -> vector<24x64xf32>
    %c2 = arith.constant 2 : index
    %c0_19 = arith.constant 0 : index
    %c0_20 = arith.constant 0 : index
    %24 = vector.load %arg5[%c2, %c0_19, %c0_20] : memref<16x24x128xf32, #tpu.memory_space<vmem>>, vector<1x24x128xf32>
    %25 = vector.shape_cast %24 : vector<1x24x128xf32> to vector<24x128xf32>
    %cst_21 = arith.constant dense<0.000000e+00> : vector<24x64xf32>
    %26 = tpu.matmul %25, %17, %cst_21 {dimension_numbers = #tpu.dot_dimension_numbers<[1], [0], [0], [1], [0, 0, 1, 1], [], []>} : vector<24x128xf32>, vector<128x64xf32>, vector<24x64xf32> -> vector<24x64xf32>
    %c3 = arith.constant 3 : index
    %c0_22 = arith.constant 0 : index
    %c0_23 = arith.constant 0 : index
    %27 = vector.load %arg5[%c3, %c0_22, %c0_23] : memref<16x24x128xf32, #tpu.memory_space<vmem>>, vector<1x24x128xf32>
    %28 = vector.shape_cast %27 : vector<1x24x128xf32> to vector<24x128xf32>
    %cst_24 = arith.constant dense<0.000000e+00> : vector<24x64xf32>
    %29 = tpu.matmul %28, %17, %cst_24 {dimension_numbers = #tpu.dot_dimension_numbers<[1], [0], [0], [1], [0, 0, 1, 1], [], []>} : vector<24x128xf32>, vector<128x64xf32>, vector<24x64xf32> -> vector<24x64xf32>
    %c4 = arith.constant 4 : index
    %c0_25 = arith.constant 0 : index
    %c0_26 = arith.constant 0 : index
    %30 = vector.load %arg5[%c4, %c0_25, %c0_26] : memref<16x24x128xf32, #tpu.memory_space<vmem>>, vector<1x24x128xf32>
    %31 = vector.shape_cast %30 : vector<1x24x128xf32> to vector<24x128xf32>
    %cst_27 = arith.constant dense<0.000000e+00> : vector<24x64xf32>
    %32 = tpu.matmul %31, %17, %cst_27 {dimension_numbers = #tpu.dot_dimension_numbers<[1], [0], [0], [1], [0, 0, 1, 1], [], []>} : vector<24x128xf32>, vector<128x64xf32>, vector<24x64xf32> -> vector<24x64xf32>
    %c5 = arith.constant 5 : index
    %c0_28 = arith.constant 0 : index
    %c0_29 = arith.constant 0 : index
    %33 = vector.load %arg5[%c5, %c0_28, %c0_29] : memref<16x24x128xf32, #tpu.memory_space<vmem>>, vector<1x24x128xf32>
    %34 = vector.shape_cast %33 : vector<1x24x128xf32> to vector<24x128xf32>
    %cst_30 = arith.constant dense<0.000000e+00> : vector<24x64xf32>
    %35 = tpu.matmul %34, %17, %cst_30 {dimension_numbers = #tpu.dot_dimension_numbers<[1], [0], [0], [1], [0, 0, 1, 1], [], []>} : vector<24x128xf32>, vector<128x64xf32>, vector<24x64xf32> -> vector<24x64xf32>
    %c6 = arith.constant 6 : index
    %c0_31 = arith.constant 0 : index
    %c0_32 = arith.constant 0 : index
    %36 = vector.load %arg5[%c6, %c0_31, %c0_32] : memref<16x24x128xf32, #tpu.memory_space<vmem>>, vector<1x24x128xf32>
    %37 = vector.shape_cast %36 : vector<1x24x128xf32> to vector<24x128xf32>
    %cst_33 = arith.constant dense<0.000000e+00> : vector<24x64xf32>
    %38 = tpu.matmul %37, %17, %cst_33 {dimension_numbers = #tpu.dot_dimension_numbers<[1], [0], [0], [1], [0, 0, 1, 1], [], []>} : vector<24x128xf32>, vector<128x64xf32>, vector<24x64xf32> -> vector<24x64xf32>
    %c7 = arith.constant 7 : index
    %c0_34 = arith.constant 0 : index
    %c0_35 = arith.constant 0 : index
    %39 = vector.load %arg5[%c7, %c0_34, %c0_35] : memref<16x24x128xf32, #tpu.memory_space<vmem>>, vector<1x24x128xf32>
    %40 = vector.shape_cast %39 : vector<1x24x128xf32> to vector<24x128xf32>
    %cst_36 = arith.constant dense<0.000000e+00> : vector<24x64xf32>
    %41 = tpu.matmul %40, %17, %cst_36 {dimension_numbers = #tpu.dot_dimension_numbers<[1], [0], [0], [1], [0, 0, 1, 1], [], []>} : vector<24x128xf32>, vector<128x64xf32>, vector<24x64xf32> -> vector<24x64xf32>
    %c8 = arith.constant 8 : index
    %c0_37 = arith.constant 0 : index
    %c0_38 = arith.constant 0 : index
    %42 = vector.load %arg5[%c8, %c0_37, %c0_38] : memref<16x24x128xf32, #tpu.memory_space<vmem>>, vector<1x24x128xf32>
    %43 = vector.shape_cast %42 : vector<1x24x128xf32> to vector<24x128xf32>
    %cst_39 = arith.constant dense<0.000000e+00> : vector<24x64xf32>
    %44 = tpu.matmul %43, %17, %cst_39 {dimension_numbers = #tpu.dot_dimension_numbers<[1], [0], [0], [1], [0, 0, 1, 1], [], []>} : vector<24x128xf32>, vector<128x64xf32>, vector<24x64xf32> -> vector<24x64xf32>
    %c9 = arith.constant 9 : index
    %c0_40 = arith.constant 0 : index
    %c0_41 = arith.constant 0 : index
    %45 = vector.load %arg5[%c9, %c0_40, %c0_41] : memref<16x24x128xf32, #tpu.memory_space<vmem>>, vector<1x24x128xf32>
    %46 = vector.shape_cast %45 : vector<1x24x128xf32> to vector<24x128xf32>
    %cst_42 = arith.constant dense<0.000000e+00> : vector<24x64xf32>
    %47 = tpu.matmul %46, %17, %cst_42 {dimension_numbers = #tpu.dot_dimension_numbers<[1], [0], [0], [1], [0, 0, 1, 1], [], []>} : vector<24x128xf32>, vector<128x64xf32>, vector<24x64xf32> -> vector<24x64xf32>
    %c10 = arith.constant 10 : index
    %c0_43 = arith.constant 0 : index
    %c0_44 = arith.constant 0 : index
    %48 = vector.load %arg5[%c10, %c0_43, %c0_44] : memref<16x24x128xf32, #tpu.memory_space<vmem>>, vector<1x24x128xf32>
    %49 = vector.shape_cast %48 : vector<1x24x128xf32> to vector<24x128xf32>
    %cst_45 = arith.constant dense<0.000000e+00> : vector<24x64xf32>
    %50 = tpu.matmul %49, %17, %cst_45 {dimension_numbers = #tpu.dot_dimension_numbers<[1], [0], [0], [1], [0, 0, 1, 1], [], []>} : vector<24x128xf32>, vector<128x64xf32>, vector<24x64xf32> -> vector<24x64xf32>
    %c11 = arith.constant 11 : index
    %c0_46 = arith.constant 0 : index
    %c0_47 = arith.constant 0 : index
    %51 = vector.load %arg5[%c11, %c0_46, %c0_47] : memref<16x24x128xf32, #tpu.memory_space<vmem>>, vector<1x24x128xf32>
    %52 = vector.shape_cast %51 : vector<1x24x128xf32> to vector<24x128xf32>
    %cst_48 = arith.constant dense<0.000000e+00> : vector<24x64xf32>
    %53 = tpu.matmul %52, %17, %cst_48 {dimension_numbers = #tpu.dot_dimension_numbers<[1], [0], [0], [1], [0, 0, 1, 1], [], []>} : vector<24x128xf32>, vector<128x64xf32>, vector<24x64xf32> -> vector<24x64xf32>
    %c12 = arith.constant 12 : index
    %c0_49 = arith.constant 0 : index
    %c0_50 = arith.constant 0 : index
    %54 = vector.load %arg5[%c12, %c0_49, %c0_50] : memref<16x24x128xf32, #tpu.memory_space<vmem>>, vector<1x24x128xf32>
    %55 = vector.shape_cast %54 : vector<1x24x128xf32> to vector<24x128xf32>
    %cst_51 = arith.constant dense<0.000000e+00> : vector<24x64xf32>
    %56 = tpu.matmul %55, %17, %cst_51 {dimension_numbers = #tpu.dot_dimension_numbers<[1], [0], [0], [1], [0, 0, 1, 1], [], []>} : vector<24x128xf32>, vector<128x64xf32>, vector<24x64xf32> -> vector<24x64xf32>
    %c13 = arith.constant 13 : index
    %c0_52 = arith.constant 0 : index
    %c0_53 = arith.constant 0 : index
    %57 = vector.load %arg5[%c13, %c0_52, %c0_53] : memref<16x24x128xf32, #tpu.memory_space<vmem>>, vector<1x24x128xf32>
    %58 = vector.shape_cast %57 : vector<1x24x128xf32> to vector<24x128xf32>
    %cst_54 = arith.constant dense<0.000000e+00> : vector<24x64xf32>
    %59 = tpu.matmul %58, %17, %cst_54 {dimension_numbers = #tpu.dot_dimension_numbers<[1], [0], [0], [1], [0, 0, 1, 1], [], []>} : vector<24x128xf32>, vector<128x64xf32>, vector<24x64xf32> -> vector<24x64xf32>
    %c14 = arith.constant 14 : index
    %c0_55 = arith.constant 0 : index
    %c0_56 = arith.constant 0 : index
    %60 = vector.load %arg5[%c14, %c0_55, %c0_56] : memref<16x24x128xf32, #tpu.memory_space<vmem>>, vector<1x24x128xf32>
    %61 = vector.shape_cast %60 : vector<1x24x128xf32> to vector<24x128xf32>
    %cst_57 = arith.constant dense<0.000000e+00> : vector<24x64xf32>
    %62 = tpu.matmul %61, %17, %cst_57 {dimension_numbers = #tpu.dot_dimension_numbers<[1], [0], [0], [1], [0, 0, 1, 1], [], []>} : vector<24x128xf32>, vector<128x64xf32>, vector<24x64xf32> -> vector<24x64xf32>
    %c15 = arith.constant 15 : index
    %c0_58 = arith.constant 0 : index
    %c0_59 = arith.constant 0 : index
    %63 = vector.load %arg5[%c15, %c0_58, %c0_59] : memref<16x24x128xf32, #tpu.memory_space<vmem>>, vector<1x24x128xf32>
    %64 = vector.shape_cast %63 : vector<1x24x128xf32> to vector<24x128xf32>
    %cst_60 = arith.constant dense<0.000000e+00> : vector<24x64xf32>
    %65 = tpu.matmul %64, %17, %cst_60 {dimension_numbers = #tpu.dot_dimension_numbers<[1], [0], [0], [1], [0, 0, 1, 1], [], []>} : vector<24x128xf32>, vector<128x64xf32>, vector<24x64xf32> -> vector<24x64xf32>
    %66 = tpu.concatenate %20, %23, %26, %29, %32, %35, %38, %41, %44, %47, %50, %53, %56, %59, %62, %65 in 1 : vector<24x64xf32>, vector<24x64xf32>, vector<24x64xf32>, vector<24x64xf32>, vector<24x64xf32>, vector<24x64xf32>, vector<24x64xf32>, vector<24x64xf32>, vector<24x64xf32>, vector<24x64xf32>, vector<24x64xf32>, vector<24x64xf32>, vector<24x64xf32>, vector<24x64xf32>, vector<24x64xf32>, vector<24x64xf32> -> vector<24x1024xf32>
    %c0_61 = arith.constant 0 : index
    %c0_62 = arith.constant 0 : index
    %67 = vector.load %arg6[%c0_61, %c0_62] : memref<1024x128xf32, #tpu.memory_space<vmem>>, vector<1024x128xf32>
    %cst_63 = arith.constant dense<0.000000e+00> : vector<24x128xf32>
    %68 = tpu.matmul %66, %67, %cst_63 {dimension_numbers = #tpu.dot_dimension_numbers<[1], [0], [0], [1], [0, 0, 1, 1], [], []>} : vector<24x1024xf32>, vector<1024x128xf32>, vector<24x128xf32> -> vector<24x128xf32>
    %c0_64 = arith.constant 0 : index
    %c0_65 = arith.constant 0 : index
    %69 = vector.load %arg7[%c0_64, %c0_65] : memref<1x128xf32, #tpu.memory_space<vmem>>, vector<1x128xf32>
    %70 = vector.broadcast %69 : vector<1x128xf32> to vector<24x128xf32>
    %71 = arith.addf %68, %70 : vector<24x128xf32>
    %cst_66 = arith.constant 0.000000e+00 : f32
    %72 = vector.broadcast %cst_66 : f32 to vector<24x128xf32>
    %73 = arith.maximumf %71, %72 : vector<24x128xf32>
    %c0_67 = arith.constant 0 : index
    %c0_68 = arith.constant 0 : index
    %c0_69 = arith.constant 0 : index
    %74 = vector.load %arg8[%c0_67, %c0_68, %c0_69] : memref<9x8x24xf32, #tpu.memory_space<vmem>>, vector<1x8x24xf32>
    %75 = vector.shape_cast %74 : vector<1x8x24xf32> to vector<8x24xf32>
    %cst_70 = arith.constant dense<0.000000e+00> : vector<8x128xf32>
    %76 = tpu.matmul %75, %73, %cst_70 {dimension_numbers = #tpu.dot_dimension_numbers<[1], [0], [0], [1], [0, 0, 1, 1], [], []>} : vector<8x24xf32>, vector<24x128xf32>, vector<8x128xf32> -> vector<8x128xf32>
    %c1_71 = arith.constant 1 : index
    %c0_72 = arith.constant 0 : index
    %c0_73 = arith.constant 0 : index
    %77 = vector.load %arg8[%c1_71, %c0_72, %c0_73] : memref<9x8x24xf32, #tpu.memory_space<vmem>>, vector<1x8x24xf32>
    %78 = vector.shape_cast %77 : vector<1x8x24xf32> to vector<8x24xf32>
    %cst_74 = arith.constant dense<0.000000e+00> : vector<8x128xf32>
    %79 = tpu.matmul %78, %73, %cst_74 {dimension_numbers = #tpu.dot_dimension_numbers<[1], [0], [0], [1], [0, 0, 1, 1], [], []>} : vector<8x24xf32>, vector<24x128xf32>, vector<8x128xf32> -> vector<8x128xf32>
    %c2_75 = arith.constant 2 : index
    %c0_76 = arith.constant 0 : index
    %c0_77 = arith.constant 0 : index
    %80 = vector.load %arg8[%c2_75, %c0_76, %c0_77] : memref<9x8x24xf32, #tpu.memory_space<vmem>>, vector<1x8x24xf32>
    %81 = vector.shape_cast %80 : vector<1x8x24xf32> to vector<8x24xf32>
    %cst_78 = arith.constant dense<0.000000e+00> : vector<8x128xf32>
    %82 = tpu.matmul %81, %73, %cst_78 {dimension_numbers = #tpu.dot_dimension_numbers<[1], [0], [0], [1], [0, 0, 1, 1], [], []>} : vector<8x24xf32>, vector<24x128xf32>, vector<8x128xf32> -> vector<8x128xf32>
    %c3_79 = arith.constant 3 : index
    %c0_80 = arith.constant 0 : index
    %c0_81 = arith.constant 0 : index
    %83 = vector.load %arg8[%c3_79, %c0_80, %c0_81] : memref<9x8x24xf32, #tpu.memory_space<vmem>>, vector<1x8x24xf32>
    %84 = vector.shape_cast %83 : vector<1x8x24xf32> to vector<8x24xf32>
    %cst_82 = arith.constant dense<0.000000e+00> : vector<8x128xf32>
    %85 = tpu.matmul %84, %73, %cst_82 {dimension_numbers = #tpu.dot_dimension_numbers<[1], [0], [0], [1], [0, 0, 1, 1], [], []>} : vector<8x24xf32>, vector<24x128xf32>, vector<8x128xf32> -> vector<8x128xf32>
    %c4_83 = arith.constant 4 : index
    %c0_84 = arith.constant 0 : index
    %c0_85 = arith.constant 0 : index
    %86 = vector.load %arg8[%c4_83, %c0_84, %c0_85] : memref<9x8x24xf32, #tpu.memory_space<vmem>>, vector<1x8x24xf32>
    %87 = vector.shape_cast %86 : vector<1x8x24xf32> to vector<8x24xf32>
    %cst_86 = arith.constant dense<0.000000e+00> : vector<8x128xf32>
    %88 = tpu.matmul %87, %73, %cst_86 {dimension_numbers = #tpu.dot_dimension_numbers<[1], [0], [0], [1], [0, 0, 1, 1], [], []>} : vector<8x24xf32>, vector<24x128xf32>, vector<8x128xf32> -> vector<8x128xf32>
    %c5_87 = arith.constant 5 : index
    %c0_88 = arith.constant 0 : index
    %c0_89 = arith.constant 0 : index
    %89 = vector.load %arg8[%c5_87, %c0_88, %c0_89] : memref<9x8x24xf32, #tpu.memory_space<vmem>>, vector<1x8x24xf32>
    %90 = vector.shape_cast %89 : vector<1x8x24xf32> to vector<8x24xf32>
    %cst_90 = arith.constant dense<0.000000e+00> : vector<8x128xf32>
    %91 = tpu.matmul %90, %73, %cst_90 {dimension_numbers = #tpu.dot_dimension_numbers<[1], [0], [0], [1], [0, 0, 1, 1], [], []>} : vector<8x24xf32>, vector<24x128xf32>, vector<8x128xf32> -> vector<8x128xf32>
    %c6_91 = arith.constant 6 : index
    %c0_92 = arith.constant 0 : index
    %c0_93 = arith.constant 0 : index
    %92 = vector.load %arg8[%c6_91, %c0_92, %c0_93] : memref<9x8x24xf32, #tpu.memory_space<vmem>>, vector<1x8x24xf32>
    %93 = vector.shape_cast %92 : vector<1x8x24xf32> to vector<8x24xf32>
    %cst_94 = arith.constant dense<0.000000e+00> : vector<8x128xf32>
    %94 = tpu.matmul %93, %73, %cst_94 {dimension_numbers = #tpu.dot_dimension_numbers<[1], [0], [0], [1], [0, 0, 1, 1], [], []>} : vector<8x24xf32>, vector<24x128xf32>, vector<8x128xf32> -> vector<8x128xf32>
    %c7_95 = arith.constant 7 : index
    %c0_96 = arith.constant 0 : index
    %c0_97 = arith.constant 0 : index
    %95 = vector.load %arg8[%c7_95, %c0_96, %c0_97] : memref<9x8x24xf32, #tpu.memory_space<vmem>>, vector<1x8x24xf32>
    %96 = vector.shape_cast %95 : vector<1x8x24xf32> to vector<8x24xf32>
    %cst_98 = arith.constant dense<0.000000e+00> : vector<8x128xf32>
    %97 = tpu.matmul %96, %73, %cst_98 {dimension_numbers = #tpu.dot_dimension_numbers<[1], [0], [0], [1], [0, 0, 1, 1], [], []>} : vector<8x24xf32>, vector<24x128xf32>, vector<8x128xf32> -> vector<8x128xf32>
    %c8_99 = arith.constant 8 : index
    %c0_100 = arith.constant 0 : index
    %c0_101 = arith.constant 0 : index
    %98 = vector.load %arg8[%c8_99, %c0_100, %c0_101] : memref<9x8x24xf32, #tpu.memory_space<vmem>>, vector<1x8x24xf32>
    %99 = vector.shape_cast %98 : vector<1x8x24xf32> to vector<8x24xf32>
    %cst_102 = arith.constant dense<0.000000e+00> : vector<8x128xf32>
    %100 = tpu.matmul %99, %73, %cst_102 {dimension_numbers = #tpu.dot_dimension_numbers<[1], [0], [0], [1], [0, 0, 1, 1], [], []>} : vector<8x24xf32>, vector<24x128xf32>, vector<8x128xf32> -> vector<8x128xf32>
    %101 = tpu.concatenate %76, %79, %82, %85, %88, %91, %94, %97, %100 in 1 : vector<8x128xf32>, vector<8x128xf32>, vector<8x128xf32>, vector<8x128xf32>, vector<8x128xf32>, vector<8x128xf32>, vector<8x128xf32>, vector<8x128xf32>, vector<8x128xf32> -> vector<8x1152xf32>
    %c0_103 = arith.constant 0 : index
    %c0_104 = arith.constant 0 : index
    %102 = vector.load %arg9[%c0_103, %c0_104] : memref<1152x128xf32, #tpu.memory_space<vmem>>, vector<1152x128xf32>
    %cst_105 = arith.constant dense<0.000000e+00> : vector<8x128xf32>
    %103 = tpu.matmul %101, %102, %cst_105 {dimension_numbers = #tpu.dot_dimension_numbers<[1], [0], [0], [1], [0, 0, 1, 1], [], []>} : vector<8x1152xf32>, vector<1152x128xf32>, vector<8x128xf32> -> vector<8x128xf32>
    %c0_106 = arith.constant 0 : index
    %c0_107 = arith.constant 0 : index
    %104 = vector.load %arg10[%c0_106, %c0_107] : memref<1x128xf32, #tpu.memory_space<vmem>>, vector<1x128xf32>
    %105 = vector.broadcast %104 : vector<1x128xf32> to vector<8x128xf32>
    %106 = arith.addf %103, %105 : vector<8x128xf32>
    %cst_108 = arith.constant 0.000000e+00 : f32
    %107 = vector.broadcast %cst_108 : f32 to vector<8x128xf32>
    %108 = arith.maximumf %106, %107 : vector<8x128xf32>
    %c0_109 = arith.constant 0 : index
    %c0_110 = arith.constant 0 : index
    %109 = vector.load %arg11[%c0_109, %c0_110] : memref<128x256xf32, #tpu.memory_space<vmem>>, vector<128x256xf32>
    %cst_111 = arith.constant dense<0.000000e+00> : vector<8x256xf32>
    %110 = tpu.matmul %108, %109, %cst_111 {dimension_numbers = #tpu.dot_dimension_numbers<[1], [0], [0], [1], [0, 0, 1, 1], [], []>} : vector<8x128xf32>, vector<128x256xf32>, vector<8x256xf32> -> vector<8x256xf32>
    %c0_112 = arith.constant 0 : index
    %c0_113 = arith.constant 0 : index
    %111 = vector.load %arg12[%c0_112, %c0_113] : memref<1x256xf32, #tpu.memory_space<vmem>>, vector<1x256xf32>
    %112 = vector.broadcast %111 : vector<1x256xf32> to vector<8x256xf32>
    %113 = arith.addf %110, %112 : vector<8x256xf32>
    %114 = vector.extract_strided_slice %113 {offsets = [0, 0], sizes = [8, 128], strides = [1, 1]} : vector<8x256xf32> to vector<8x128xf32>
    %cst_114 = arith.constant 0.000000e+00 : f32
    %115 = vector.broadcast %cst_114 : f32 to vector<8x128xf32>
    %116 = arith.maximumf %114, %115 : vector<8x128xf32>
    %117 = vector.extract_strided_slice %113 {offsets = [0, 128], sizes = [8, 128], strides = [1, 1]} : vector<8x256xf32> to vector<8x128xf32>
    %c0_115 = arith.constant 0 : index
    %c0_116 = arith.constant 0 : index
    %118 = vector.load %arg13[%c0_115, %c0_116] : memref<128x128xf32, #tpu.memory_space<vmem>>, vector<128x128xf32>
    %cst_117 = arith.constant dense<0.000000e+00> : vector<8x128xf32>
    %119 = tpu.matmul %116, %118, %cst_117 {dimension_numbers = #tpu.dot_dimension_numbers<[1], [0], [0], [1], [0, 0, 1, 1], [], []>} : vector<8x128xf32>, vector<128x128xf32>, vector<8x128xf32> -> vector<8x128xf32>
    %c0_118 = arith.constant 0 : index
    %c0_119 = arith.constant 0 : index
    %120 = vector.load %arg14[%c0_118, %c0_119] : memref<1x128xf32, #tpu.memory_space<vmem>>, vector<1x128xf32>
    %121 = vector.broadcast %120 : vector<1x128xf32> to vector<8x128xf32>
    %122 = arith.addf %119, %121 : vector<8x128xf32>
    %cst_120 = arith.constant 0.000000e+00 : f32
    %123 = vector.broadcast %cst_120 : f32 to vector<8x128xf32>
    %124 = arith.maximumf %122, %123 : vector<8x128xf32>
    %c0_121 = arith.constant 0 : index
    %c0_122 = arith.constant 0 : index
    %125 = vector.load %arg15[%c0_121, %c0_122] : memref<128x128xf32, #tpu.memory_space<vmem>>, vector<128x128xf32>
    %cst_123 = arith.constant dense<0.000000e+00> : vector<8x128xf32>
    %126 = tpu.matmul %124, %125, %cst_123 {dimension_numbers = #tpu.dot_dimension_numbers<[1], [0], [0], [1], [0, 0, 1, 1], [], []>} : vector<8x128xf32>, vector<128x128xf32>, vector<8x128xf32> -> vector<8x128xf32>
    %c0_124 = arith.constant 0 : index
    %c0_125 = arith.constant 0 : index
    %127 = vector.load %arg16[%c0_124, %c0_125] : memref<1x128xf32, #tpu.memory_space<vmem>>, vector<1x128xf32>
    %128 = vector.broadcast %127 : vector<1x128xf32> to vector<8x128xf32>
    %129 = arith.addf %126, %128 : vector<8x128xf32>
    %130 = arith.subf %129, %117 : vector<8x128xf32>
    %131 = arith.mulf %130, %130 : vector<8x128xf32>
    %cst_126 = arith.constant dense<0.000000e+00> : vector<8xf32>
    %132 = vector.multi_reduction <add>, %131, %cst_126 [1] : vector<8x128xf32> to vector<8xf32>
    %133 = vector.shape_cast %132 : vector<8xf32> to vector<8x1xf32>
    %134 = vector.shape_cast %133 : vector<8x1xf32> to vector<8x1xf32>
    %135 = vector.broadcast %134 : vector<8x1xf32> to vector<8x128xf32>
    %c0_127 = arith.constant 0 : index
    %c0_128 = arith.constant 0 : index
    %136 = vector.load %arg17[%c0_127, %c0_128] : memref<8x128xf32, #tpu.memory_space<vmem>>, vector<8x128xf32>
    tpu.vector_store %arg17[%c0_127, %c0_128], %135 {strides = array<i32>} : memref<8x128xf32, #tpu.memory_space<vmem>>, vector<8x128xf32>,
    return
  }
}

</mosaic_0001>

<llo_original>
// kernel: rnd_cnn_forward.1
$region0: #{rnd_cnn_forward.1}
  #allocation0 [shape = 'u32[]', space=smem, size = 0x4, offset = 0x4, fixed_abs, tag = 'smem constant byte address 0x4 - core index']
  #allocation1 [shape = 'u32[144,128]{1,0:T(1,128)}', space=vmem, size = 0x12000, scoped, tag = 'internal scratch']
  %s0 = inlined_call_operand.vmem [shape: f32[128,256], index: 0, kind: input, shape index: {}]
  %s1 = inlined_call_operand.vmem [shape: f32[64,256], index: 1, kind: input, shape index: {}]
  %s2 = inlined_call_operand.vmem [shape: f32[64,256], index: 2, kind: input, shape index: {}]
  %s3 = inlined_call_operand.vmem [shape: f32[256,64], index: 3, kind: input, shape index: {}]
  %s4 = inlined_call_operand.vmem [shape: f32[1,64], index: 4, kind: input, shape index: {}]
  %s5 = inlined_call_operand.vmem [shape: f32[16,24,128], index: 5, kind: input, shape index: {}]
  %s6 = inlined_call_operand.vmem [shape: f32[1024,128], index: 6, kind: input, shape index: {}]
  %s7 = inlined_call_operand.vmem [shape: f32[1,128], index: 7, kind: input, shape index: {}]
  %s8 = inlined_call_operand.vmem [shape: f32[9,8,24], index: 8, kind: input, shape index: {}]
  %s9 = inlined_call_operand.vmem [shape: f32[1152,128], index: 9, kind: input, shape index: {}]
  %s10 = inlined_call_operand.vmem [shape: f32[1,128], index: 10, kind: input, shape index: {}]
  %s11 = inlined_call_operand.vmem [shape: f32[128,256], index: 11, kind: input, shape index: {}]
  %s12 = inlined_call_operand.vmem [shape: f32[1,256], index: 12, kind: input, shape index: {}]
  %s13 = inlined_call_operand.vmem [shape: f32[128,128], index: 13, kind: input, shape index: {}]
  %s14 = inlined_call_operand.vmem [shape: f32[1,128], index: 14, kind: input, shape index: {}]
  %s15 = inlined_call_operand.vmem [shape: f32[128,128], index: 15, kind: input, shape index: {}]
  %s16 = inlined_call_operand.vmem [shape: f32[1,128], index: 16, kind: input, shape index: {}]
  %s17 = inlined_call_operand.vmem [shape: f32[8,128], index: 17, kind: output, shape index: {}]
  %s18 = sld [smem:[#allocation0]]
  $region78: #{rnd_cnn_forward.1} parent=0
    _
  %s20 = ssub.s32 1, %s18
  %s21 = scalar_select 0, %s20, %s18
  // Predicated region
  $region2: #{rnd_cnn_forward.1} parent=0 // pred_check
    _
  $region3: #{rnd_cnn_forward.1} parent=0 // pred_check_branch
    %23 = sbr.rel (0) target = $region5
  $region4: #{rnd_cnn_forward.1} parent=0 // pred_region
    _
  $region5: #{rnd_cnn_forward.1} parent=0 // pred_fallthru
    _
  // Predicated region
  $region6: #{rnd_cnn_forward.1} parent=0 // pred_check
    _
  $region7: #{rnd_cnn_forward.1} parent=0 // pred_check_branch
    %25 = sbr.rel (0) target = $region9
  $region8: #{rnd_cnn_forward.1} parent=0 // pred_region
    _
  $region9: #{rnd_cnn_forward.1} parent=0 // pred_fallthru
    _
  // Predicated region
  $region10: #{rnd_cnn_forward.1} parent=0 // pred_check
    _
  $region11: #{rnd_cnn_forward.1} parent=0 // pred_check_branch
    %27 = sbr.rel (0) target = $region13
  $region12: #{rnd_cnn_forward.1} parent=0 // pred_region
    _
  $region13: #{rnd_cnn_forward.1} parent=0 // pred_fallthru
    _
  // Predicated region
  $region14: #{rnd_cnn_forward.1} parent=0 // pred_check
    _
  $region15: #{rnd_cnn_forward.1} parent=0 // pred_check_branch
    %29 = sbr.rel (0) target = $region17
  $region16: #{rnd_cnn_forward.1} parent=0 // pred_region
    _
  $region17: #{rnd_cnn_forward.1} parent=0 // pred_fallthru
    _
  // Predicated region
  $region18: #{rnd_cnn_forward.1} parent=0 // pred_check
    _
  $region19: #{rnd_cnn_forward.1} parent=0 // pred_check_branch
    %31 = sbr.rel (0) target = $region21
  $region20: #{rnd_cnn_forward.1} parent=0 // pred_region
    _
  $region21: #{rnd_cnn_forward.1} parent=0 // pred_fallthru
    _
  // Predicated region
  $region22: #{rnd_cnn_forward.1} parent=0 // pred_check
    _
  $region23: #{rnd_cnn_forward.1} parent=0 // pred_check_branch
    %33 = sbr.rel (0) target = $region25
  $region24: #{rnd_cnn_forward.1} parent=0 // pred_region
    _
  $region25: #{rnd_cnn_forward.1} parent=0 // pred_fallthru
    _
  // Predicated region
  $region26: #{rnd_cnn_forward.1} parent=0 // pred_check
    _
  $region27: #{rnd_cnn_forward.1} parent=0 // pred_check_branch
    %35 = sbr.rel (0) target = $region29
  $region28: #{rnd_cnn_forward.1} parent=0 // pred_region
    _
  $region29: #{rnd_cnn_forward.1} parent=0 // pred_fallthru
    _
  // Predicated region
  $region30: #{rnd_cnn_forward.1} parent=0 // pred_check
    _
  $region31: #{rnd_cnn_forward.1} parent=0 // pred_check_branch
    %37 = sbr.rel (0) target = $region33
  $region32: #{rnd_cnn_forward.1} parent=0 // pred_region
    _
  $region33: #{rnd_cnn_forward.1} parent=0 // pred_fallthru
    _
  // Predicated region
  $region34: #{rnd_cnn_forward.1} parent=0 // pred_check
    _
  $region35: #{rnd_cnn_forward.1} parent=0 // pred_check_branch
    %39 = sbr.rel (0) target = $region37
  $region36: #{rnd_cnn_forward.1} parent=0 // pred_region
    _
  $region37: #{rnd_cnn_forward.1} parent=0 // pred_fallthru
    _
  // Predicated region
  $region38: #{rnd_cnn_forward.1} parent=0 // pred_check
    _
  $region39: #{rnd_cnn_forward.1} parent=0 // pred_check_branch
    %41 = sbr.rel (0) target = $region41
  $region40: #{rnd_cnn_forward.1} parent=0 // pred_region
    _
  $region41: #{rnd_cnn_forward.1} parent=0 // pred_fallthru
    _
  // Predicated region
  $region42: #{rnd_cnn_forward.1} parent=0 // pred_check
    _
  $region43: #{rnd_cnn_forward.1} parent=0 // pred_check_branch
    %43 = sbr.rel (0) target = $region45
  $region44: #{rnd_cnn_forward.1} parent=0 // pred_region
    _
  $region45: #{rnd_cnn_forward.1} parent=0 // pred_fallthru
    _
  // Predicated region
  $region46: #{rnd_cnn_forward.1} parent=0 // pred_check
    _
  $region47: #{rnd_cnn_forward.1} parent=0 // pred_check_branch
    %45 = sbr.rel (0) target = $region49
  $region48: #{rnd_cnn_forward.1} parent=0 // pred_region
    _
  $region49: #{rnd_cnn_forward.1} parent=0 // pred_fallthru
    _
  // Predicated region
  $region50: #{rnd_cnn_forward.1} parent=0 // pred_check
    _
  $region51: #{rnd_cnn_forward.1} parent=0 // pred_check_branch
    %47 = sbr.rel (0) target = $region53
  $region52: #{rnd_cnn_forward.1} parent=0 // pred_region
    _
  $region53: #{rnd_cnn_forward.1} parent=0 // pred_fallthru
    _
  // Predicated region
  $region54: #{rnd_cnn_forward.1} parent=0 // pred_check
    _
  $region55: #{rnd_cnn_forward.1} parent=0 // pred_check_branch
    %49 = sbr.rel (0) target = $region57
  $region56: #{rnd_cnn_forward.1} parent=0 // pred_region
    _
  $region57: #{rnd_cnn_forward.1} parent=0 // pred_fallthru
    _
  // Predicated region
  $region58: #{rnd_cnn_forward.1} parent=0 // pred_check
    _
  $region59: #{rnd_cnn_forward.1} parent=0 // pred_check_branch
    %51 = sbr.rel (0) target = $region61
  $region60: #{rnd_cnn_forward.1} parent=0 // pred_region
    _
  $region61: #{rnd_cnn_forward.1} parent=0 // pred_fallthru
    _
  // Predicated region
  $region62: #{rnd_cnn_forward.1} parent=0 // pred_check
    _
  $region63: #{rnd_cnn_forward.1} parent=0 // pred_check_branch
    %53 = sbr.rel (0) target = $region65
  $region64: #{rnd_cnn_forward.1} parent=0 // pred_region
    _
  $region65: #{rnd_cnn_forward.1} parent=0 // pred_fallthru
    _
  // Predicated region
  $region66: #{rnd_cnn_forward.1} parent=0 // pred_check
    _
  $region67: #{rnd_cnn_forward.1} parent=0 // pred_check_branch
    %55 = sbr.rel (0) target = $region69
  $region68: #{rnd_cnn_forward.1} parent=0 // pred_region
    _
  $region69: #{rnd_cnn_forward.1} parent=0 // pred_fallthru
    _
  %v56 = vld [vmem:[%s0] sm:$0xff]
  %v57 = vld [vmem:[%s0 + $0x8] sm:$0xff]
  %v58 = vld [vmem:[%s0 + $0x10] sm:$0xff]
  %v59 = vld [vmem:[%s0 + $0x18] sm:$0xff]
  %v60 = vld [vmem:[%s0 + $0x20] sm:$0xff]
  %v61 = vld [vmem:[%s0 + $0x28] sm:$0xff]
  %v62 = vld [vmem:[%s0 + $0x30] sm:$0xff]
  %v63 = vld [vmem:[%s0 + $0x38] sm:$0xff]
  %v64 = vld [vmem:[%s0 + $0x40] sm:$0xff]
  %v65 = vld [vmem:[%s0 + $0x48] sm:$0xff]
  %v66 = vld [vmem:[%s0 + $0x50] sm:$0xff]
  %v67 = vld [vmem:[%s0 + $0x58] sm:$0xff]
  %v68 = vld [vmem:[%s0 + $0x60] sm:$0xff]
  %v69 = vld [vmem:[%s0 + $0x68] sm:$0xff]
  %v70 = vld [vmem:[%s0 + $0x70] sm:$0xff]
  %v71 = vld [vmem:[%s0 + $0x78] sm:$0xff]
  %v72 = vld [vmem:[%s0 + $0x80] sm:$0xff]
  %v73 = vld [vmem:[%s0 + $0x88] sm:$0xff]
  %v74 = vld [vmem:[%s0 + $0x90] sm:$0xff]
  %v75 = vld [vmem:[%s0 + $0x98] sm:$0xff]
  %v76 = vld [vmem:[%s0 + $0xa0] sm:$0xff]
  %v77 = vld [vmem:[%s0 + $0xa8] sm:$0xff]
  %v78 = vld [vmem:[%s0 + $0xb0] sm:$0xff]
  %v79 = vld [vmem:[%s0 + $0xb8] sm:$0xff]
  %v80 = vld [vmem:[%s0 + $0xc0] sm:$0xff]
  %v81 = vld [vmem:[%s0 + $0xc8] sm:$0xff]
  %v82 = vld [vmem:[%s0 + $0xd0] sm:$0xff]
  %v83 = vld [vmem:[%s0 + $0xd8] sm:$0xff]
  %v84 = vld [vmem:[%s0 + $0xe0] sm:$0xff]
  %v85 = vld [vmem:[%s0 + $0xe8] sm:$0xff]
  %v86 = vld [vmem:[%s0 + $0xf0] sm:$0xff]
  %v87 = vld [vmem:[%s0 + $0xf8] sm:$0xff]
  %v88 = vld [vmem:[%s1] sm:$0xff]
  %v89 = vld [vmem:[%s1 + $0x8] sm:$0xff]
  %v90 = vld [vmem:[%s1 + $0x10] sm:$0xff]
  %v91 = vld [vmem:[%s1 + $0x18] sm:$0xff]
  %v92 = vld [vmem:[%s1 + $0x20] sm:$0xff]
  %v93 = vld [vmem:[%s1 + $0x28] sm:$0xff]
  %v94 = vld [vmem:[%s1 + $0x30] sm:$0xff]
  %v95 = vld [vmem:[%s1 + $0x38] sm:$0xff]
  %v96 = vld [vmem:[%s1 + $0x40] sm:$0xff]
  %v97 = vld [vmem:[%s1 + $0x48] sm:$0xff]
  %v98 = vld [vmem:[%s1 + $0x50] sm:$0xff]
  %v99 = vld [vmem:[%s1 + $0x58] sm:$0xff]
  %v100 = vld [vmem:[%s1 + $0x60] sm:$0xff]
  %v101 = vld [vmem:[%s1 + $0x68] sm:$0xff]
  %v102 = vld [vmem:[%s1 + $0x70] sm:$0xff]
  %v103 = vld [vmem:[%s1 + $0x78] sm:$0xff]
  %v104 = vld [vmem:[%s2] sm:$0xff]
  %v105 = vld [vmem:[%s2 + $0x8] sm:$0xff]
  %v106 = vld [vmem:[%s2 + $0x10] sm:$0xff]
  %v107 = vld [vmem:[%s2 + $0x18] sm:$0xff]
  %v108 = vld [vmem:[%s2 + $0x20] sm:$0xff]
  %v109 = vld [vmem:[%s2 + $0x28] sm:$0xff]
  %v110 = vld [vmem:[%s2 + $0x30] sm:$0xff]
  %v111 = vld [vmem:[%s2 + $0x38] sm:$0xff]
  %v112 = vld [vmem:[%s2 + $0x40] sm:$0xff]
  %v113 = vld [vmem:[%s2 + $0x48] sm:$0xff]
  %v114 = vld [vmem:[%s2 + $0x50] sm:$0xff]
  %v115 = vld [vmem:[%s2 + $0x58] sm:$0xff]
  %v116 = vld [vmem:[%s2 + $0x60] sm:$0xff]
  %v117 = vld [vmem:[%s2 + $0x68] sm:$0xff]
  %v118 = vld [vmem:[%s2 + $0x70] sm:$0xff]
  %v119 = vld [vmem:[%s2 + $0x78] sm:$0xff]
  %v120 = vmul.f32 %v56, %v88
  %v121 = vmul.f32 %v57, %v89
  %v122 = vmul.f32 %v58, %v90
  %v123 = vmul.f32 %v59, %v91
  %v124 = vmul.f32 %v60, %v92
  %v125 = vmul.f32 %v61, %v93
  %v126 = vmul.f32 %v62, %v94
  %v127 = vmul.f32 %v63, %v95
  %v128 = vmul.f32 %v64, %v96
  %v129 = vmul.f32 %v65, %v97
  %v130 = vmul.f32 %v66, %v98
  %v131 = vmul.f32 %v67, %v99
  %v132 = vmul.f32 %v68, %v100
  %v133 = vmul.f32 %v69, %v101
  %v134 = vmul.f32 %v70, %v102
  %v135 = vmul.f32 %v71, %v103
  %v136 = vmul.f32 %v72, %v88
  %v137 = vmul.f32 %v73, %v89
  %v138 = vmul.f32 %v74, %v90
  %v139 = vmul.f32 %v75, %v91
  %v140 = vmul.f32 %v76, %v92
  %v141 = vmul.f32 %v77, %v93
  %v142 = vmul.f32 %v78, %v94
  %v143 = vmul.f32 %v79, %v95
  %v144 = vmul.f32 %v80, %v96
  %v145 = vmul.f32 %v81, %v97
  %v146 = vmul.f32 %v82, %v98
  %v147 = vmul.f32 %v83, %v99
  %v148 = vmul.f32 %v84, %v100
  %v149 = vmul.f32 %v85, %v101
  %v150 = vmul.f32 %v86, %v102
  %v151 = vmul.f32 %v87, %v103
  %v152 = vadd.f32 %v120, %v104
  %v153 = vadd.f32 %v121, %v105
  %v154 = vadd.f32 %v122, %v106
  %v155 = vadd.f32 %v123, %v107
  %v156 = vadd.f32 %v124, %v108
  %v157 = vadd.f32 %v125, %v109
  %v158 = vadd.f32 %v126, %v110
  %v159 = vadd.f32 %v127, %v111
  %v160 = vadd.f32 %v128, %v112
  %v161 = vadd.f32 %v129, %v113
  %v162 = vadd.f32 %v130, %v114
  %v163 = vadd.f32 %v131, %v115
  %v164 = vadd.f32 %v132, %v116
  %v165 = vadd.f32 %v133, %v117
  %v166 = vadd.f32 %v134, %v118
  %v167 = vadd.f32 %v135, %v119
  %v168 = vadd.f32 %v136, %v104
  %v169 = vadd.f32 %v137, %v105
  %v170 = vadd.f32 %v138, %v106
  %v171 = vadd.f32 %v139, %v107
  %v172 = vadd.f32 %v140, %v108
  %v173 = vadd.f32 %v141, %v109
  %v174 = vadd.f32 %v142, %v110
  %v175 = vadd.f32 %v143, %v111
  %v176 = vadd.f32 %v144, %v112
  %v177 = vadd.f32 %v145, %v113
  %v178 = vadd.f32 %v146, %v114
  %v179 = vadd.f32 %v147, %v115
  %v180 = vadd.f32 %v148, %v116
  %v181 = vadd.f32 %v149, %v117
  %v182 = vadd.f32 %v150, %v118
  %v183 = vadd.f32 %v151, %v119
  %v184 = vmax.f32 %v152, -5.0
  %v185 = vmax.f32 %v153, -5.0
  %v186 = vmax.f32 %v154, -5.0
  %v187 = vmax.f32 %v155, -5.0
  %v188 = vmax.f32 %v156, -5.0
  %v189 = vmax.f32 %v157, -5.0
  %v190 = vmax.f32 %v158, -5.0
  %v191 = vmax.f32 %v159, -5.0
  %v192 = vmax.f32 %v160, -5.0
  %v193 = vmax.f32 %v161, -5.0
  %v194 = vmax.f32 %v162, -5.0
  %v195 = vmax.f32 %v163, -5.0
  %v196 = vmax.f32 %v164, -5.0
  %v197 = vmax.f32 %v165, -5.0
  %v198 = vmax.f32 %v166, -5.0
  %v199 = vmax.f32 %v167, -5.0
  %v200 = vmax.f32 %v168, -5.0
  %v201 = vmax.f32 %v169, -5.0
  %v202 = vmax.f32 %v170, -5.0
  %v203 = vmax.f32 %v171, -5.0
  %v204 = vmax.f32 %v172, -5.0
  %v205 = vmax.f32 %v173, -5.0
  %v206 = vmax.f32 %v174, -5.0
  %v207 = vmax.f32 %v175, -5.0
  %v208 = vmax.f32 %v176, -5.0
  %v209 = vmax.f32 %v177, -5.0
  %v210 = vmax.f32 %v178, -5.0
  %v211 = vmax.f32 %v179, -5.0
  %v212 = vmax.f32 %v180, -5.0
  %v213 = vmax.f32 %v181, -5.0
  %v214 = vmax.f32 %v182, -5.0
  %v215 = vmax.f32 %v183, -5.0
  %v216 = vmin.f32 %v184, 5.0
  %v217 = vmin.f32 %v185, 5.0
  %v218 = vmin.f32 %v186, 5.0
  %v219 = vmin.f32 %v187, 5.0
  %v220 = vmin.f32 %v188, 5.0
  %v221 = vmin.f32 %v189, 5.0
  %v222 = vmin.f32 %v190, 5.0
  %v223 = vmin.f32 %v191, 5.0
  %v224 = vmin.f32 %v192, 5.0
  %v225 = vmin.f32 %v193, 5.0
  %v226 = vmin.f32 %v194, 5.0
  %v227 = vmin.f32 %v195, 5.0
  %v228 = vmin.f32 %v196, 5.0
  %v229 = vmin.f32 %v197, 5.0
  %v230 = vmin.f32 %v198, 5.0
  %v231 = vmin.f32 %v199, 5.0
  %v232 = vmin.f32 %v200, 5.0
  %v233 = vmin.f32 %v201, 5.0
  %v234 = vmin.f32 %v202, 5.0
  %v235 = vmin.f32 %v203, 5.0
  %v236 = vmin.f32 %v204, 5.0
  %v237 = vmin.f32 %v205, 5.0
  %v238 = vmin.f32 %v206, 5.0
  %v239 = vmin.f32 %v207, 5.0
  %v240 = vmin.f32 %v208, 5.0
  %v241 = vmin.f32 %v209, 5.0
  %v242 = vmin.f32 %v210, 5.0
  %v243 = vmin.f32 %v211, 5.0
  %v244 = vmin.f32 %v212, 5.0
  %v245 = vmin.f32 %v213, 5.0
  %v246 = vmin.f32 %v214, 5.0
  %v247 = vmin.f32 %v215, 5.0
  %v248 = vld [vmem:[%s3] sm:$0xff]
  %v249 = vld [vmem:[%s3 + $0x8] sm:$0xff]
  %v250 = vld [vmem:[%s3 + $0x10] sm:$0xff]
  %v251 = vld [vmem:[%s3 + $0x18] sm:$0xff]
  %v252 = vld [vmem:[%s3 + $0x20] sm:$0xff]
  %v253 = vld [vmem:[%s3 + $0x28] sm:$0xff]
  %v254 = vld [vmem:[%s3 + $0x30] sm:$0xff]
  %v255 = vld [vmem:[%s3 + $0x38] sm:$0xff]
  %v256 = vld [vmem:[%s3 + $0x40] sm:$0xff]
  %v257 = vld [vmem:[%s3 + $0x48] sm:$0xff]
  %v258 = vld [vmem:[%s3 + $0x50] sm:$0xff]
  %v259 = vld [vmem:[%s3 + $0x58] sm:$0xff]
  %v260 = vld [vmem:[%s3 + $0x60] sm:$0xff]
  %v261 = vld [vmem:[%s3 + $0x68] sm:$0xff]
  %v262 = vld [vmem:[%s3 + $0x70] sm:$0xff]
  %v263 = vld [vmem:[%s3 + $0x78] sm:$0xff]
  %v264 = vld [vmem:[%s3 + $0x80] sm:$0xff]
  %v265 = vld [vmem:[%s3 + $0x88] sm:$0xff]
  %v266 = vld [vmem:[%s3 + $0x90] sm:$0xff]
  %v267 = vld [vmem:[%s3 + $0x98] sm:$0xff]
  %v268 = vld [vmem:[%s3 + $0xa0] sm:$0xff]
  %v269 = vld [vmem:[%s3 + $0xa8] sm:$0xff]
  %v270 = vld [vmem:[%s3 + $0xb0] sm:$0xff]
  %v271 = vld [vmem:[%s3 + $0xb8] sm:$0xff]
  %v272 = vld [vmem:[%s3 + $0xc0] sm:$0xff]
  %v273 = vld [vmem:[%s3 + $0xc8] sm:$0xff]
  %v274 = vld [vmem:[%s3 + $0xd0] sm:$0xff]
  %v275 = vld [vmem:[%s3 + $0xd8] sm:$0xff]
  %v276 = vld [vmem:[%s3 + $0xe0] sm:$0xff]
  %v277 = vld [vmem:[%s3 + $0xe8] sm:$0xff]
  %v278 = vld [vmem:[%s3 + $0xf0] sm:$0xff]
  %v279 = vld [vmem:[%s3 + $0xf8] sm:$0xff]
  %v280 = vld [vmem:[%s4] sm:$0x1]
  %v282 = vlaneseq
  %v283 = vshrl.u32 %v282, 7
  %v284 = vsub.s32 0, %v283
  %v285 = vrot.slane %v280, %v284
  %287 = vmatprep.subr.mxu0 0.0
  %288 = vmatpush1.msra.mxu0 %v263
  %289 = vmatprep.subr.mxu0 0.0
  %290 = vmatpush1.msra.mxu0 %v262
  %291 = vmatprep.subr.mxu0 0.0
  %292 = vmatpush1.msra.mxu0 %v261
  %293 = vmatprep.subr.mxu0 0.0
  %294 = vmatpush1.msra.mxu0 %v260
  %295 = vmatprep.subr.mxu0 0.0
  %296 = vmatpush1.msra.mxu0 %v259
  %297 = vmatprep.subr.mxu0 0.0
  %298 = vmatpush1.msra.mxu0 %v258
  %299 = vmatprep.subr.mxu0 0.0
  %300 = vmatpush1.msra.mxu0 %v257
  %301 = vmatprep.subr.mxu0 0.0
  %302 = vmatpush1.msra.mxu0 %v256
  %303 = vmatprep.subr.mxu0 0.0
  %304 = vmatpush1.msra.mxu0 %v255
  %305 = vmatprep.subr.mxu0 0.0
  %306 = vmatpush1.msra.mxu0 %v254
  %307 = vmatprep.subr.mxu0 0.0
  %308 = vmatpush1.msra.mxu0 %v253
  %309 = vmatprep.subr.mxu0 0.0
  %310 = vmatpush1.msra.mxu0 %v252
  %311 = vmatprep.subr.mxu0 0.0
  %312 = vmatpush1.msra.mxu0 %v251
  %313 = vmatprep.subr.mxu0 0.0
  %314 = vmatpush1.msra.mxu0 %v250
  %315 = vmatprep.subr.mxu0 0.0
  %316 = vmatpush1.msra.mxu0 %v249
  %317 = vmatprep.subr.mxu0 0.0
  %318 = vmatpush1.msra.mxu0 %v248
  %319 = vmatprep.subr.mxu0 0.0
  %320 = vmatpush2.msra.mxu0 %v279
  %321 = vmatprep.subr.mxu0 0.0
  %322 = vmatpush2.msra.mxu0 %v278
  %323 = vmatprep.subr.mxu0 0.0
  %324 = vmatpush2.msra.mxu0 %v277
  %325 = vmatprep.subr.mxu0 0.0
  %326 = vmatpush2.msra.mxu0 %v276
  %327 = vmatprep.subr.mxu0 0.0
  %328 = vmatpush2.msra.mxu0 %v275
  %329 = vmatprep.subr.mxu0 0.0
  %330 = vmatpush2.msra.mxu0 %v274
  %331 = vmatprep.subr.mxu0 0.0
  %332 = vmatpush2.msra.mxu0 %v273
  %333 = vmatprep.subr.mxu0 0.0
  %334 = vmatpush2.msra.mxu0 %v272
  %335 = vmatprep.subr.mxu0 0.0
  %336 = vmatpush2.msra.mxu0 %v271
  %337 = vmatprep.subr.mxu0 0.0
  %338 = vmatpush2.msra.mxu0 %v270
  %339 = vmatprep.subr.mxu0 0.0
  %340 = vmatpush2.msra.mxu0 %v269
  %341 = vmatprep.subr.mxu0 0.0
  %342 = vmatpush2.msra.mxu0 %v268
  %343 = vmatprep.subr.mxu0 0.0
  %344 = vmatpush2.msra.mxu0 %v267
  %345 = vmatprep.subr.mxu0 0.0
  %346 = vmatpush2.msra.mxu0 %v266
  %347 = vmatprep.subr.mxu0 0.0
  %348 = vmatpush2.msra.mxu0 %v265
  %349 = vmatprep.subr.mxu0 0.0
  %350 = vmatpush2.msra.mxu0 %v264
  %351 = vmatprep.mubr.f32.mxu0 %v217
  %352 = vmatmul.mubr.f32.gmra.mxu0 %v216
  %v353 = vpop.f32.mrf.mxu0
  %v354 = vadd.f32 %v285, %v353
  %v355 = vpop.f32.mrf.mxu0
  %356 = vmatprep.mubr.f32.mxu0 %v219
  %357 = vmatmul.mubr.f32.gmra.mxu0 %v218
  %v358 = vpop.f32.mrf.mxu0
  %v359 = vadd.f32 %v285, %v358
  %v360 = vpop.f32.mrf.mxu0
  %361 = vmatprep.mubr.f32.mxu0 %v221
  %362 = vmatmul.mubr.f32.gmra.mxu0 %v220
  %v363 = vpop.f32.mrf.mxu0
  %v364 = vadd.f32 %v285, %v363
  %v365 = vpop.f32.mrf.mxu0
  %366 = vmatprep.mubr.f32.mxu0 %v223
  %367 = vmatmul.mubr.f32.gmra.mxu0 %v222
  %v368 = vpop.f32.mrf.mxu0
  %v369 = vadd.f32 %v285, %v368
  %v370 = vpop.f32.mrf.mxu0
  %371 = vmatprep.mubr.f32.mxu0 %v225
  %372 = vmatmul.mubr.f32.gmra.mxu0 %v224
  %v373 = vpop.f32.mrf.mxu0
  %v374 = vadd.f32 %v285, %v373
  %v375 = vpop.f32.mrf.mxu0
  %376 = vmatprep.mubr.f32.mxu0 %v227
  %377 = vmatmul.mubr.f32.gmra.mxu0 %v226
  %v378 = vpop.f32.mrf.mxu0
  %v379 = vadd.f32 %v285, %v378
  %v380 = vpop.f32.mrf.mxu0
  %381 = vmatprep.mubr.f32.mxu0 %v229
  %382 = vmatmul.mubr.f32.gmra.mxu0 %v228
  %v383 = vpop.f32.mrf.mxu0
  %v384 = vadd.f32 %v285, %v383
  %v385 = vpop.f32.mrf.mxu0
  %386 = vmatprep.mubr.f32.mxu0 %v231
  %387 = vmatmul.mubr.f32.gmra.mxu0 %v230
  %v388 = vpop.f32.mrf.mxu0
  %v389 = vadd.f32 %v285, %v388
  %v390 = vpop.f32.mrf.mxu0
  %391 = vmatprep.mubr.f32.mxu0 %v233
  %392 = vmatmul.mubr.f32.gmra.mxu0 %v232
  %v393 = vpop.f32.mrf.mxu0
  %v394 = vadd.f32 %v285, %v393
  %v395 = vpop.f32.mrf.mxu0
  %396 = vmatprep.mubr.f32.mxu0 %v235
  %397 = vmatmul.mubr.f32.gmra.mxu0 %v234
  %v398 = vpop.f32.mrf.mxu0
  %v399 = vadd.f32 %v285, %v398
  %v400 = vpop.f32.mrf.mxu0
  %401 = vmatprep.mubr.f32.mxu0 %v237
  %402 = vmatmul.mubr.f32.gmra.mxu0 %v236
  %v403 = vpop.f32.mrf.mxu0
  %v404 = vadd.f32 %v285, %v403
  %v405 = vpop.f32.mrf.mxu0
  %406 = vmatprep.mubr.f32.mxu0 %v239
  %407 = vmatmul.mubr.f32.gmra.mxu0 %v238
  %v408 = vpop.f32.mrf.mxu0
  %v409 = vadd.f32 %v285, %v408
  %v410 = vpop.f32.mrf.mxu0
  %411 = vmatprep.mubr.f32.mxu0 %v241
  %412 = vmatmul.mubr.f32.gmra.mxu0 %v240
  %v413 = vpop.f32.mrf.mxu0
  %v414 = vadd.f32 %v285, %v413
  %v415 = vpop.f32.mrf.mxu0
  %416 = vmatprep.mubr.f32.mxu0 %v243
  %417 = vmatmul.mubr.f32.gmra.mxu0 %v242
  %v418 = vpop.f32.mrf.mxu0
  %v419 = vadd.f32 %v285, %v418
  %v420 = vpop.f32.mrf.mxu0
  %421 = vmatprep.mubr.f32.mxu0 %v245
  %422 = vmatmul.mubr.f32.gmra.mxu0 %v244
  %v423 = vpop.f32.mrf.mxu0
  %v424 = vadd.f32 %v285, %v423
  %v425 = vpop.f32.mrf.mxu0
  %426 = vmatprep.mubr.f32.mxu0 %v247
  %427 = vmatmul.mubr.f32.gmra.mxu0 %v246
  %v428 = vpop.f32.mrf.mxu0
  %v429 = vadd.f32 %v285, %v428
  %v430 = vpop.f32.mrf.mxu0
  %431 = vdwg.mxu0
  %v432 = vmax.f32 %v354, 0.0
  %v433 = vmax.f32 %v359, 0.0
  %v434 = vmax.f32 %v364, 0.0
  %v435 = vmax.f32 %v369, 0.0
  %v436 = vmax.f32 %v374, 0.0
  %v437 = vmax.f32 %v379, 0.0
  %v438 = vmax.f32 %v384, 0.0
  %v439 = vmax.f32 %v389, 0.0
  %v440 = vmax.f32 %v394, 0.0
  %v441 = vmax.f32 %v399, 0.0
  %v442 = vmax.f32 %v404, 0.0
  %v443 = vmax.f32 %v409, 0.0
  %v444 = vmax.f32 %v414, 0.0
  %v445 = vmax.f32 %v419, 0.0
  %v446 = vmax.f32 %v424, 0.0
  %v447 = vmax.f32 %v429, 0.0
  %v448 = vld [vmem:[%s5] sm:$0xff]
  %v449 = vld [vmem:[%s5 + $0x8] sm:$0xff]
  %v450 = vld [vmem:[%s5 + $0x10] sm:$0xff]
  %451 = vmatprep.subr.mxu0 0.0
  %452 = vmatpush1.msra.mxu0 %v447
  %453 = vmatprep.subr.mxu0 0.0
  %454 = vmatpush1.msra.mxu0 %v446
  %455 = vmatprep.subr.mxu0 0.0
  %456 = vmatpush1.msra.mxu0 %v445
  %457 = vmatprep.subr.mxu0 0.0
  %458 = vmatpush1.msra.mxu0 %v444
  %459 = vmatprep.subr.mxu0 0.0
  %460 = vmatpush1.msra.mxu0 %v443
  %461 = vmatprep.subr.mxu0 0.0
  %462 = vmatpush1.msra.mxu0 %v442
  %463 = vmatprep.subr.mxu0 0.0
  %464 = vmatpush1.msra.mxu0 %v441
  %465 = vmatprep.subr.mxu0 0.0
  %466 = vmatpush1.msra.mxu0 %v440
  %467 = vmatprep.subr.mxu0 0.0
  %468 = vmatpush1.msra.mxu0 %v439
  %469 = vmatprep.subr.mxu0 0.0
  %470 = vmatpush1.msra.mxu0 %v438
  %471 = vmatprep.subr.mxu0 0.0
  %472 = vmatpush1.msra.mxu0 %v437
  %473 = vmatprep.subr.mxu0 0.0
  %474 = vmatpush1.msra.mxu0 %v436
  %475 = vmatprep.subr.mxu0 0.0
  %476 = vmatpush1.msra.mxu0 %v435
  %477 = vmatprep.subr.mxu0 0.0
  %478 = vmatpush1.msra.mxu0 %v434
  %479 = vmatprep.subr.mxu0 0.0
  %480 = vmatpush1.msra.mxu0 %v433
  %481 = vmatprep.subr.mxu0 0.0
  %482 = vmatpush1.msra.mxu0 %v432
  %483 = vmatprep.subr.mxu0 0.0
  %484 = vmatpush2.msra.mxu0 0.0
  %485 = vmatprep.subr.mxu0 0.0
  %486 = vmatpush2.msra.mxu0 0.0
  %487 = vmatprep.subr.mxu0 0.0
  %488 = vmatpush2.msra.mxu0 0.0
  %489 = vmatprep.subr.mxu0 0.0
  %490 = vmatpush2.msra.mxu0 0.0
  %491 = vmatprep.subr.mxu0 0.0
  %492 = vmatpush2.msra.mxu0 0.0
  %493 = vmatprep.subr.mxu0 0.0
  %494 = vmatpush2.msra.mxu0 0.0
  %495 = vmatprep.subr.mxu0 0.0
  %496 = vmatpush2.msra.mxu0 0.0
  %497 = vmatprep.subr.mxu0 0.0
  %498 = vmatpush2.msra.mxu0 0.0
  %499 = vmatprep.subr.mxu0 0.0
  %500 = vmatpush2.msra.mxu0 0.0
  %501 = vmatprep.subr.mxu0 0.0
  %502 = vmatpush2.msra.mxu0 0.0
  %503 = vmatprep.subr.mxu0 0.0
  %504 = vmatpush2.msra.mxu0 0.0
  %505 = vmatprep.subr.mxu0 0.0
  %506 = vmatpush2.msra.mxu0 0.0
  %507 = vmatprep.subr.mxu0 0.0
  %508 = vmatpush2.msra.mxu0 0.0
  %509 = vmatprep.subr.mxu0 0.0
  %510 = vmatpush2.msra.mxu0 0.0
  %511 = vmatprep.subr.mxu0 0.0
  %512 = vmatpush2.msra.mxu0 0.0
  %513 = vmatprep.subr.mxu0 0.0
  %514 = vmatpush2.msra.mxu0 0.0
  %515 = vmatprep.mubr.f32.mxu0 0.0
  %516 = vmatmul.mubr.f32.gmra.mxu0 %v448
  %v517 = vpop.f32.mrf.mxu0
  %v518 = vadd.f32 0.0, %v517
  %v519 = vpop.f32.mrf.mxu0
  %520 = vmatprep.mubr.f32.mxu0 0.0
  %521 = vmatmul.mubr.f32.gmra.mxu0 %v449
  %v522 = vpop.f32.mrf.mxu0
  %v523 = vadd.f32 0.0, %v522
  %v524 = vpop.f32.mrf.mxu0
  %525 = vmatprep.mubr.f32.mxu0 0.0
  %526 = vmatmul.mubr.f32.gmra.mxu0 %v450
  %v527 = vpop.f32.mrf.mxu0
  %v528 = vadd.f32 0.0, %v527
  %v529 = vpop.f32.mrf.mxu0
  %530 = vdwg.mxu0
  %s531 = scalar_lea.vmem %s5, 24
  %v532 = vld [vmem:[%s531] sm:$0xff]
  %v533 = vld [vmem:[%s531 + $0x8] sm:$0xff]
  %v534 = vld [vmem:[%s531 + $0x10] sm:$0xff]
  %535 = vmatprep.subr.mxu0 0.0
  %536 = vmatpush1.msra.mxu0 %v447
  %537 = vmatprep.subr.mxu0 0.0
  %538 = vmatpush1.msra.mxu0 %v446
  %539 = vmatprep.subr.mxu0 0.0
  %540 = vmatpush1.msra.mxu0 %v445
  %541 = vmatprep.subr.mxu0 0.0
  %542 = vmatpush1.msra.mxu0 %v444
  %543 = vmatprep.subr.mxu0 0.0
  %544 = vmatpush1.msra.mxu0 %v443
  %545 = vmatprep.subr.mxu0 0.0
  %546 = vmatpush1.msra.mxu0 %v442
  %547 = vmatprep.subr.mxu0 0.0
  %548 = vmatpush1.msra.mxu0 %v441
  %549 = vmatprep.subr.mxu0 0.0
  %550 = vmatpush1.msra.mxu0 %v440
  %551 = vmatprep.subr.mxu0 0.0
  %552 = vmatpush1.msra.mxu0 %v439
  %553 = vmatprep.subr.mxu0 0.0
  %554 = vmatpush1.msra.mxu0 %v438
  %555 = vmatprep.subr.mxu0 0.0
  %556 = vmatpush1.msra.mxu0 %v437
  %557 = vmatprep.subr.mxu0 0.0
  %558 = vmatpush1.msra.mxu0 %v436
  %559 = vmatprep.subr.mxu0 0.0
  %560 = vmatpush1.msra.mxu0 %v435
  %561 = vmatprep.subr.mxu0 0.0
  %562 = vmatpush1.msra.mxu0 %v434
  %563 = vmatprep.subr.mxu0 0.0
  %564 = vmatpush1.msra.mxu0 %v433
  %565 = vmatprep.subr.mxu0 0.0
  %566 = vmatpush1.msra.mxu0 %v432
  %567 = vmatprep.subr.mxu0 0.0
  %568 = vmatpush2.msra.mxu0 0.0
  %569 = vmatprep.subr.mxu0 0.0
  %570 = vmatpush2.msra.mxu0 0.0
  %571 = vmatprep.subr.mxu0 0.0
  %572 = vmatpush2.msra.mxu0 0.0
  %573 = vmatprep.subr.mxu0 0.0
  %574 = vmatpush2.msra.mxu0 0.0
  %575 = vmatprep.subr.mxu0 0.0
  %576 = vmatpush2.msra.mxu0 0.0
  %577 = vmatprep.subr.mxu0 0.0
  %578 = vmatpush2.msra.mxu0 0.0
  %579 = vmatprep.subr.mxu0 0.0
  %580 = vmatpush2.msra.mxu0 0.0
  %581 = vmatprep.subr.mxu0 0.0
  %582 = vmatpush2.msra.mxu0 0.0
  %583 = vmatprep.subr.mxu0 0.0
  %584 = vmatpush2.msra.mxu0 0.0
  %585 = vmatprep.subr.mxu0 0.0
  %586 = vmatpush2.msra.mxu0 0.0
  %587 = vmatprep.subr.mxu0 0.0
  %588 = vmatpush2.msra.mxu0 0.0
  %589 = vmatprep.subr.mxu0 0.0
  %590 = vmatpush2.msra.mxu0 0.0
  %591 = vmatprep.subr.mxu0 0.0
  %592 = vmatpush2.msra.mxu0 0.0
  %593 = vmatprep.subr.mxu0 0.0
  %594 = vmatpush2.msra.mxu0 0.0
  %595 = vmatprep.subr.mxu0 0.0
  %596 = vmatpush2.msra.mxu0 0.0
  %597 = vmatprep.subr.mxu0 0.0
  %598 = vmatpush2.msra.mxu0 0.0
  %599 = vmatprep.mubr.f32.mxu0 0.0
  %600 = vmatmul.mubr.f32.gmra.mxu0 %v532
  %v601 = vpop.f32.mrf.mxu0
  %v602 = vadd.f32 0.0, %v601
  %v603 = vpop.f32.mrf.mxu0
  %604 = vmatprep.mubr.f32.mxu0 0.0
  %605 = vmatmul.mubr.f32.gmra.mxu0 %v533
  %v606 = vpop.f32.mrf.mxu0
  %v607 = vadd.f32 0.0, %v606
  %v608 = vpop.f32.mrf.mxu0
  %609 = vmatprep.mubr.f32.mxu0 0.0
  %610 = vmatmul.mubr.f32.gmra.mxu0 %v534
  %v611 = vpop.f32.mrf.mxu0
  %v612 = vadd.f32 0.0, %v611
  %v613 = vpop.f32.mrf.mxu0
  %614 = vdwg.mxu0
  %s615 = scalar_lea.vmem %s5, 48
  %v616 = vld [vmem:[%s615] sm:$0xff]
  %v617 = vld [vmem:[%s615 + $0x8] sm:$0xff]
  %v618 = vld [vmem:[%s615 + $0x10] sm:$0xff]
  %619 = vmatprep.subr.mxu0 0.0
  %620 = vmatpush1.msra.mxu0 %v447
  %621 = vmatprep.subr.mxu0 0.0
  %622 = vmatpush1.msra.mxu0 %v446
  %623 = vmatprep.subr.mxu0 0.0
  %624 = vmatpush1.msra.mxu0 %v445
  %625 = vmatprep.subr.mxu0 0.0
  %626 = vmatpush1.msra.mxu0 %v444
  %627 = vmatprep.subr.mxu0 0.0
  %628 = vmatpush1.msra.mxu0 %v443
  %629 = vmatprep.subr.mxu0 0.0
  %630 = vmatpush1.msra.mxu0 %v442
  %631 = vmatprep.subr.mxu0 0.0
  %632 = vmatpush1.msra.mxu0 %v441
  %633 = vmatprep.subr.mxu0 0.0
  %634 = vmatpush1.msra.mxu0 %v440
  %635 = vmatprep.subr.mxu0 0.0
  %636 = vmatpush1.msra.mxu0 %v439
  %637 = vmatprep.subr.mxu0 0.0
  %638 = vmatpush1.msra.mxu0 %v438
  %639 = vmatprep.subr.mxu0 0.0
  %640 = vmatpush1.msra.mxu0 %v437
  %641 = vmatprep.subr.mxu0 0.0
  %642 = vmatpush1.msra.mxu0 %v436
  %643 = vmatprep.subr.mxu0 0.0
  %644 = vmatpush1.msra.mxu0 %v435
  %645 = vmatprep.subr.mxu0 0.0
  %646 = vmatpush1.msra.mxu0 %v434
  %647 = vmatprep.subr.mxu0 0.0
  %648 = vmatpush1.msra.mxu0 %v433
  %649 = vmatprep.subr.mxu0 0.0
  %650 = vmatpush1.msra.mxu0 %v432
  %651 = vmatprep.subr.mxu0 0.0
  %652 = vmatpush2.msra.mxu0 0.0
  %653 = vmatprep.subr.mxu0 0.0
  %654 = vmatpush2.msra.mxu0 0.0
  %655 = vmatprep.subr.mxu0 0.0
  %656 = vmatpush2.msra.mxu0 0.0
  %657 = vmatprep.subr.mxu0 0.0
  %658 = vmatpush2.msra.mxu0 0.0
  %659 = vmatprep.subr.mxu0 0.0
  %660 = vmatpush2.msra.mxu0 0.0
  %661 = vmatprep.subr.mxu0 0.0
  %662 = vmatpush2.msra.mxu0 0.0
  %663 = vmatprep.subr.mxu0 0.0
  %664 = vmatpush2.msra.mxu0 0.0
  %665 = vmatprep.subr.mxu0 0.0
  %666 = vmatpush2.msra.mxu0 0.0
  %667 = vmatprep.subr.mxu0 0.0
  %668 = vmatpush2.msra.mxu0 0.0
  %669 = vmatprep.subr.mxu0 0.0
  %670 = vmatpush2.msra.mxu0 0.0
  %671 = vmatprep.subr.mxu0 0.0
  %672 = vmatpush2.msra.mxu0 0.0
  %673 = vmatprep.subr.mxu0 0.0
  %674 = vmatpush2.msra.mxu0 0.0
  %675 = vmatprep.subr.mxu0 0.0
  %676 = vmatpush2.msra.mxu0 0.0
  %677 = vmatprep.subr.mxu0 0.0
  %678 = vmatpush2.msra.mxu0 0.0
  %679 = vmatprep.subr.mxu0 0.0
  %680 = vmatpush2.msra.mxu0 0.0
  %681 = vmatprep.subr.mxu0 0.0
  %682 = vmatpush2.msra.mxu0 0.0
  %683 = vmatprep.mubr.f32.mxu0 0.0
  %684 = vmatmul.mubr.f32.gmra.mxu0 %v616
  %v685 = vpop.f32.mrf.mxu0
  %v686 = vadd.f32 0.0, %v685
  %v687 = vpop.f32.mrf.mxu0
  %688 = vmatprep.mubr.f32.mxu0 0.0
  %689 = vmatmul.mubr.f32.gmra.mxu0 %v617
  %v690 = vpop.f32.mrf.mxu0
  %v691 = vadd.f32 0.0, %v690
  %v692 = vpop.f32.mrf.mxu0
  %693 = vmatprep.mubr.f32.mxu0 0.0
  %694 = vmatmul.mubr.f32.gmra.mxu0 %v618
  %v695 = vpop.f32.mrf.mxu0
  %v696 = vadd.f32 0.0, %v695
  %v697 = vpop.f32.mrf.mxu0
  %698 = vdwg.mxu0
  %s699 = scalar_lea.vmem %s5, 72
  %v700 = vld [vmem:[%s699] sm:$0xff]
  %v701 = vld [vmem:[%s699 + $0x8] sm:$0xff]
  %v702 = vld [vmem:[%s699 + $0x10] sm:$0xff]
  %703 = vmatprep.subr.mxu0 0.0
  %704 = vmatpush1.msra.mxu0 %v447
  %705 = vmatprep.subr.mxu0 0.0
  %706 = vmatpush1.msra.mxu0 %v446
  %707 = vmatprep.subr.mxu0 0.0
  %708 = vmatpush1.msra.mxu0 %v445
  %709 = vmatprep.subr.mxu0 0.0
  %710 = vmatpush1.msra.mxu0 %v444
  %711 = vmatprep.subr.mxu0 0.0
  %712 = vmatpush1.msra.mxu0 %v443
  %713 = vmatprep.subr.mxu0 0.0
  %714 = vmatpush1.msra.mxu0 %v442
  %715 = vmatprep.subr.mxu0 0.0
  %716 = vmatpush1.msra.mxu0 %v441
  %717 = vmatprep.subr.mxu0 0.0
  %718 = vmatpush1.msra.mxu0 %v440
  %719 = vmatprep.subr.mxu0 0.0
  %720 = vmatpush1.msra.mxu0 %v439
  %721 = vmatprep.subr.mxu0 0.0
  %722 = vmatpush1.msra.mxu0 %v438
  %723 = vmatprep.subr.mxu0 0.0
  %724 = vmatpush1.msra.mxu0 %v437
  %725 = vmatprep.subr.mxu0 0.0
  %726 = vmatpush1.msra.mxu0 %v436
  %727 = vmatprep.subr.mxu0 0.0
  %728 = vmatpush1.msra.mxu0 %v435
  %729 = vmatprep.subr.mxu0 0.0
  %730 = vmatpush1.msra.mxu0 %v434
  %731 = vmatprep.subr.mxu0 0.0
  %732 = vmatpush1.msra.mxu0 %v433
  %733 = vmatprep.subr.mxu0 0.0
  %734 = vmatpush1.msra.mxu0 %v432
  %735 = vmatprep.subr.mxu0 0.0
  %736 = vmatpush2.msra.mxu0 0.0
  %737 = vmatprep.subr.mxu0 0.0
  %738 = vmatpush2.msra.mxu0 0.0
  %739 = vmatprep.subr.mxu0 0.0
  %740 = vmatpush2.msra.mxu0 0.0
  %741 = vmatprep.subr.mxu0 0.0
  %742 = vmatpush2.msra.mxu0 0.0
  %743 = vmatprep.subr.mxu0 0.0
  %744 = vmatpush2.msra.mxu0 0.0
  %745 = vmatprep.subr.mxu0 0.0
  %746 = vmatpush2.msra.mxu0 0.0
  %747 = vmatprep.subr.mxu0 0.0
  %748 = vmatpush2.msra.mxu0 0.0
  %749 = vmatprep.subr.mxu0 0.0
  %750 = vmatpush2.msra.mxu0 0.0
  %751 = vmatprep.subr.mxu0 0.0
  %752 = vmatpush2.msra.mxu0 0.0
  %753 = vmatprep.subr.mxu0 0.0
  %754 = vmatpush2.msra.mxu0 0.0
  %755 = vmatprep.subr.mxu0 0.0
  %756 = vmatpush2.msra.mxu0 0.0
  %757 = vmatprep.subr.mxu0 0.0
  %758 = vmatpush2.msra.mxu0 0.0
  %759 = vmatprep.subr.mxu0 0.0
  %760 = vmatpush2.msra.mxu0 0.0
  %761 = vmatprep.subr.mxu0 0.0
  %762 = vmatpush2.msra.mxu0 0.0
  %763 = vmatprep.subr.mxu0 0.0
  %764 = vmatpush2.msra.mxu0 0.0
  %765 = vmatprep.subr.mxu0 0.0
  %766 = vmatpush2.msra.mxu0 0.0
  %767 = vmatprep.mubr.f32.mxu0 0.0
  %768 = vmatmul.mubr.f32.gmra.mxu0 %v700
  %v769 = vpop.f32.mrf.mxu0
  %v770 = vadd.f32 0.0, %v769
  %v771 = vpop.f32.mrf.mxu0
  %772 = vmatprep.mubr.f32.mxu0 0.0
  %773 = vmatmul.mubr.f32.gmra.mxu0 %v701
  %v774 = vpop.f32.mrf.mxu0
  %v775 = vadd.f32 0.0, %v774
  %v776 = vpop.f32.mrf.mxu0
  %777 = vmatprep.mubr.f32.mxu0 0.0
  %778 = vmatmul.mubr.f32.gmra.mxu0 %v702
  %v779 = vpop.f32.mrf.mxu0
  %v780 = vadd.f32 0.0, %v779
  %v781 = vpop.f32.mrf.mxu0
  %782 = vdwg.mxu0
  %s783 = scalar_lea.vmem %s5, 96
  %v784 = vld [vmem:[%s783] sm:$0xff]
  %v785 = vld [vmem:[%s783 + $0x8] sm:$0xff]
  %v786 = vld [vmem:[%s783 + $0x10] sm:$0xff]
  %787 = vmatprep.subr.mxu0 0.0
  %788 = vmatpush1.msra.mxu0 %v447
  %789 = vmatprep.subr.mxu0 0.0
  %790 = vmatpush1.msra.mxu0 %v446
  %791 = vmatprep.subr.mxu0 0.0
  %792 = vmatpush1.msra.mxu0 %v445
  %793 = vmatprep.subr.mxu0 0.0
  %794 = vmatpush1.msra.mxu0 %v444
  %795 = vmatprep.subr.mxu0 0.0
  %796 = vmatpush1.msra.mxu0 %v443
  %797 = vmatprep.subr.mxu0 0.0
  %798 = vmatpush1.msra.mxu0 %v442
  %799 = vmatprep.subr.mxu0 0.0
  %800 = vmatpush1.msra.mxu0 %v441
  %801 = vmatprep.subr.mxu0 0.0
  %802 = vmatpush1.msra.mxu0 %v440
  %803 = vmatprep.subr.mxu0 0.0
  %804 = vmatpush1.msra.mxu0 %v439
  %805 = vmatprep.subr.mxu0 0.0
  %806 = vmatpush1.msra.mxu0 %v438
  %807 = vmatprep.subr.mxu0 0.0
  %808 = vmatpush1.msra.mxu0 %v437
  %809 = vmatprep.subr.mxu0 0.0
  %810 = vmatpush1.msra.mxu0 %v436
  %811 = vmatprep.subr.mxu0 0.0
  %812 = vmatpush1.msra.mxu0 %v435
  %813 = vmatprep.subr.mxu0 0.0
  %814 = vmatpush1.msra.mxu0 %v434
  %815 = vmatprep.subr.mxu0 0.0
  %816 = vmatpush1.msra.mxu0 %v433
  %817 = vmatprep.subr.mxu0 0.0
  %818 = vmatpush1.msra.mxu0 %v432
  %819 = vmatprep.subr.mxu0 0.0
  %820 = vmatpush2.msra.mxu0 0.0
  %821 = vmatprep.subr.mxu0 0.0
  %822 = vmatpush2.msra.mxu0 0.0
  %823 = vmatprep.subr.mxu0 0.0
  %824 = vmatpush2.msra.mxu0 0.0
  %825 = vmatprep.subr.mxu0 0.0
  %826 = vmatpush2.msra.mxu0 0.0
  %827 = vmatprep.subr.mxu0 0.0
  %828 = vmatpush2.msra.mxu0 0.0
  %829 = vmatprep.subr.mxu0 0.0
  %830 = vmatpush2.msra.mxu0 0.0
  %831 = vmatprep.subr.mxu0 0.0
  %832 = vmatpush2.msra.mxu0 0.0
  %833 = vmatprep.subr.mxu0 0.0
  %834 = vmatpush2.msra.mxu0 0.0
  %835 = vmatprep.subr.mxu0 0.0
  %836 = vmatpush2.msra.mxu0 0.0
  %837 = vmatprep.subr.mxu0 0.0
  %838 = vmatpush2.msra.mxu0 0.0
  %839 = vmatprep.subr.mxu0 0.0
  %840 = vmatpush2.msra.mxu0 0.0
  %841 = vmatprep.subr.mxu0 0.0
  %842 = vmatpush2.msra.mxu0 0.0
  %843 = vmatprep.subr.mxu0 0.0
  %844 = vmatpush2.msra.mxu0 0.0
  %845 = vmatprep.subr.mxu0 0.0
  %846 = vmatpush2.msra.mxu0 0.0
  %847 = vmatprep.subr.mxu0 0.0
  %848 = vmatpush2.msra.mxu0 0.0
  %849 = vmatprep.subr.mxu0 0.0
  %850 = vmatpush2.msra.mxu0 0.0
  %851 = vmatprep.mubr.f32.mxu0 0.0
  %852 = vmatmul.mubr.f32.gmra.mxu0 %v784
  %v853 = vpop.f32.mrf.mxu0
  %v854 = vadd.f32 0.0, %v853
  %v855 = vpop.f32.mrf.mxu0
  %856 = vmatprep.mubr.f32.mxu0 0.0
  %857 = vmatmul.mubr.f32.gmra.mxu0 %v785
  %v858 = vpop.f32.mrf.mxu0
  %v859 = vadd.f32 0.0, %v858
  %v860 = vpop.f32.mrf.mxu0
  %861 = vmatprep.mubr.f32.mxu0 0.0
  %862 = vmatmul.mubr.f32.gmra.mxu0 %v786
  %v863 = vpop.f32.mrf.mxu0
  %v864 = vadd.f32 0.0, %v863
  %v865 = vpop.f32.mrf.mxu0
  %866 = vdwg.mxu0
  %s867 = scalar_lea.vmem %s5, 120
  %v868 = vld [vmem:[%s867] sm:$0xff]
  %v869 = vld [vmem:[%s867 + $0x8] sm:$0xff]
  %v870 = vld [vmem:[%s867 + $0x10] sm:$0xff]
  %871 = vmatprep.subr.mxu0 0.0
  %872 = vmatpush1.msra.mxu0 %v447
  %873 = vmatprep.subr.mxu0 0.0
  %874 = vmatpush1.msra.mxu0 %v446
  %875 = vmatprep.subr.mxu0 0.0
  %876 = vmatpush1.msra.mxu0 %v445
  %877 = vmatprep.subr.mxu0 0.0
  %878 = vmatpush1.msra.mxu0 %v444
  %879 = vmatprep.subr.mxu0 0.0
  %880 = vmatpush1.msra.mxu0 %v443
  %881 = vmatprep.subr.mxu0 0.0
  %882 = vmatpush1.msra.mxu0 %v442
  %883 = vmatprep.subr.mxu0 0.0
  %884 = vmatpush1.msra.mxu0 %v441
  %885 = vmatprep.subr.mxu0 0.0
  %886 = vmatpush1.msra.mxu0 %v440
  %887 = vmatprep.subr.mxu0 0.0
  %888 = vmatpush1.msra.mxu0 %v439
  %889 = vmatprep.subr.mxu0 0.0
  %890 = vmatpush1.msra.mxu0 %v438
  %891 = vmatprep.subr.mxu0 0.0
  %892 = vmatpush1.msra.mxu0 %v437
  %893 = vmatprep.subr.mxu0 0.0
  %894 = vmatpush1.msra.mxu0 %v436
  %895 = vmatprep.subr.mxu0 0.0
  %896 = vmatpush1.msra.mxu0 %v435
  %897 = vmatprep.subr.mxu0 0.0
  %898 = vmatpush1.msra.mxu0 %v434
  %899 = vmatprep.subr.mxu0 0.0
  %900 = vmatpush1.msra.mxu0 %v433
  %901 = vmatprep.subr.mxu0 0.0
  %902 = vmatpush1.msra.mxu0 %v432
  %903 = vmatprep.subr.mxu0 0.0
  %904 = vmatpush2.msra.mxu0 0.0
  %905 = vmatprep.subr.mxu0 0.0
  %906 = vmatpush2.msra.mxu0 0.0
  %907 = vmatprep.subr.mxu0 0.0
  %908 = vmatpush2.msra.mxu0 0.0
  %909 = vmatprep.subr.mxu0 0.0
  %910 = vmatpush2.msra.mxu0 0.0
  %911 = vmatprep.subr.mxu0 0.0
  %912 = vmatpush2.msra.mxu0 0.0
  %913 = vmatprep.subr.mxu0 0.0
  %914 = vmatpush2.msra.mxu0 0.0
  %915 = vmatprep.subr.mxu0 0.0
  %916 = vmatpush2.msra.mxu0 0.0
  %917 = vmatprep.subr.mxu0 0.0
  %918 = vmatpush2.msra.mxu0 0.0
  %919 = vmatprep.subr.mxu0 0.0
  %920 = vmatpush2.msra.mxu0 0.0
  %921 = vmatprep.subr.mxu0 0.0
  %922 = vmatpush2.msra.mxu0 0.0
  %923 = vmatprep.subr.mxu0 0.0
  %924 = vmatpush2.msra.mxu0 0.0
  %925 = vmatprep.subr.mxu0 0.0
  %926 = vmatpush2.msra.mxu0 0.0
  %927 = vmatprep.subr.mxu0 0.0
  %928 = vmatpush2.msra.mxu0 0.0
  %929 = vmatprep.subr.mxu0 0.0
  %930 = vmatpush2.msra.mxu0 0.0
  %931 = vmatprep.subr.mxu0 0.0
  %932 = vmatpush2.msra.mxu0 0.0
  %933 = vmatprep.subr.mxu0 0.0
  %934 = vmatpush2.msra.mxu0 0.0
  %935 = vmatprep.mubr.f32.mxu0 0.0
  %936 = vmatmul.mubr.f32.gmra.mxu0 %v868
  %v937 = vpop.f32.mrf.mxu0
  %v938 = vadd.f32 0.0, %v937
  %v939 = vpop.f32.mrf.mxu0
  %940 = vmatprep.mubr.f32.mxu0 0.0
  %941 = vmatmul.mubr.f32.gmra.mxu0 %v869
  %v942 = vpop.f32.mrf.mxu0
  %v943 = vadd.f32 0.0, %v942
  %v944 = vpop.f32.mrf.mxu0
  %945 = vmatprep.mubr.f32.mxu0 0.0
  %946 = vmatmul.mubr.f32.gmra.mxu0 %v870
  %v947 = vpop.f32.mrf.mxu0
  %v948 = vadd.f32 0.0, %v947
  %v949 = vpop.f32.mrf.mxu0
  %950 = vdwg.mxu0
  %s951 = scalar_lea.vmem %s5, 144
  %v952 = vld [vmem:[%s951] sm:$0xff]
  %v953 = vld [vmem:[%s951 + $0x8] sm:$0xff]
  %v954 = vld [vmem:[%s951 + $0x10] sm:$0xff]
  %955 = vmatprep.subr.mxu0 0.0
  %956 = vmatpush1.msra.mxu0 %v447
  %957 = vmatprep.subr.mxu0 0.0
  %958 = vmatpush1.msra.mxu0 %v446
  %959 = vmatprep.subr.mxu0 0.0
  %960 = vmatpush1.msra.mxu0 %v445
  %961 = vmatprep.subr.mxu0 0.0
  %962 = vmatpush1.msra.mxu0 %v444
  %963 = vmatprep.subr.mxu0 0.0
  %964 = vmatpush1.msra.mxu0 %v443
  %965 = vmatprep.subr.mxu0 0.0
  %966 = vmatpush1.msra.mxu0 %v442
  %967 = vmatprep.subr.mxu0 0.0
  %968 = vmatpush1.msra.mxu0 %v441
  %969 = vmatprep.subr.mxu0 0.0
  %970 = vmatpush1.msra.mxu0 %v440
  %971 = vmatprep.subr.mxu0 0.0
  %972 = vmatpush1.msra.mxu0 %v439
  %973 = vmatprep.subr.mxu0 0.0
  %974 = vmatpush1.msra.mxu0 %v438
  %975 = vmatprep.subr.mxu0 0.0
  %976 = vmatpush1.msra.mxu0 %v437
  %977 = vmatprep.subr.mxu0 0.0
  %978 = vmatpush1.msra.mxu0 %v436
  %979 = vmatprep.subr.mxu0 0.0
  %980 = vmatpush1.msra.mxu0 %v435
  %981 = vmatprep.subr.mxu0 0.0
  %982 = vmatpush1.msra.mxu0 %v434
  %983 = vmatprep.subr.mxu0 0.0
  %984 = vmatpush1.msra.mxu0 %v433
  %985 = vmatprep.subr.mxu0 0.0
  %986 = vmatpush1.msra.mxu0 %v432
  %987 = vmatprep.subr.mxu0 0.0
  %988 = vmatpush2.msra.mxu0 0.0
  %989 = vmatprep.subr.mxu0 0.0
  %990 = vmatpush2.msra.mxu0 0.0
  %991 = vmatprep.subr.mxu0 0.0
  %992 = vmatpush2.msra.mxu0 0.0
  %993 = vmatprep.subr.mxu0 0.0
  %994 = vmatpush2.msra.mxu0 0.0
  %995 = vmatprep.subr.mxu0 0.0
  %996 = vmatpush2.msra.mxu0 0.0
  %997 = vmatprep.subr.mxu0 0.0
  %998 = vmatpush2.msra.mxu0 0.0
  %999 = vmatprep.subr.mxu0 0.0
  %1000 = vmatpush2.msra.mxu0 0.0
  %1001 = vmatprep.subr.mxu0 0.0
  %1002 = vmatpush2.msra.mxu0 0.0
  %1003 = vmatprep.subr.mxu0 0.0
  %1004 = vmatpush2.msra.mxu0 0.0
  %1005 = vmatprep.subr.mxu0 0.0
  %1006 = vmatpush2.msra.mxu0 0.0
  %1007 = vmatprep.subr.mxu0 0.0
  %1008 = vmatpush2.msra.mxu0 0.0
  %1009 = vmatprep.subr.mxu0 0.0
  %1010 = vmatpush2.msra.mxu0 0.0
  %1011 = vmatprep.subr.mxu0 0.0
  %1012 = vmatpush2.msra.mxu0 0.0
  %1013 = vmatprep.subr.mxu0 0.0
  %1014 = vmatpush2.msra.mxu0 0.0
  %1015 = vmatprep.subr.mxu0 0.0
  %1016 = vmatpush2.msra.mxu0 0.0
  %1017 = vmatprep.subr.mxu0 0.0
  %1018 = vmatpush2.msra.mxu0 0.0
  %1019 = vmatprep.mubr.f32.mxu0 0.0
  %1020 = vmatmul.mubr.f32.gmra.mxu0 %v952
  %v1021 = vpop.f32.mrf.mxu0
  %v1022 = vadd.f32 0.0, %v1021
  %v1023 = vpop.f32.mrf.mxu0
  %1024 = vmatprep.mubr.f32.mxu0 0.0
  %1025 = vmatmul.mubr.f32.gmra.mxu0 %v953
  %v1026 = vpop.f32.mrf.mxu0
  %v1027 = vadd.f32 0.0, %v1026
  %v1028 = vpop.f32.mrf.mxu0
  %1029 = vmatprep.mubr.f32.mxu0 0.0
  %1030 = vmatmul.mubr.f32.gmra.mxu0 %v954
  %v1031 = vpop.f32.mrf.mxu0
  %v1032 = vadd.f32 0.0, %v1031
  %v1033 = vpop.f32.mrf.mxu0
  %1034 = vdwg.mxu0
  %s1035 = scalar_lea.vmem %s5, 168
  %v1036 = vld [vmem:[%s1035] sm:$0xff]
  %v1037 = vld [vmem:[%s1035 + $0x8] sm:$0xff]
  %v1038 = vld [vmem:[%s1035 + $0x10] sm:$0xff]
  %1039 = vmatprep.subr.mxu0 0.0
  %1040 = vmatpush1.msra.mxu0 %v447
  %1041 = vmatprep.subr.mxu0 0.0
  %1042 = vmatpush1.msra.mxu0 %v446
  %1043 = vmatprep.subr.mxu0 0.0
  %1044 = vmatpush1.msra.mxu0 %v445
  %1045 = vmatprep.subr.mxu0 0.0
  %1046 = vmatpush1.msra.mxu0 %v444
  %1047 = vmatprep.subr.mxu0 0.0
  %1048 = vmatpush1.msra.mxu0 %v443
  %1049 = vmatprep.subr.mxu0 0.0
  %1050 = vmatpush1.msra.mxu0 %v442
  %1051 = vmatprep.subr.mxu0 0.0
  %1052 = vmatpush1.msra.mxu0 %v441
  %1053 = vmatprep.subr.mxu0 0.0
  %1054 = vmatpush1.msra.mxu0 %v440
  %1055 = vmatprep.subr.mxu0 0.0
  %1056 = vmatpush1.msra.mxu0 %v439
  %1057 = vmatprep.subr.mxu0 0.0
  %1058 = vmatpush1.msra.mxu0 %v438
  %1059 = vmatprep.subr.mxu0 0.0
  %1060 = vmatpush1.msra.mxu0 %v437
  %1061 = vmatprep.subr.mxu0 0.0
  %1062 = vmatpush1.msra.mxu0 %v436
  %1063 = vmatprep.subr.mxu0 0.0
  %1064 = vmatpush1.msra.mxu0 %v435
  %1065 = vmatprep.subr.mxu0 0.0
  %1066 = vmatpush1.msra.mxu0 %v434
  %1067 = vmatprep.subr.mxu0 0.0
  %1068 = vmatpush1.msra.mxu0 %v433
  %1069 = vmatprep.subr.mxu0 0.0
  %1070 = vmatpush1.msra.mxu0 %v432
  %1071 = vmatprep.subr.mxu0 0.0
  %1072 = vmatpush2.msra.mxu0 0.0
  %1073 = vmatprep.subr.mxu0 0.0
  %1074 = vmatpush2.msra.mxu0 0.0
  %1075 = vmatprep.subr.mxu0 0.0
  %1076 = vmatpush2.msra.mxu0 0.0
  %1077 = vmatprep.subr.mxu0 0.0
  %1078 = vmatpush2.msra.mxu0 0.0
  %1079 = vmatprep.subr.mxu0 0.0
  %1080 = vmatpush2.msra.mxu0 0.0
  %1081 = vmatprep.subr.mxu0 0.0
  %1082 = vmatpush2.msra.mxu0 0.0
  %1083 = vmatprep.subr.mxu0 0.0
  %1084 = vmatpush2.msra.mxu0 0.0
  %1085 = vmatprep.subr.mxu0 0.0
  %1086 = vmatpush2.msra.mxu0 0.0
  %1087 = vmatprep.subr.mxu0 0.0
  %1088 = vmatpush2.msra.mxu0 0.0
  %1089 = vmatprep.subr.mxu0 0.0
  %1090 = vmatpush2.msra.mxu0 0.0
  %1091 = vmatprep.subr.mxu0 0.0
  %1092 = vmatpush2.msra.mxu0 0.0
  %1093 = vmatprep.subr.mxu0 0.0
  %1094 = vmatpush2.msra.mxu0 0.0
  %1095 = vmatprep.subr.mxu0 0.0
  %1096 = vmatpush2.msra.mxu0 0.0
  %1097 = vmatprep.subr.mxu0 0.0
  %1098 = vmatpush2.msra.mxu0 0.0
  %1099 = vmatprep.subr.mxu0 0.0
  %1100 = vmatpush2.msra.mxu0 0.0
  %1101 = vmatprep.subr.mxu0 0.0
  %1102 = vmatpush2.msra.mxu0 0.0
  %1103 = vmatprep.mubr.f32.mxu0 0.0
  %1104 = vmatmul.mubr.f32.gmra.mxu0 %v1036
  %v1105 = vpop.f32.mrf.mxu0
  %v1106 = vadd.f32 0.0, %v1105
  %v1107 = vpop.f32.mrf.mxu0
  %1108 = vmatprep.mubr.f32.mxu0 0.0
  %1109 = vmatmul.mubr.f32.gmra.mxu0 %v1037
  %v1110 = vpop.f32.mrf.mxu0
  %v1111 = vadd.f32 0.0, %v1110
  %v1112 = vpop.f32.mrf.mxu0
  %1113 = vmatprep.mubr.f32.mxu0 0.0
  %1114 = vmatmul.mubr.f32.gmra.mxu0 %v1038
  %v1115 = vpop.f32.mrf.mxu0
  %v1116 = vadd.f32 0.0, %v1115
  %v1117 = vpop.f32.mrf.mxu0
  %1118 = vdwg.mxu0
  %s1119 = scalar_lea.vmem %s5, 192
  %v1120 = vld [vmem:[%s1119] sm:$0xff]
  %v1121 = vld [vmem:[%s1119 + $0x8] sm:$0xff]
  %v1122 = vld [vmem:[%s1119 + $0x10] sm:$0xff]
  %1123 = vmatprep.subr.mxu0 0.0
  %1124 = vmatpush1.msra.mxu0 %v447
  %1125 = vmatprep.subr.mxu0 0.0
  %1126 = vmatpush1.msra.mxu0 %v446
  %1127 = vmatprep.subr.mxu0 0.0
  %1128 = vmatpush1.msra.mxu0 %v445
  %1129 = vmatprep.subr.mxu0 0.0
  %1130 = vmatpush1.msra.mxu0 %v444
  %1131 = vmatprep.subr.mxu0 0.0
  %1132 = vmatpush1.msra.mxu0 %v443
  %1133 = vmatprep.subr.mxu0 0.0
  %1134 = vmatpush1.msra.mxu0 %v442
  %1135 = vmatprep.subr.mxu0 0.0
  %1136 = vmatpush1.msra.mxu0 %v441
  %1137 = vmatprep.subr.mxu0 0.0
  %1138 = vmatpush1.msra.mxu0 %v440
  %1139 = vmatprep.subr.mxu0 0.0
  %1140 = vmatpush1.msra.mxu0 %v439
  %1141 = vmatprep.subr.mxu0 0.0
  %1142 = vmatpush1.msra.mxu0 %v438
  %1143 = vmatprep.subr.mxu0 0.0
  %1144 = vmatpush1.msra.mxu0 %v437
  %1145 = vmatprep.subr.mxu0 0.0
  %1146 = vmatpush1.msra.mxu0 %v436
  %1147 = vmatprep.subr.mxu0 0.0
  %1148 = vmatpush1.msra.mxu0 %v435
  %1149 = vmatprep.subr.mxu0 0.0
  %1150 = vmatpush1.msra.mxu0 %v434
  %1151 = vmatprep.subr.mxu0 0.0
  %1152 = vmatpush1.msra.mxu0 %v433
  %1153 = vmatprep.subr.mxu0 0.0
  %1154 = vmatpush1.msra.mxu0 %v432
  %1155 = vmatprep.subr.mxu0 0.0
  %1156 = vmatpush2.msra.mxu0 0.0
  %1157 = vmatprep.subr.mxu0 0.0
  %1158 = vmatpush2.msra.mxu0 0.0
  %1159 = vmatprep.subr.mxu0 0.0
  %1160 = vmatpush2.msra.mxu0 0.0
  %1161 = vmatprep.subr.mxu0 0.0
  %1162 = vmatpush2.msra.mxu0 0.0
  %1163 = vmatprep.subr.mxu0 0.0
  %1164 = vmatpush2.msra.mxu0 0.0
  %1165 = vmatprep.subr.mxu0 0.0
  %1166 = vmatpush2.msra.mxu0 0.0
  %1167 = vmatprep.subr.mxu0 0.0
  %1168 = vmatpush2.msra.mxu0 0.0
  %1169 = vmatprep.subr.mxu0 0.0
  %1170 = vmatpush2.msra.mxu0 0.0
  %1171 = vmatprep.subr.mxu0 0.0
  %1172 = vmatpush2.msra.mxu0 0.0
  %1173 = vmatprep.subr.mxu0 0.0
  %1174 = vmatpush2.msra.mxu0 0.0
  %1175 = vmatprep.subr.mxu0 0.0
  %1176 = vmatpush2.msra.mxu0 0.0
  %1177 = vmatprep.subr.mxu0 0.0
  %1178 = vmatpush2.msra.mxu0 0.0
  %1179 = vmatprep.subr.mxu0 0.0
  %1180 = vmatpush2.msra.mxu0 0.0
  %1181 = vmatprep.subr.mxu0 0.0
  %1182 = vmatpush2.msra.mxu0 0.0
  %1183 = vmatprep.subr.mxu0 0.0
  %1184 = vmatpush2.msra.mxu0 0.0
  %1185 = vmatprep.subr.mxu0 0.0
  %1186 = vmatpush2.msra.mxu0 0.0
  %1187 = vmatprep.mubr.f32.mxu0 0.0
  %1188 = vmatmul.mubr.f32.gmra.mxu0 %v1120
  %v1189 = vpop.f32.mrf.mxu0
  %v1190 = vadd.f32 0.0, %v1189
  %v1191 = vpop.f32.mrf.mxu0
  %1192 = vmatprep.mubr.f32.mxu0 0.0
  %1193 = vmatmul.mubr.f32.gmra.mxu0 %v1121
  %v1194 = vpop.f32.mrf.mxu0
  %v1195 = vadd.f32 0.0, %v1194
  %v1196 = vpop.f32.mrf.mxu0
  %1197 = vmatprep.mubr.f32.mxu0 0.0
  %1198 = vmatmul.mubr.f32.gmra.mxu0 %v1122
  %v1199 = vpop.f32.mrf.mxu0
  %v1200 = vadd.f32 0.0, %v1199
  %v1201 = vpop.f32.mrf.mxu0
  %1202 = vdwg.mxu0
  %s1203 = scalar_lea.vmem %s5, 216
  %v1204 = vld [vmem:[%s1203] sm:$0xff]
  %v1205 = vld [vmem:[%s1203 + $0x8] sm:$0xff]
  %v1206 = vld [vmem:[%s1203 + $0x10] sm:$0xff]
  %1207 = vmatprep.subr.mxu0 0.0
  %1208 = vmatpush1.msra.mxu0 %v447
  %1209 = vmatprep.subr.mxu0 0.0
  %1210 = vmatpush1.msra.mxu0 %v446
  %1211 = vmatprep.subr.mxu0 0.0
  %1212 = vmatpush1.msra.mxu0 %v445
  %1213 = vmatprep.subr.mxu0 0.0
  %1214 = vmatpush1.msra.mxu0 %v444
  %1215 = vmatprep.subr.mxu0 0.0
  %1216 = vmatpush1.msra.mxu0 %v443
  %1217 = vmatprep.subr.mxu0 0.0
  %1218 = vmatpush1.msra.mxu0 %v442
  %1219 = vmatprep.subr.mxu0 0.0
  %1220 = vmatpush1.msra.mxu0 %v441
  %1221 = vmatprep.subr.mxu0 0.0
  %1222 = vmatpush1.msra.mxu0 %v440
  %1223 = vmatprep.subr.mxu0 0.0
  %1224 = vmatpush1.msra.mxu0 %v439
  %1225 = vmatprep.subr.mxu0 0.0
  %1226 = vmatpush1.msra.mxu0 %v438
  %1227 = vmatprep.subr.mxu0 0.0
  %1228 = vmatpush1.msra.mxu0 %v437
  %1229 = vmatprep.subr.mxu0 0.0
  %1230 = vmatpush1.msra.mxu0 %v436
  %1231 = vmatprep.subr.mxu0 0.0
  %1232 = vmatpush1.msra.mxu0 %v435
  %1233 = vmatprep.subr.mxu0 0.0
  %1234 = vmatpush1.msra.mxu0 %v434
  %1235 = vmatprep.subr.mxu0 0.0
  %1236 = vmatpush1.msra.mxu0 %v433
  %1237 = vmatprep.subr.mxu0 0.0
  %1238 = vmatpush1.msra.mxu0 %v432
  %1239 = vmatprep.subr.mxu0 0.0
  %1240 = vmatpush2.msra.mxu0 0.0
  %1241 = vmatprep.subr.mxu0 0.0
  %1242 = vmatpush2.msra.mxu0 0.0
  %1243 = vmatprep.subr.mxu0 0.0
  %1244 = vmatpush2.msra.mxu0 0.0
  %1245 = vmatprep.subr.mxu0 0.0
  %1246 = vmatpush2.msra.mxu0 0.0
  %1247 = vmatprep.subr.mxu0 0.0
  %1248 = vmatpush2.msra.mxu0 0.0
  %1249 = vmatprep.subr.mxu0 0.0
  %1250 = vmatpush2.msra.mxu0 0.0
  %1251 = vmatprep.subr.mxu0 0.0
  %1252 = vmatpush2.msra.mxu0 0.0
  %1253 = vmatprep.subr.mxu0 0.0
  %1254 = vmatpush2.msra.mxu0 0.0
  %1255 = vmatprep.subr.mxu0 0.0
  %1256 = vmatpush2.msra.mxu0 0.0
  %1257 = vmatprep.subr.mxu0 0.0
  %1258 = vmatpush2.msra.mxu0 0.0
  %1259 = vmatprep.subr.mxu0 0.0
  %1260 = vmatpush2.msra.mxu0 0.0
  %1261 = vmatprep.subr.mxu0 0.0
  %1262 = vmatpush2.msra.mxu0 0.0
  %1263 = vmatprep.subr.mxu0 0.0
  %1264 = vmatpush2.msra.mxu0 0.0
  %1265 = vmatprep.subr.mxu0 0.0
  %1266 = vmatpush2.msra.mxu0 0.0
  %1267 = vmatprep.subr.mxu0 0.0
  %1268 = vmatpush2.msra.mxu0 0.0
  %1269 = vmatprep.subr.mxu0 0.0
  %1270 = vmatpush2.msra.mxu0 0.0
  %1271 = vmatprep.mubr.f32.mxu0 0.0
  %1272 = vmatmul.mubr.f32.gmra.mxu0 %v1204
  %v1273 = vpop.f32.mrf.mxu0
  %v1274 = vadd.f32 0.0, %v1273
  %v1275 = vpop.f32.mrf.mxu0
  %1276 = vmatprep.mubr.f32.mxu0 0.0
  %1277 = vmatmul.mubr.f32.gmra.mxu0 %v1205
  %v1278 = vpop.f32.mrf.mxu0
  %v1279 = vadd.f32 0.0, %v1278
  %v1280 = vpop.f32.mrf.mxu0
  %1281 = vmatprep.mubr.f32.mxu0 0.0
  %1282 = vmatmul.mubr.f32.gmra.mxu0 %v1206
  %v1283 = vpop.f32.mrf.mxu0
  %v1284 = vadd.f32 0.0, %v1283
  %v1285 = vpop.f32.mrf.mxu0
  %1286 = vdwg.mxu0
  %s1287 = scalar_lea.vmem %s5, 240
  %v1288 = vld [vmem:[%s1287] sm:$0xff]
  %v1289 = vld [vmem:[%s1287 + $0x8] sm:$0xff]
  %v1290 = vld [vmem:[%s1287 + $0x10] sm:$0xff]
  %1291 = vmatprep.subr.mxu0 0.0
  %1292 = vmatpush1.msra.mxu0 %v447
  %1293 = vmatprep.subr.mxu0 0.0
  %1294 = vmatpush1.msra.mxu0 %v446
  %1295 = vmatprep.subr.mxu0 0.0
  %1296 = vmatpush1.msra.mxu0 %v445
  %1297 = vmatprep.subr.mxu0 0.0
  %1298 = vmatpush1.msra.mxu0 %v444
  %1299 = vmatprep.subr.mxu0 0.0
  %1300 = vmatpush1.msra.mxu0 %v443
  %1301 = vmatprep.subr.mxu0 0.0
  %1302 = vmatpush1.msra.mxu0 %v442
  %1303 = vmatprep.subr.mxu0 0.0
  %1304 = vmatpush1.msra.mxu0 %v441
  %1305 = vmatprep.subr.mxu0 0.0
  %1306 = vmatpush1.msra.mxu0 %v440
  %1307 = vmatprep.subr.mxu0 0.0
  %1308 = vmatpush1.msra.mxu0 %v439
  %1309 = vmatprep.subr.mxu0 0.0
  %1310 = vmatpush1.msra.mxu0 %v438
  %1311 = vmatprep.subr.mxu0 0.0
  %1312 = vmatpush1.msra.mxu0 %v437
  %1313 = vmatprep.subr.mxu0 0.0
  %1314 = vmatpush1.msra.mxu0 %v436
  %1315 = vmatprep.subr.mxu0 0.0
  %1316 = vmatpush1.msra.mxu0 %v435
  %1317 = vmatprep.subr.mxu0 0.0
  %1318 = vmatpush1.msra.mxu0 %v434
  %1319 = vmatprep.subr.mxu0 0.0
  %1320 = vmatpush1.msra.mxu0 %v433
  %1321 = vmatprep.subr.mxu0 0.0
  %1322 = vmatpush1.msra.mxu0 %v432
  %1323 = vmatprep.subr.mxu0 0.0
  %1324 = vmatpush2.msra.mxu0 0.0
  %1325 = vmatprep.subr.mxu0 0.0
  %1326 = vmatpush2.msra.mxu0 0.0
  %1327 = vmatprep.subr.mxu0 0.0
  %1328 = vmatpush2.msra.mxu0 0.0
  %1329 = vmatprep.subr.mxu0 0.0
  %1330 = vmatpush2.msra.mxu0 0.0
  %1331 = vmatprep.subr.mxu0 0.0
  %1332 = vmatpush2.msra.mxu0 0.0
  %1333 = vmatprep.subr.mxu0 0.0
  %1334 = vmatpush2.msra.mxu0 0.0
  %1335 = vmatprep.subr.mxu0 0.0
  %1336 = vmatpush2.msra.mxu0 0.0
  %1337 = vmatprep.subr.mxu0 0.0
  %1338 = vmatpush2.msra.mxu0 0.0
  %1339 = vmatprep.subr.mxu0 0.0
  %1340 = vmatpush2.msra.mxu0 0.0
  %1341 = vmatprep.subr.mxu0 0.0
  %1342 = vmatpush2.msra.mxu0 0.0
  %1343 = vmatprep.subr.mxu0 0.0
  %1344 = vmatpush2.msra.mxu0 0.0
  %1345 = vmatprep.subr.mxu0 0.0
  %1346 = vmatpush2.msra.mxu0 0.0
  %1347 = vmatprep.subr.mxu0 0.0
  %1348 = vmatpush2.msra.mxu0 0.0
  %1349 = vmatprep.subr.mxu0 0.0
  %1350 = vmatpush2.msra.mxu0 0.0
  %1351 = vmatprep.subr.mxu0 0.0
  %1352 = vmatpush2.msra.mxu0 0.0
  %1353 = vmatprep.subr.mxu0 0.0
  %1354 = vmatpush2.msra.mxu0 0.0
  %1355 = vmatprep.mubr.f32.mxu0 0.0
  %1356 = vmatmul.mubr.f32.gmra.mxu0 %v1288
  %v1357 = vpop.f32.mrf.mxu0
  %v1358 = vadd.f32 0.0, %v1357
  %v1359 = vpop.f32.mrf.mxu0
  %1360 = vmatprep.mubr.f32.mxu0 0.0
  %1361 = vmatmul.mubr.f32.gmra.mxu0 %v1289
  %v1362 = vpop.f32.mrf.mxu0
  %v1363 = vadd.f32 0.0, %v1362
  %v1364 = vpop.f32.mrf.mxu0
  %1365 = vmatprep.mubr.f32.mxu0 0.0
  %1366 = vmatmul.mubr.f32.gmra.mxu0 %v1290
  %v1367 = vpop.f32.mrf.mxu0
  %v1368 = vadd.f32 0.0, %v1367
  %v1369 = vpop.f32.mrf.mxu0
  %1370 = vdwg.mxu0
  %s1371 = scalar_lea.vmem %s5, 264
  %v1372 = vld [vmem:[%s1371] sm:$0xff]
  %v1373 = vld [vmem:[%s1371 + $0x8] sm:$0xff]
  %v1374 = vld [vmem:[%s1371 + $0x10] sm:$0xff]
  %1375 = vmatprep.subr.mxu0 0.0
  %1376 = vmatpush1.msra.mxu0 %v447
  %1377 = vmatprep.subr.mxu0 0.0
  %1378 = vmatpush1.msra.mxu0 %v446
  %1379 = vmatprep.subr.mxu0 0.0
  %1380 = vmatpush1.msra.mxu0 %v445
  %1381 = vmatprep.subr.mxu0 0.0
  %1382 = vmatpush1.msra.mxu0 %v444
  %1383 = vmatprep.subr.mxu0 0.0
  %1384 = vmatpush1.msra.mxu0 %v443
  %1385 = vmatprep.subr.mxu0 0.0
  %1386 = vmatpush1.msra.mxu0 %v442
  %1387 = vmatprep.subr.mxu0 0.0
  %1388 = vmatpush1.msra.mxu0 %v441
  %1389 = vmatprep.subr.mxu0 0.0
  %1390 = vmatpush1.msra.mxu0 %v440
  %1391 = vmatprep.subr.mxu0 0.0
  %1392 = vmatpush1.msra.mxu0 %v439
  %1393 = vmatprep.subr.mxu0 0.0
  %1394 = vmatpush1.msra.mxu0 %v438
  %1395 = vmatprep.subr.mxu0 0.0
  %1396 = vmatpush1.msra.mxu0 %v437
  %1397 = vmatprep.subr.mxu0 0.0
  %1398 = vmatpush1.msra.mxu0 %v436
  %1399 = vmatprep.subr.mxu0 0.0
  %1400 = vmatpush1.msra.mxu0 %v435
  %1401 = vmatprep.subr.mxu0 0.0
  %1402 = vmatpush1.msra.mxu0 %v434
  %1403 = vmatprep.subr.mxu0 0.0
  %1404 = vmatpush1.msra.mxu0 %v433
  %1405 = vmatprep.subr.mxu0 0.0
  %1406 = vmatpush1.msra.mxu0 %v432
  %1407 = vmatprep.subr.mxu0 0.0
  %1408 = vmatpush2.msra.mxu0 0.0
  %1409 = vmatprep.subr.mxu0 0.0
  %1410 = vmatpush2.msra.mxu0 0.0
  %1411 = vmatprep.subr.mxu0 0.0
  %1412 = vmatpush2.msra.mxu0 0.0
  %1413 = vmatprep.subr.mxu0 0.0
  %1414 = vmatpush2.msra.mxu0 0.0
  %1415 = vmatprep.subr.mxu0 0.0
  %1416 = vmatpush2.msra.mxu0 0.0
  %1417 = vmatprep.subr.mxu0 0.0
  %1418 = vmatpush2.msra.mxu0 0.0
  %1419 = vmatprep.subr.mxu0 0.0
  %1420 = vmatpush2.msra.mxu0 0.0
  %1421 = vmatprep.subr.mxu0 0.0
  %1422 = vmatpush2.msra.mxu0 0.0
  %1423 = vmatprep.subr.mxu0 0.0
  %1424 = vmatpush2.msra.mxu0 0.0
  %1425 = vmatprep.subr.mxu0 0.0
  %1426 = vmatpush2.msra.mxu0 0.0
  %1427 = vmatprep.subr.mxu0 0.0
  %1428 = vmatpush2.msra.mxu0 0.0
  %1429 = vmatprep.subr.mxu0 0.0
  %1430 = vmatpush2.msra.mxu0 0.0
  %1431 = vmatprep.subr.mxu0 0.0
  %1432 = vmatpush2.msra.mxu0 0.0
  %1433 = vmatprep.subr.mxu0 0.0
  %1434 = vmatpush2.msra.mxu0 0.0
  %1435 = vmatprep.subr.mxu0 0.0
  %1436 = vmatpush2.msra.mxu0 0.0
  %1437 = vmatprep.subr.mxu0 0.0
  %1438 = vmatpush2.msra.mxu0 0.0
  %1439 = vmatprep.mubr.f32.mxu0 0.0
  %1440 = vmatmul.mubr.f32.gmra.mxu0 %v1372
  %v1441 = vpop.f32.mrf.mxu0
  %v1442 = vadd.f32 0.0, %v1441
  %v1443 = vpop.f32.mrf.mxu0
  %1444 = vmatprep.mubr.f32.mxu0 0.0
  %1445 = vmatmul.mubr.f32.gmra.mxu0 %v1373
  %v1446 = vpop.f32.mrf.mxu0
  %v1447 = vadd.f32 0.0, %v1446
  %v1448 = vpop.f32.mrf.mxu0
  %1449 = vmatprep.mubr.f32.mxu0 0.0
  %1450 = vmatmul.mubr.f32.gmra.mxu0 %v1374
  %v1451 = vpop.f32.mrf.mxu0
  %v1452 = vadd.f32 0.0, %v1451
  %v1453 = vpop.f32.mrf.mxu0
  %1454 = vdwg.mxu0
  %s1455 = scalar_lea.vmem %s5, 288
  %v1456 = vld [vmem:[%s1455] sm:$0xff]
  %v1457 = vld [vmem:[%s1455 + $0x8] sm:$0xff]
  %v1458 = vld [vmem:[%s1455 + $0x10] sm:$0xff]
  %1459 = vmatprep.subr.mxu0 0.0
  %1460 = vmatpush1.msra.mxu0 %v447
  %1461 = vmatprep.subr.mxu0 0.0
  %1462 = vmatpush1.msra.mxu0 %v446
  %1463 = vmatprep.subr.mxu0 0.0
  %1464 = vmatpush1.msra.mxu0 %v445
  %1465 = vmatprep.subr.mxu0 0.0
  %1466 = vmatpush1.msra.mxu0 %v444
  %1467 = vmatprep.subr.mxu0 0.0
  %1468 = vmatpush1.msra.mxu0 %v443
  %1469 = vmatprep.subr.mxu0 0.0
  %1470 = vmatpush1.msra.mxu0 %v442
  %1471 = vmatprep.subr.mxu0 0.0
  %1472 = vmatpush1.msra.mxu0 %v441
  %1473 = vmatprep.subr.mxu0 0.0
  %1474 = vmatpush1.msra.mxu0 %v440
  %1475 = vmatprep.subr.mxu0 0.0
  %1476 = vmatpush1.msra.mxu0 %v439
  %1477 = vmatprep.subr.mxu0 0.0
  %1478 = vmatpush1.msra.mxu0 %v438
  %1479 = vmatprep.subr.mxu0 0.0
  %1480 = vmatpush1.msra.mxu0 %v437
  %1481 = vmatprep.subr.mxu0 0.0
  %1482 = vmatpush1.msra.mxu0 %v436
  %1483 = vmatprep.subr.mxu0 0.0
  %1484 = vmatpush1.msra.mxu0 %v435
  %1485 = vmatprep.subr.mxu0 0.0
  %1486 = vmatpush1.msra.mxu0 %v434
  %1487 = vmatprep.subr.mxu0 0.0
  %1488 = vmatpush1.msra.mxu0 %v433
  %1489 = vmatprep.subr.mxu0 0.0
  %1490 = vmatpush1.msra.mxu0 %v432
  %1491 = vmatprep.subr.mxu0 0.0
  %1492 = vmatpush2.msra.mxu0 0.0
  %1493 = vmatprep.subr.mxu0 0.0
  %1494 = vmatpush2.msra.mxu0 0.0
  %1495 = vmatprep.subr.mxu0 0.0
  %1496 = vmatpush2.msra.mxu0 0.0
  %1497 = vmatprep.subr.mxu0 0.0
  %1498 = vmatpush2.msra.mxu0 0.0
  %1499 = vmatprep.subr.mxu0 0.0
  %1500 = vmatpush2.msra.mxu0 0.0
  %1501 = vmatprep.subr.mxu0 0.0
  %1502 = vmatpush2.msra.mxu0 0.0
  %1503 = vmatprep.subr.mxu0 0.0
  %1504 = vmatpush2.msra.mxu0 0.0
  %1505 = vmatprep.subr.mxu0 0.0
  %1506 = vmatpush2.msra.mxu0 0.0
  %1507 = vmatprep.subr.mxu0 0.0
  %1508 = vmatpush2.msra.mxu0 0.0
  %1509 = vmatprep.subr.mxu0 0.0
  %1510 = vmatpush2.msra.mxu0 0.0
  %1511 = vmatprep.subr.mxu0 0.0
  %1512 = vmatpush2.msra.mxu0 0.0
  %1513 = vmatprep.subr.mxu0 0.0
  %1514 = vmatpush2.msra.mxu0 0.0
  %1515 = vmatprep.subr.mxu0 0.0
  %1516 = vmatpush2.msra.mxu0 0.0
  %1517 = vmatprep.subr.mxu0 0.0
  %1518 = vmatpush2.msra.mxu0 0.0
  %1519 = vmatprep.subr.mxu0 0.0
  %1520 = vmatpush2.msra.mxu0 0.0
  %1521 = vmatprep.subr.mxu0 0.0
  %1522 = vmatpush2.msra.mxu0 0.0
  %1523 = vmatprep.mubr.f32.mxu0 0.0
  %1524 = vmatmul.mubr.f32.gmra.mxu0 %v1456
  %v1525 = vpop.f32.mrf.mxu0
  %v1526 = vadd.f32 0.0, %v1525
  %v1527 = vpop.f32.mrf.mxu0
  %1528 = vmatprep.mubr.f32.mxu0 0.0
  %1529 = vmatmul.mubr.f32.gmra.mxu0 %v1457
  %v1530 = vpop.f32.mrf.mxu0
  %v1531 = vadd.f32 0.0, %v1530
  %v1532 = vpop.f32.mrf.mxu0
  %1533 = vmatprep.mubr.f32.mxu0 0.0
  %1534 = vmatmul.mubr.f32.gmra.mxu0 %v1458
  %v1535 = vpop.f32.mrf.mxu0
  %v1536 = vadd.f32 0.0, %v1535
  %v1537 = vpop.f32.mrf.mxu0
  %1538 = vdwg.mxu0
  %s1539 = scalar_lea.vmem %s5, 312
  %v1540 = vld [vmem:[%s1539] sm:$0xff]
  %v1541 = vld [vmem:[%s1539 + $0x8] sm:$0xff]
  %v1542 = vld [vmem:[%s1539 + $0x10] sm:$0xff]
  %1543 = vmatprep.subr.mxu0 0.0
  %1544 = vmatpush1.msra.mxu0 %v447
  %1545 = vmatprep.subr.mxu0 0.0
  %1546 = vmatpush1.msra.mxu0 %v446
  %1547 = vmatprep.subr.mxu0 0.0
  %1548 = vmatpush1.msra.mxu0 %v445
  %1549 = vmatprep.subr.mxu0 0.0
  %1550 = vmatpush1.msra.mxu0 %v444
  %1551 = vmatprep.subr.mxu0 0.0
  %1552 = vmatpush1.msra.mxu0 %v443
  %1553 = vmatprep.subr.mxu0 0.0
  %1554 = vmatpush1.msra.mxu0 %v442
  %1555 = vmatprep.subr.mxu0 0.0
  %1556 = vmatpush1.msra.mxu0 %v441
  %1557 = vmatprep.subr.mxu0 0.0
  %1558 = vmatpush1.msra.mxu0 %v440
  %1559 = vmatprep.subr.mxu0 0.0
  %1560 = vmatpush1.msra.mxu0 %v439
  %1561 = vmatprep.subr.mxu0 0.0
  %1562 = vmatpush1.msra.mxu0 %v438
  %1563 = vmatprep.subr.mxu0 0.0
  %1564 = vmatpush1.msra.mxu0 %v437
  %1565 = vmatprep.subr.mxu0 0.0
  %1566 = vmatpush1.msra.mxu0 %v436
  %1567 = vmatprep.subr.mxu0 0.0
  %1568 = vmatpush1.msra.mxu0 %v435
  %1569 = vmatprep.subr.mxu0 0.0
  %1570 = vmatpush1.msra.mxu0 %v434
  %1571 = vmatprep.subr.mxu0 0.0
  %1572 = vmatpush1.msra.mxu0 %v433
  %1573 = vmatprep.subr.mxu0 0.0
  %1574 = vmatpush1.msra.mxu0 %v432
  %1575 = vmatprep.subr.mxu0 0.0
  %1576 = vmatpush2.msra.mxu0 0.0
  %1577 = vmatprep.subr.mxu0 0.0
  %1578 = vmatpush2.msra.mxu0 0.0
  %1579 = vmatprep.subr.mxu0 0.0
  %1580 = vmatpush2.msra.mxu0 0.0
  %1581 = vmatprep.subr.mxu0 0.0
  %1582 = vmatpush2.msra.mxu0 0.0
  %1583 = vmatprep.subr.mxu0 0.0
  %1584 = vmatpush2.msra.mxu0 0.0
  %1585 = vmatprep.subr.mxu0 0.0
  %1586 = vmatpush2.msra.mxu0 0.0
  %1587 = vmatprep.subr.mxu0 0.0
  %1588 = vmatpush2.msra.mxu0 0.0
  %1589 = vmatprep.subr.mxu0 0.0
  %1590 = vmatpush2.msra.mxu0 0.0
  %1591 = vmatprep.subr.mxu0 0.0
  %1592 = vmatpush2.msra.mxu0 0.0
  %1593 = vmatprep.subr.mxu0 0.0
  %1594 = vmatpush2.msra.mxu0 0.0
  %1595 = vmatprep.subr.mxu0 0.0
  %1596 = vmatpush2.msra.mxu0 0.0
  %1597 = vmatprep.subr.mxu0 0.0
  %1598 = vmatpush2.msra.mxu0 0.0
  %1599 = vmatprep.subr.mxu0 0.0
  %1600 = vmatpush2.msra.mxu0 0.0
  %1601 = vmatprep.subr.mxu0 0.0
  %1602 = vmatpush2.msra.mxu0 0.0
  %1603 = vmatprep.subr.mxu0 0.0
  %1604 = vmatpush2.msra.mxu0 0.0
  %1605 = vmatprep.subr.mxu0 0.0
  %1606 = vmatpush2.msra.mxu0 0.0
  %1607 = vmatprep.mubr.f32.mxu0 0.0
  %1608 = vmatmul.mubr.f32.gmra.mxu0 %v1540
  %v1609 = vpop.f32.mrf.mxu0
  %v1610 = vadd.f32 0.0, %v1609
  %v1611 = vpop.f32.mrf.mxu0
  %1612 = vmatprep.mubr.f32.mxu0 0.0
  %1613 = vmatmul.mubr.f32.gmra.mxu0 %v1541
  %v1614 = vpop.f32.mrf.mxu0
  %v1615 = vadd.f32 0.0, %v1614
  %v1616 = vpop.f32.mrf.mxu0
  %1617 = vmatprep.mubr.f32.mxu0 0.0
  %1618 = vmatmul.mubr.f32.gmra.mxu0 %v1542
  %v1619 = vpop.f32.mrf.mxu0
  %v1620 = vadd.f32 0.0, %v1619
  %v1621 = vpop.f32.mrf.mxu0
  %1622 = vdwg.mxu0
  %s1623 = scalar_lea.vmem %s5, 336
  %v1624 = vld [vmem:[%s1623] sm:$0xff]
  %v1625 = vld [vmem:[%s1623 + $0x8] sm:$0xff]
  %v1626 = vld [vmem:[%s1623 + $0x10] sm:$0xff]
  %1627 = vmatprep.subr.mxu0 0.0
  %1628 = vmatpush1.msra.mxu0 %v447
  %1629 = vmatprep.subr.mxu0 0.0
  %1630 = vmatpush1.msra.mxu0 %v446
  %1631 = vmatprep.subr.mxu0 0.0
  %1632 = vmatpush1.msra.mxu0 %v445
  %1633 = vmatprep.subr.mxu0 0.0
  %1634 = vmatpush1.msra.mxu0 %v444
  %1635 = vmatprep.subr.mxu0 0.0
  %1636 = vmatpush1.msra.mxu0 %v443
  %1637 = vmatprep.subr.mxu0 0.0
  %1638 = vmatpush1.msra.mxu0 %v442
  %1639 = vmatprep.subr.mxu0 0.0
  %1640 = vmatpush1.msra.mxu0 %v441
  %1641 = vmatprep.subr.mxu0 0.0
  %1642 = vmatpush1.msra.mxu0 %v440
  %1643 = vmatprep.subr.mxu0 0.0
  %1644 = vmatpush1.msra.mxu0 %v439
  %1645 = vmatprep.subr.mxu0 0.0
  %1646 = vmatpush1.msra.mxu0 %v438
  %1647 = vmatprep.subr.mxu0 0.0
  %1648 = vmatpush1.msra.mxu0 %v437
  %1649 = vmatprep.subr.mxu0 0.0
  %1650 = vmatpush1.msra.mxu0 %v436
  %1651 = vmatprep.subr.mxu0 0.0
  %1652 = vmatpush1.msra.mxu0 %v435
  %1653 = vmatprep.subr.mxu0 0.0
  %1654 = vmatpush1.msra.mxu0 %v434
  %1655 = vmatprep.subr.mxu0 0.0
  %1656 = vmatpush1.msra.mxu0 %v433
  %1657 = vmatprep.subr.mxu0 0.0
  %1658 = vmatpush1.msra.mxu0 %v432
  %1659 = vmatprep.subr.mxu0 0.0
  %1660 = vmatpush2.msra.mxu0 0.0
  %1661 = vmatprep.subr.mxu0 0.0
  %1662 = vmatpush2.msra.mxu0 0.0
  %1663 = vmatprep.subr.mxu0 0.0
  %1664 = vmatpush2.msra.mxu0 0.0
  %1665 = vmatprep.subr.mxu0 0.0
  %1666 = vmatpush2.msra.mxu0 0.0
  %1667 = vmatprep.subr.mxu0 0.0
  %1668 = vmatpush2.msra.mxu0 0.0
  %1669 = vmatprep.subr.mxu0 0.0
  %1670 = vmatpush2.msra.mxu0 0.0
  %1671 = vmatprep.subr.mxu0 0.0
  %1672 = vmatpush2.msra.mxu0 0.0
  %1673 = vmatprep.subr.mxu0 0.0
  %1674 = vmatpush2.msra.mxu0 0.0
  %1675 = vmatprep.subr.mxu0 0.0
  %1676 = vmatpush2.msra.mxu0 0.0
  %1677 = vmatprep.subr.mxu0 0.0
  %1678 = vmatpush2.msra.mxu0 0.0
  %1679 = vmatprep.subr.mxu0 0.0
  %1680 = vmatpush2.msra.mxu0 0.0
  %1681 = vmatprep.subr.mxu0 0.0
  %1682 = vmatpush2.msra.mxu0 0.0
  %1683 = vmatprep.subr.mxu0 0.0
  %1684 = vmatpush2.msra.mxu0 0.0
  %1685 = vmatprep.subr.mxu0 0.0
  %1686 = vmatpush2.msra.mxu0 0.0
  %1687 = vmatprep.subr.mxu0 0.0
  %1688 = vmatpush2.msra.mxu0 0.0
  %1689 = vmatprep.subr.mxu0 0.0
  %1690 = vmatpush2.msra.mxu0 0.0
  %1691 = vmatprep.mubr.f32.mxu0 0.0
  %1692 = vmatmul.mubr.f32.gmra.mxu0 %v1624
  %v1693 = vpop.f32.mrf.mxu0
  %v1694 = vadd.f32 0.0, %v1693
  %v1695 = vpop.f32.mrf.mxu0
  %1696 = vmatprep.mubr.f32.mxu0 0.0
  %1697 = vmatmul.mubr.f32.gmra.mxu0 %v1625
  %v1698 = vpop.f32.mrf.mxu0
  %v1699 = vadd.f32 0.0, %v1698
  %v1700 = vpop.f32.mrf.mxu0
  %1701 = vmatprep.mubr.f32.mxu0 0.0
  %1702 = vmatmul.mubr.f32.gmra.mxu0 %v1626
  %v1703 = vpop.f32.mrf.mxu0
  %v1704 = vadd.f32 0.0, %v1703
  %v1705 = vpop.f32.mrf.mxu0
  %1706 = vdwg.mxu0
  %s1707 = scalar_lea.vmem %s5, 360
  %v1708 = vld [vmem:[%s1707] sm:$0xff]
  %v1709 = vld [vmem:[%s1707 + $0x8] sm:$0xff]
  %v1710 = vld [vmem:[%s1707 + $0x10] sm:$0xff]
  %1711 = vmatprep.subr.mxu0 0.0
  %1712 = vmatpush1.msra.mxu0 %v447
  %1713 = vmatprep.subr.mxu0 0.0
  %1714 = vmatpush1.msra.mxu0 %v446
  %1715 = vmatprep.subr.mxu0 0.0
  %1716 = vmatpush1.msra.mxu0 %v445
  %1717 = vmatprep.subr.mxu0 0.0
  %1718 = vmatpush1.msra.mxu0 %v444
  %1719 = vmatprep.subr.mxu0 0.0
  %1720 = vmatpush1.msra.mxu0 %v443
  %1721 = vmatprep.subr.mxu0 0.0
  %1722 = vmatpush1.msra.mxu0 %v442
  %1723 = vmatprep.subr.mxu0 0.0
  %1724 = vmatpush1.msra.mxu0 %v441
  %1725 = vmatprep.subr.mxu0 0.0
  %1726 = vmatpush1.msra.mxu0 %v440
  %1727 = vmatprep.subr.mxu0 0.0
  %1728 = vmatpush1.msra.mxu0 %v439
  %1729 = vmatprep.subr.mxu0 0.0
  %1730 = vmatpush1.msra.mxu0 %v438
  %1731 = vmatprep.subr.mxu0 0.0
  %1732 = vmatpush1.msra.mxu0 %v437
  %1733 = vmatprep.subr.mxu0 0.0
  %1734 = vmatpush1.msra.mxu0 %v436
  %1735 = vmatprep.subr.mxu0 0.0
  %1736 = vmatpush1.msra.mxu0 %v435
  %1737 = vmatprep.subr.mxu0 0.0
  %1738 = vmatpush1.msra.mxu0 %v434
  %1739 = vmatprep.subr.mxu0 0.0
  %1740 = vmatpush1.msra.mxu0 %v433
  %1741 = vmatprep.subr.mxu0 0.0
  %1742 = vmatpush1.msra.mxu0 %v432
  %1743 = vmatprep.subr.mxu0 0.0
  %1744 = vmatpush2.msra.mxu0 0.0
  %1745 = vmatprep.subr.mxu0 0.0
  %1746 = vmatpush2.msra.mxu0 0.0
  %1747 = vmatprep.subr.mxu0 0.0
  %1748 = vmatpush2.msra.mxu0 0.0
  %1749 = vmatprep.subr.mxu0 0.0
  %1750 = vmatpush2.msra.mxu0 0.0
  %1751 = vmatprep.subr.mxu0 0.0
  %1752 = vmatpush2.msra.mxu0 0.0
  %1753 = vmatprep.subr.mxu0 0.0
  %1754 = vmatpush2.msra.mxu0 0.0
  %1755 = vmatprep.subr.mxu0 0.0
  %1756 = vmatpush2.msra.mxu0 0.0
  %1757 = vmatprep.subr.mxu0 0.0
  %1758 = vmatpush2.msra.mxu0 0.0
  %1759 = vmatprep.subr.mxu0 0.0
  %1760 = vmatpush2.msra.mxu0 0.0
  %1761 = vmatprep.subr.mxu0 0.0
  %1762 = vmatpush2.msra.mxu0 0.0
  %1763 = vmatprep.subr.mxu0 0.0
  %1764 = vmatpush2.msra.mxu0 0.0
  %1765 = vmatprep.subr.mxu0 0.0
  %1766 = vmatpush2.msra.mxu0 0.0
  %1767 = vmatprep.subr.mxu0 0.0
  %1768 = vmatpush2.msra.mxu0 0.0
  %1769 = vmatprep.subr.mxu0 0.0
  %1770 = vmatpush2.msra.mxu0 0.0
  %1771 = vmatprep.subr.mxu0 0.0
  %1772 = vmatpush2.msra.mxu0 0.0
  %1773 = vmatprep.subr.mxu0 0.0
  %1774 = vmatpush2.msra.mxu0 0.0
  %1775 = vmatprep.mubr.f32.mxu0 0.0
  %1776 = vmatmul.mubr.f32.gmra.mxu0 %v1708
  %v1777 = vpop.f32.mrf.mxu0
  %v1778 = vadd.f32 0.0, %v1777
  %v1779 = vpop.f32.mrf.mxu0
  %1780 = vmatprep.mubr.f32.mxu0 0.0
  %1781 = vmatmul.mubr.f32.gmra.mxu0 %v1709
  %v1782 = vpop.f32.mrf.mxu0
  %v1783 = vadd.f32 0.0, %v1782
  %v1784 = vpop.f32.mrf.mxu0
  %1785 = vmatprep.mubr.f32.mxu0 0.0
  %1786 = vmatmul.mubr.f32.gmra.mxu0 %v1710
  %v1787 = vpop.f32.mrf.mxu0
  %v1788 = vadd.f32 0.0, %v1787
  %v1789 = vpop.f32.mrf.mxu0
  %1790 = vdwg.mxu0
  %1794 = vrot.lane.b32.xlu0 %v602, 64
  %v1795 = vpop.permute.xlu0 %1794
  %1796 = vrot.lane.b32.xlu0 %v607, 64
  %v1797 = vpop.permute.xlu0 %1796
  %1798 = vrot.lane.b32.xlu0 %v612, 64
  %v1799 = vpop.permute.xlu0 %1798
  %1806 = vrot.lane.b32.xlu0 %v770, 64
  %v1807 = vpop.permute.xlu0 %1806
  %1808 = vrot.lane.b32.xlu0 %v775, 64
  %v1809 = vpop.permute.xlu0 %1808
  %1810 = vrot.lane.b32.xlu0 %v780, 64
  %v1811 = vpop.permute.xlu0 %1810
  %1818 = vrot.lane.b32.xlu0 %v938, 64
  %v1819 = vpop.permute.xlu0 %1818
  %1820 = vrot.lane.b32.xlu0 %v943, 64
  %v1821 = vpop.permute.xlu0 %1820
  %1822 = vrot.lane.b32.xlu0 %v948, 64
  %v1823 = vpop.permute.xlu0 %1822
  %1830 = vrot.lane.b32.xlu0 %v1106, 64
  %v1831 = vpop.permute.xlu0 %1830
  %1832 = vrot.lane.b32.xlu0 %v1111, 64
  %v1833 = vpop.permute.xlu0 %1832
  %1834 = vrot.lane.b32.xlu0 %v1116, 64
  %v1835 = vpop.permute.xlu0 %1834
  %1842 = vrot.lane.b32.xlu0 %v1274, 64
  %v1843 = vpop.permute.xlu0 %1842
  %1844 = vrot.lane.b32.xlu0 %v1279, 64
  %v1845 = vpop.permute.xlu0 %1844
  %1846 = vrot.lane.b32.xlu0 %v1284, 64
  %v1847 = vpop.permute.xlu0 %1846
  %1854 = vrot.lane.b32.xlu0 %v1442, 64
  %v1855 = vpop.permute.xlu0 %1854
  %1856 = vrot.lane.b32.xlu0 %v1447, 64
  %v1857 = vpop.permute.xlu0 %1856
  %1858 = vrot.lane.b32.xlu0 %v1452, 64
  %v1859 = vpop.permute.xlu0 %1858
  %1866 = vrot.lane.b32.xlu0 %v1610, 64
  %v1867 = vpop.permute.xlu0 %1866
  %1868 = vrot.lane.b32.xlu0 %v1615, 64
  %v1869 = vpop.permute.xlu0 %1868
  %1870 = vrot.lane.b32.xlu0 %v1620, 64
  %v1871 = vpop.permute.xlu0 %1870
  %1878 = vrot.lane.b32.xlu0 %v1778, 64
  %v1879 = vpop.permute.xlu0 %1878
  %1880 = vrot.lane.b32.xlu0 %v1783, 64
  %v1881 = vpop.permute.xlu0 %1880
  %1882 = vrot.lane.b32.xlu0 %v1788, 64
  %v1883 = vpop.permute.xlu0 %1882
  %vm1887 = vcmask 523264
  %v1888 = vsel %vm1887, %v518, %v1795
  %v1889 = vsel %vm1887, %v523, %v1797
  %v1890 = vsel %vm1887, %v528, %v1799
  %v1891 = vsel %vm1887, %v686, %v1807
  %v1892 = vsel %vm1887, %v691, %v1809
  %v1893 = vsel %vm1887, %v696, %v1811
  %v1894 = vsel %vm1887, %v854, %v1819
  %v1895 = vsel %vm1887, %v859, %v1821
  %v1896 = vsel %vm1887, %v864, %v1823
  %v1897 = vsel %vm1887, %v1022, %v1831
  %v1898 = vsel %vm1887, %v1027, %v1833
  %v1899 = vsel %vm1887, %v1032, %v1835
  %v1900 = vsel %vm1887, %v1190, %v1843
  %v1901 = vsel %vm1887, %v1195, %v1845
  %v1902 = vsel %vm1887, %v1200, %v1847
  %v1903 = vsel %vm1887, %v1358, %v1855
  %v1904 = vsel %vm1887, %v1363, %v1857
  %v1905 = vsel %vm1887, %v1368, %v1859
  %v1906 = vsel %vm1887, %v1526, %v1867
  %v1907 = vsel %vm1887, %v1531, %v1869
  %v1908 = vsel %vm1887, %v1536, %v1871
  %v1909 = vsel %vm1887, %v1694, %v1879
  %v1910 = vsel %vm1887, %v1699, %v1881
  %v1911 = vsel %vm1887, %v1704, %v1883
  %v1912 = vld [vmem:[%s6] sm:$0xff]
  %v1913 = vld [vmem:[%s6 + $0x8] sm:$0xff]
  %v1914 = vld [vmem:[%s6 + $0x10] sm:$0xff]
  %v1915 = vld [vmem:[%s6 + $0x18] sm:$0xff]
  %v1916 = vld [vmem:[%s6 + $0x20] sm:$0xff]
  %v1917 = vld [vmem:[%s6 + $0x28] sm:$0xff]
  %v1918 = vld [vmem:[%s6 + $0x30] sm:$0xff]
  %v1919 = vld [vmem:[%s6 + $0x38] sm:$0xff]
  %v1920 = vld [vmem:[%s6 + $0x40] sm:$0xff]
  %v1921 = vld [vmem:[%s6 + $0x48] sm:$0xff]
  %v1922 = vld [vmem:[%s6 + $0x50] sm:$0xff]
  %v1923 = vld [vmem:[%s6 + $0x58] sm:$0xff]
  %v1924 = vld [vmem:[%s6 + $0x60] sm:$0xff]
  %v1925 = vld [vmem:[%s6 + $0x68] sm:$0xff]
  %v1926 = vld [vmem:[%s6 + $0x70] sm:$0xff]
  %v1927 = vld [vmem:[%s6 + $0x78] sm:$0xff]
  %v1928 = vld [vmem:[%s6 + $0x80] sm:$0xff]
  %v1929 = vld [vmem:[%s6 + $0x88] sm:$0xff]
  %v1930 = vld [vmem:[%s6 + $0x90] sm:$0xff]
  %v1931 = vld [vmem:[%s6 + $0x98] sm:$0xff]
  %v1932 = vld [vmem:[%s6 + $0xa0] sm:$0xff]
  %v1933 = vld [vmem:[%s6 + $0xa8] sm:$0xff]
  %v1934 = vld [vmem:[%s6 + $0xb0] sm:$0xff]
  %v1935 = vld [vmem:[%s6 + $0xb8] sm:$0xff]
  %v1936 = vld [vmem:[%s6 + $0xc0] sm:$0xff]
  %v1937 = vld [vmem:[%s6 + $0xc8] sm:$0xff]
  %v1938 = vld [vmem:[%s6 + $0xd0] sm:$0xff]
  %v1939 = vld [vmem:[%s6 + $0xd8] sm:$0xff]
  %v1940 = vld [vmem:[%s6 + $0xe0] sm:$0xff]
  %v1941 = vld [vmem:[%s6 + $0xe8] sm:$0xff]
  %v1942 = vld [vmem:[%s6 + $0xf0] sm:$0xff]
  %v1943 = vld [vmem:[%s6 + $0xf8] sm:$0xff]
  %v1944 = vld [vmem:[%s6 + $0x100] sm:$0xff]
  %v1945 = vld [vmem:[%s6 + $0x108] sm:$0xff]
  %v1946 = vld [vmem:[%s6 + $0x110] sm:$0xff]
  %v1947 = vld [vmem:[%s6 + $0x118] sm:$0xff]
  %v1948 = vld [vmem:[%s6 + $0x120] sm:$0xff]
  %v1949 = vld [vmem:[%s6 + $0x128] sm:$0xff]
  %v1950 = vld [vmem:[%s6 + $0x130] sm:$0xff]
  %v1951 = vld [vmem:[%s6 + $0x138] sm:$0xff]
  %v1952 = vld [vmem:[%s6 + $0x140] sm:$0xff]
  %v1953 = vld [vmem:[%s6 + $0x148] sm:$0xff]
  %v1954 = vld [vmem:[%s6 + $0x150] sm:$0xff]
  %v1955 = vld [vmem:[%s6 + $0x158] sm:$0xff]
  %v1956 = vld [vmem:[%s6 + $0x160] sm:$0xff]
  %v1957 = vld [vmem:[%s6 + $0x168] sm:$0xff]
  %v1958 = vld [vmem:[%s6 + $0x170] sm:$0xff]
  %v1959 = vld [vmem:[%s6 + $0x178] sm:$0xff]
  %v1960 = vld [vmem:[%s6 + $0x180] sm:$0xff]
  %v1961 = vld [vmem:[%s6 + $0x188] sm:$0xff]
  %v1962 = vld [vmem:[%s6 + $0x190] sm:$0xff]
  %v1963 = vld [vmem:[%s6 + $0x198] sm:$0xff]
  %v1964 = vld [vmem:[%s6 + $0x1a0] sm:$0xff]
  %v1965 = vld [vmem:[%s6 + $0x1a8] sm:$0xff]
  %v1966 = vld [vmem:[%s6 + $0x1b0] sm:$0xff]
  %v1967 = vld [vmem:[%s6 + $0x1b8] sm:$0xff]
  %v1968 = vld [vmem:[%s6 + $0x1c0] sm:$0xff]
  %v1969 = vld [vmem:[%s6 + $0x1c8] sm:$0xff]
  %v1970 = vld [vmem:[%s6 + $0x1d0] sm:$0xff]
  %v1971 = vld [vmem:[%s6 + $0x1d8] sm:$0xff]
  %v1972 = vld [vmem:[%s6 + $0x1e0] sm:$0xff]
  %v1973 = vld [vmem:[%s6 + $0x1e8] sm:$0xff]
  %v1974 = vld [vmem:[%s6 + $0x1f0] sm:$0xff]
  %v1975 = vld [vmem:[%s6 + $0x1f8] sm:$0xff]
  %v1976 = vld [vmem:[%s6 + $0x200] sm:$0xff]
  %v1977 = vld [vmem:[%s6 + $0x208] sm:$0xff]
  %v1978 = vld [vmem:[%s6 + $0x210] sm:$0xff]
  %v1979 = vld [vmem:[%s6 + $0x218] sm:$0xff]
  %v1980 = vld [vmem:[%s6 + $0x220] sm:$0xff]
  %v1981 = vld [vmem:[%s6 + $0x228] sm:$0xff]
  %v1982 = vld [vmem:[%s6 + $0x230] sm:$0xff]
  %v1983 = vld [vmem:[%s6 + $0x238] sm:$0xff]
  %v1984 = vld [vmem:[%s6 + $0x240] sm:$0xff]
  %v1985 = vld [vmem:[%s6 + $0x248] sm:$0xff]
  %v1986 = vld [vmem:[%s6 + $0x250] sm:$0xff]
  %v1987 = vld [vmem:[%s6 + $0x258] sm:$0xff]
  %v1988 = vld [vmem:[%s6 + $0x260] sm:$0xff]
  %v1989 = vld [vmem:[%s6 + $0x268] sm:$0xff]
  %v1990 = vld [vmem:[%s6 + $0x270] sm:$0xff]
  %v1991 = vld [vmem:[%s6 + $0x278] sm:$0xff]
  %v1992 = vld [vmem:[%s6 + $0x280] sm:$0xff]
  %v1993 = vld [vmem:[%s6 + $0x288] sm:$0xff]
  %v1994 = vld [vmem:[%s6 + $0x290] sm:$0xff]
  %v1995 = vld [vmem:[%s6 + $0x298] sm:$0xff]
  %v1996 = vld [vmem:[%s6 + $0x2a0] sm:$0xff]
  %v1997 = vld [vmem:[%s6 + $0x2a8] sm:$0xff]
  %v1998 = vld [vmem:[%s6 + $0x2b0] sm:$0xff]
  %v1999 = vld [vmem:[%s6 + $0x2b8] sm:$0xff]
  %v2000 = vld [vmem:[%s6 + $0x2c0] sm:$0xff]
  %v2001 = vld [vmem:[%s6 + $0x2c8] sm:$0xff]
  %v2002 = vld [vmem:[%s6 + $0x2d0] sm:$0xff]
  %v2003 = vld [vmem:[%s6 + $0x2d8] sm:$0xff]
  %v2004 = vld [vmem:[%s6 + $0x2e0] sm:$0xff]
  %v2005 = vld [vmem:[%s6 + $0x2e8] sm:$0xff]
  %v2006 = vld [vmem:[%s6 + $0x2f0] sm:$0xff]
  %v2007 = vld [vmem:[%s6 + $0x2f8] sm:$0xff]
  %v2008 = vld [vmem:[%s6 + $0x300] sm:$0xff]
  %v2009 = vld [vmem:[%s6 + $0x308] sm:$0xff]
  %v2010 = vld [vmem:[%s6 + $0x310] sm:$0xff]
  %v2011 = vld [vmem:[%s6 + $0x318] sm:$0xff]
  %v2012 = vld [vmem:[%s6 + $0x320] sm:$0xff]
  %v2013 = vld [vmem:[%s6 + $0x328] sm:$0xff]
  %v2014 = vld [vmem:[%s6 + $0x330] sm:$0xff]
  %v2015 = vld [vmem:[%s6 + $0x338] sm:$0xff]
  %v2016 = vld [vmem:[%s6 + $0x340] sm:$0xff]
  %v2017 = vld [vmem:[%s6 + $0x348] sm:$0xff]
  %v2018 = vld [vmem:[%s6 + $0x350] sm:$0xff]
  %v2019 = vld [vmem:[%s6 + $0x358] sm:$0xff]
  %v2020 = vld [vmem:[%s6 + $0x360] sm:$0xff]
  %v2021 = vld [vmem:[%s6 + $0x368] sm:$0xff]
  %v2022 = vld [vmem:[%s6 + $0x370] sm:$0xff]
  %v2023 = vld [vmem:[%s6 + $0x378] sm:$0xff]
  %v2024 = vld [vmem:[%s6 + $0x380] sm:$0xff]
  %v2025 = vld [vmem:[%s6 + $0x388] sm:$0xff]
  %v2026 = vld [vmem:[%s6 + $0x390] sm:$0xff]
  %v2027 = vld [vmem:[%s6 + $0x398] sm:$0xff]
  %v2028 = vld [vmem:[%s6 + $0x3a0] sm:$0xff]
  %v2029 = vld [vmem:[%s6 + $0x3a8] sm:$0xff]
  %v2030 = vld [vmem:[%s6 + $0x3b0] sm:$0xff]
  %v2031 = vld [vmem:[%s6 + $0x3b8] sm:$0xff]
  %v2032 = vld [vmem:[%s6 + $0x3c0] sm:$0xff]
  %v2033 = vld [vmem:[%s6 + $0x3c8] sm:$0xff]
  %v2034 = vld [vmem:[%s6 + $0x3d0] sm:$0xff]
  %v2035 = vld [vmem:[%s6 + $0x3d8] sm:$0xff]
  %v2036 = vld [vmem:[%s6 + $0x3e0] sm:$0xff]
  %v2037 = vld [vmem:[%s6 + $0x3e8] sm:$0xff]
  %v2038 = vld [vmem:[%s6 + $0x3f0] sm:$0xff]
  %v2039 = vld [vmem:[%s6 + $0x3f8] sm:$0xff]
  %v2040 = vld [vmem:[%s7] sm:$0x1]
  %v2042 = vlaneseq
  %v2043 = vshrl.u32 %v2042, 7
  %v2044 = vsub.s32 0, %v2043
  %v2045 = vrot.slane %v2040, %v2044
  %2047 = vmatprep.subr.mxu0 0.0
  %2048 = vmatpush1.msra.mxu0 %v1927
  %2049 = vmatprep.subr.mxu0 0.0
  %2050 = vmatpush1.msra.mxu0 %v1926
  %2051 = vmatprep.subr.mxu0 0.0
  %2052 = vmatpush1.msra.mxu0 %v1925
  %2053 = vmatprep.subr.mxu0 0.0
  %2054 = vmatpush1.msra.mxu0 %v1924
  %2055 = vmatprep.subr.mxu0 0.0
  %2056 = vmatpush1.msra.mxu0 %v1923
  %2057 = vmatprep.subr.mxu0 0.0
  %2058 = vmatpush1.msra.mxu0 %v1922
  %2059 = vmatprep.subr.mxu0 0.0
  %2060 = vmatpush1.msra.mxu0 %v1921
  %2061 = vmatprep.subr.mxu0 0.0
  %2062 = vmatpush1.msra.mxu0 %v1920
  %2063 = vmatprep.subr.mxu0 0.0
  %2064 = vmatpush1.msra.mxu0 %v1919
  %2065 = vmatprep.subr.mxu0 0.0
  %2066 = vmatpush1.msra.mxu0 %v1918
  %2067 = vmatprep.subr.mxu0 0.0
  %2068 = vmatpush1.msra.mxu0 %v1917
  %2069 = vmatprep.subr.mxu0 0.0
  %2070 = vmatpush1.msra.mxu0 %v1916
  %2071 = vmatprep.subr.mxu0 0.0
  %2072 = vmatpush1.msra.mxu0 %v1915
  %2073 = vmatprep.subr.mxu0 0.0
  %2074 = vmatpush1.msra.mxu0 %v1914
  %2075 = vmatprep.subr.mxu0 0.0
  %2076 = vmatpush1.msra.mxu0 %v1913
  %2077 = vmatprep.subr.mxu0 0.0
  %2078 = vmatpush1.msra.mxu0 %v1912
  %2079 = vmatprep.subr.mxu0 0.0
  %2080 = vmatpush2.msra.mxu0 %v1943
  %2081 = vmatprep.subr.mxu0 0.0
  %2082 = vmatpush2.msra.mxu0 %v1942
  %2083 = vmatprep.subr.mxu0 0.0
  %2084 = vmatpush2.msra.mxu0 %v1941
  %2085 = vmatprep.subr.mxu0 0.0
  %2086 = vmatpush2.msra.mxu0 %v1940
  %2087 = vmatprep.subr.mxu0 0.0
  %2088 = vmatpush2.msra.mxu0 %v1939
  %2089 = vmatprep.subr.mxu0 0.0
  %2090 = vmatpush2.msra.mxu0 %v1938
  %2091 = vmatprep.subr.mxu0 0.0
  %2092 = vmatpush2.msra.mxu0 %v1937
  %2093 = vmatprep.subr.mxu0 0.0
  %2094 = vmatpush2.msra.mxu0 %v1936
  %2095 = vmatprep.subr.mxu0 0.0
  %2096 = vmatpush2.msra.mxu0 %v1935
  %2097 = vmatprep.subr.mxu0 0.0
  %2098 = vmatpush2.msra.mxu0 %v1934
  %2099 = vmatprep.subr.mxu0 0.0
  %2100 = vmatpush2.msra.mxu0 %v1933
  %2101 = vmatprep.subr.mxu0 0.0
  %2102 = vmatpush2.msra.mxu0 %v1932
  %2103 = vmatprep.subr.mxu0 0.0
  %2104 = vmatpush2.msra.mxu0 %v1931
  %2105 = vmatprep.subr.mxu0 0.0
  %2106 = vmatpush2.msra.mxu0 %v1930
  %2107 = vmatprep.subr.mxu0 0.0
  %2108 = vmatpush2.msra.mxu0 %v1929
  %2109 = vmatprep.subr.mxu0 0.0
  %2110 = vmatpush2.msra.mxu0 %v1928
  %2111 = vmatprep.mubr.f32.mxu0 %v1891
  %2112 = vmatmul.mubr.f32.gmra.mxu0 %v1888
  %v2113 = vpop.f32.mrf.mxu0
  %v2114 = vadd.f32 %v2045, %v2113
  %v2115 = vpop.f32.mrf.mxu0
  %2116 = vmatprep.mubr.f32.mxu0 %v1892
  %2117 = vmatmul.mubr.f32.gmra.mxu0 %v1889
  %v2118 = vpop.f32.mrf.mxu0
  %v2119 = vadd.f32 %v2045, %v2118
  %v2120 = vpop.f32.mrf.mxu0
  %2121 = vmatprep.mubr.f32.mxu0 %v1893
  %2122 = vmatmul.mubr.f32.gmra.mxu0 %v1890
  %v2123 = vpop.f32.mrf.mxu0
  %v2124 = vadd.f32 %v2045, %v2123
  %v2125 = vpop.f32.mrf.mxu0
  %2126 = vdwg.mxu0
  %2127 = vmatprep.subr.mxu0 0.0
  %2128 = vmatpush1.msra.mxu0 %v1959
  %2129 = vmatprep.subr.mxu0 0.0
  %2130 = vmatpush1.msra.mxu0 %v1958
  %2131 = vmatprep.subr.mxu0 0.0
  %2132 = vmatpush1.msra.mxu0 %v1957
  %2133 = vmatprep.subr.mxu0 0.0
  %2134 = vmatpush1.msra.mxu0 %v1956
  %2135 = vmatprep.subr.mxu0 0.0
  %2136 = vmatpush1.msra.mxu0 %v1955
  %2137 = vmatprep.subr.mxu0 0.0
  %2138 = vmatpush1.msra.mxu0 %v1954
  %2139 = vmatprep.subr.mxu0 0.0
  %2140 = vmatpush1.msra.mxu0 %v1953
  %2141 = vmatprep.subr.mxu0 0.0
  %2142 = vmatpush1.msra.mxu0 %v1952
  %2143 = vmatprep.subr.mxu0 0.0
  %2144 = vmatpush1.msra.mxu0 %v1951
  %2145 = vmatprep.subr.mxu0 0.0
  %2146 = vmatpush1.msra.mxu0 %v1950
  %2147 = vmatprep.subr.mxu0 0.0
  %2148 = vmatpush1.msra.mxu0 %v1949
  %2149 = vmatprep.subr.mxu0 0.0
  %2150 = vmatpush1.msra.mxu0 %v1948
  %2151 = vmatprep.subr.mxu0 0.0
  %2152 = vmatpush1.msra.mxu0 %v1947
  %2153 = vmatprep.subr.mxu0 0.0
  %2154 = vmatpush1.msra.mxu0 %v1946
  %2155 = vmatprep.subr.mxu0 0.0
  %2156 = vmatpush1.msra.mxu0 %v1945
  %2157 = vmatprep.subr.mxu0 0.0
  %2158 = vmatpush1.msra.mxu0 %v1944
  %2159 = vmatprep.subr.mxu0 0.0
  %2160 = vmatpush2.msra.mxu0 %v1975
  %2161 = vmatprep.subr.mxu0 0.0
  %2162 = vmatpush2.msra.mxu0 %v1974
  %2163 = vmatprep.subr.mxu0 0.0
  %2164 = vmatpush2.msra.mxu0 %v1973
  %2165 = vmatprep.subr.mxu0 0.0
  %2166 = vmatpush2.msra.mxu0 %v1972
  %2167 = vmatprep.subr.mxu0 0.0
  %2168 = vmatpush2.msra.mxu0 %v1971
  %2169 = vmatprep.subr.mxu0 0.0
  %2170 = vmatpush2.msra.mxu0 %v1970
  %2171 = vmatprep.subr.mxu0 0.0
  %2172 = vmatpush2.msra.mxu0 %v1969
  %2173 = vmatprep.subr.mxu0 0.0
  %2174 = vmatpush2.msra.mxu0 %v1968
  %2175 = vmatprep.subr.mxu0 0.0
  %2176 = vmatpush2.msra.mxu0 %v1967
  %2177 = vmatprep.subr.mxu0 0.0
  %2178 = vmatpush2.msra.mxu0 %v1966
  %2179 = vmatprep.subr.mxu0 0.0
  %2180 = vmatpush2.msra.mxu0 %v1965
  %2181 = vmatprep.subr.mxu0 0.0
  %2182 = vmatpush2.msra.mxu0 %v1964
  %2183 = vmatprep.subr.mxu0 0.0
  %2184 = vmatpush2.msra.mxu0 %v1963
  %2185 = vmatprep.subr.mxu0 0.0
  %2186 = vmatpush2.msra.mxu0 %v1962
  %2187 = vmatprep.subr.mxu0 0.0
  %2188 = vmatpush2.msra.mxu0 %v1961
  %2189 = vmatprep.subr.mxu0 0.0
  %2190 = vmatpush2.msra.mxu0 %v1960
  %2191 = vmatprep.mubr.f32.mxu0 %v1897
  %2192 = vmatmul.mubr.f32.gmra.mxu0 %v1894
  %v2193 = vpop.f32.mrf.mxu0
  %v2194 = vadd.f32 %v2114, %v2193
  %v2195 = vpop.f32.mrf.mxu0
  %2196 = vmatprep.mubr.f32.mxu0 %v1898
  %2197 = vmatmul.mubr.f32.gmra.mxu0 %v1895
  %v2198 = vpop.f32.mrf.mxu0
  %v2199 = vadd.f32 %v2119, %v2198
  %v2200 = vpop.f32.mrf.mxu0
  %2201 = vmatprep.mubr.f32.mxu0 %v1899
  %2202 = vmatmul.mubr.f32.gmra.mxu0 %v1896
  %v2203 = vpop.f32.mrf.mxu0
  %v2204 = vadd.f32 %v2124, %v2203
  %v2205 = vpop.f32.mrf.mxu0
  %2206 = vdwg.mxu0
  %2207 = vmatprep.subr.mxu0 0.0
  %2208 = vmatpush1.msra.mxu0 %v1991
  %2209 = vmatprep.subr.mxu0 0.0
  %2210 = vmatpush1.msra.mxu0 %v1990
  %2211 = vmatprep.subr.mxu0 0.0
  %2212 = vmatpush1.msra.mxu0 %v1989
  %2213 = vmatprep.subr.mxu0 0.0
  %2214 = vmatpush1.msra.mxu0 %v1988
  %2215 = vmatprep.subr.mxu0 0.0
  %2216 = vmatpush1.msra.mxu0 %v1987
  %2217 = vmatprep.subr.mxu0 0.0
  %2218 = vmatpush1.msra.mxu0 %v1986
  %2219 = vmatprep.subr.mxu0 0.0
  %2220 = vmatpush1.msra.mxu0 %v1985
  %2221 = vmatprep.subr.mxu0 0.0
  %2222 = vmatpush1.msra.mxu0 %v1984
  %2223 = vmatprep.subr.mxu0 0.0
  %2224 = vmatpush1.msra.mxu0 %v1983
  %2225 = vmatprep.subr.mxu0 0.0
  %2226 = vmatpush1.msra.mxu0 %v1982
  %2227 = vmatprep.subr.mxu0 0.0
  %2228 = vmatpush1.msra.mxu0 %v1981
  %2229 = vmatprep.subr.mxu0 0.0
  %2230 = vmatpush1.msra.mxu0 %v1980
  %2231 = vmatprep.subr.mxu0 0.0
  %2232 = vmatpush1.msra.mxu0 %v1979
  %2233 = vmatprep.subr.mxu0 0.0
  %2234 = vmatpush1.msra.mxu0 %v1978
  %2235 = vmatprep.subr.mxu0 0.0
  %2236 = vmatpush1.msra.mxu0 %v1977
  %2237 = vmatprep.subr.mxu0 0.0
  %2238 = vmatpush1.msra.mxu0 %v1976
  %2239 = vmatprep.subr.mxu0 0.0
  %2240 = vmatpush2.msra.mxu0 %v2007
  %2241 = vmatprep.subr.mxu0 0.0
  %2242 = vmatpush2.msra.mxu0 %v2006
  %2243 = vmatprep.subr.mxu0 0.0
  %2244 = vmatpush2.msra.mxu0 %v2005
  %2245 = vmatprep.subr.mxu0 0.0
  %2246 = vmatpush2.msra.mxu0 %v2004
  %2247 = vmatprep.subr.mxu0 0.0
  %2248 = vmatpush2.msra.mxu0 %v2003
  %2249 = vmatprep.subr.mxu0 0.0
  %2250 = vmatpush2.msra.mxu0 %v2002
  %2251 = vmatprep.subr.mxu0 0.0
  %2252 = vmatpush2.msra.mxu0 %v2001
  %2253 = vmatprep.subr.mxu0 0.0
  %2254 = vmatpush2.msra.mxu0 %v2000
  %2255 = vmatprep.subr.mxu0 0.0
  %2256 = vmatpush2.msra.mxu0 %v1999
  %2257 = vmatprep.subr.mxu0 0.0
  %2258 = vmatpush2.msra.mxu0 %v1998
  %2259 = vmatprep.subr.mxu0 0.0
  %2260 = vmatpush2.msra.mxu0 %v1997
  %2261 = vmatprep.subr.mxu0 0.0
  %2262 = vmatpush2.msra.mxu0 %v1996
  %2263 = vmatprep.subr.mxu0 0.0
  %2264 = vmatpush2.msra.mxu0 %v1995
  %2265 = vmatprep.subr.mxu0 0.0
  %2266 = vmatpush2.msra.mxu0 %v1994
  %2267 = vmatprep.subr.mxu0 0.0
  %2268 = vmatpush2.msra.mxu0 %v1993
  %2269 = vmatprep.subr.mxu0 0.0
  %2270 = vmatpush2.msra.mxu0 %v1992
  %2271 = vmatprep.mubr.f32.mxu0 %v1903
  %2272 = vmatmul.mubr.f32.gmra.mxu0 %v1900
  %v2273 = vpop.f32.mrf.mxu0
  %v2274 = vadd.f32 %v2194, %v2273
  %v2275 = vpop.f32.mrf.mxu0
  %2276 = vmatprep.mubr.f32.mxu0 %v1904
  %2277 = vmatmul.mubr.f32.gmra.mxu0 %v1901
  %v2278 = vpop.f32.mrf.mxu0
  %v2279 = vadd.f32 %v2199, %v2278
  %v2280 = vpop.f32.mrf.mxu0
  %2281 = vmatprep.mubr.f32.mxu0 %v1905
  %2282 = vmatmul.mubr.f32.gmra.mxu0 %v1902
  %v2283 = vpop.f32.mrf.mxu0
  %v2284 = vadd.f32 %v2204, %v2283
  %v2285 = vpop.f32.mrf.mxu0
  %2286 = vdwg.mxu0
  %2287 = vmatprep.subr.mxu0 0.0
  %2288 = vmatpush1.msra.mxu0 %v2023
  %2289 = vmatprep.subr.mxu0 0.0
  %2290 = vmatpush1.msra.mxu0 %v2022
  %2291 = vmatprep.subr.mxu0 0.0
  %2292 = vmatpush1.msra.mxu0 %v2021
  %2293 = vmatprep.subr.mxu0 0.0
  %2294 = vmatpush1.msra.mxu0 %v2020
  %2295 = vmatprep.subr.mxu0 0.0
  %2296 = vmatpush1.msra.mxu0 %v2019
  %2297 = vmatprep.subr.mxu0 0.0
  %2298 = vmatpush1.msra.mxu0 %v2018
  %2299 = vmatprep.subr.mxu0 0.0
  %2300 = vmatpush1.msra.mxu0 %v2017
  %2301 = vmatprep.subr.mxu0 0.0
  %2302 = vmatpush1.msra.mxu0 %v2016
  %2303 = vmatprep.subr.mxu0 0.0
  %2304 = vmatpush1.msra.mxu0 %v2015
  %2305 = vmatprep.subr.mxu0 0.0
  %2306 = vmatpush1.msra.mxu0 %v2014
  %2307 = vmatprep.subr.mxu0 0.0
  %2308 = vmatpush1.msra.mxu0 %v2013
  %2309 = vmatprep.subr.mxu0 0.0
  %2310 = vmatpush1.msra.mxu0 %v2012
  %2311 = vmatprep.subr.mxu0 0.0
  %2312 = vmatpush1.msra.mxu0 %v2011
  %2313 = vmatprep.subr.mxu0 0.0
  %2314 = vmatpush1.msra.mxu0 %v2010
  %2315 = vmatprep.subr.mxu0 0.0
  %2316 = vmatpush1.msra.mxu0 %v2009
  %2317 = vmatprep.subr.mxu0 0.0
  %2318 = vmatpush1.msra.mxu0 %v2008
  %2319 = vmatprep.subr.mxu0 0.0
  %2320 = vmatpush2.msra.mxu0 %v2039
  %2321 = vmatprep.subr.mxu0 0.0
  %2322 = vmatpush2.msra.mxu0 %v2038
  %2323 = vmatprep.subr.mxu0 0.0
  %2324 = vmatpush2.msra.mxu0 %v2037
  %2325 = vmatprep.subr.mxu0 0.0
  %2326 = vmatpush2.msra.mxu0 %v2036
  %2327 = vmatprep.subr.mxu0 0.0
  %2328 = vmatpush2.msra.mxu0 %v2035
  %2329 = vmatprep.subr.mxu0 0.0
  %2330 = vmatpush2.msra.mxu0 %v2034
  %2331 = vmatprep.subr.mxu0 0.0
  %2332 = vmatpush2.msra.mxu0 %v2033
  %2333 = vmatprep.subr.mxu0 0.0
  %2334 = vmatpush2.msra.mxu0 %v2032
  %2335 = vmatprep.subr.mxu0 0.0
  %2336 = vmatpush2.msra.mxu0 %v2031
  %2337 = vmatprep.subr.mxu0 0.0
  %2338 = vmatpush2.msra.mxu0 %v2030
  %2339 = vmatprep.subr.mxu0 0.0
  %2340 = vmatpush2.msra.mxu0 %v2029
  %2341 = vmatprep.subr.mxu0 0.0
  %2342 = vmatpush2.msra.mxu0 %v2028
  %2343 = vmatprep.subr.mxu0 0.0
  %2344 = vmatpush2.msra.mxu0 %v2027
  %2345 = vmatprep.subr.mxu0 0.0
  %2346 = vmatpush2.msra.mxu0 %v2026
  %2347 = vmatprep.subr.mxu0 0.0
  %2348 = vmatpush2.msra.mxu0 %v2025
  %2349 = vmatprep.subr.mxu0 0.0
  %2350 = vmatpush2.msra.mxu0 %v2024
  %2351 = vmatprep.mubr.f32.mxu0 %v1909
  %2352 = vmatmul.mubr.f32.gmra.mxu0 %v1906
  %v2353 = vpop.f32.mrf.mxu0
  %v2354 = vadd.f32 %v2274, %v2353
  %v2355 = vpop.f32.mrf.mxu0
  %2356 = vmatprep.mubr.f32.mxu0 %v1910
  %2357 = vmatmul.mubr.f32.gmra.mxu0 %v1907
  %v2358 = vpop.f32.mrf.mxu0
  %v2359 = vadd.f32 %v2279, %v2358
  %v2360 = vpop.f32.mrf.mxu0
  %2361 = vmatprep.mubr.f32.mxu0 %v1911
  %2362 = vmatmul.mubr.f32.gmra.mxu0 %v1908
  %v2363 = vpop.f32.mrf.mxu0
  %v2364 = vadd.f32 %v2284, %v2363
  %v2365 = vpop.f32.mrf.mxu0
  %2366 = vdwg.mxu0
  %v2367 = vmax.f32 %v2354, 0.0
  %v2368 = vmax.f32 %v2359, 0.0
  %v2369 = vmax.f32 %v2364, 0.0
  %v2370 = vld [vmem:[%s8] sm:$0xff]
  %vm2371 = vcmask 195584
  %v2373 = vsel %vm2371, %v2370, 0
  %2375 = vmatprep.subr.mxu0 0.0
  %2376 = vmatpush1.msra.mxu0 0.0
  %2377 = vmatprep.subr.mxu0 0.0
  %2378 = vmatpush1.msra.mxu0 0.0
  %2379 = vmatprep.subr.mxu0 0.0
  %2380 = vmatpush1.msra.mxu0 0.0
  %2381 = vmatprep.subr.mxu0 0.0
  %2382 = vmatpush1.msra.mxu0 0.0
  %2383 = vmatprep.subr.mxu0 0.0
  %2384 = vmatpush1.msra.mxu0 0.0
  %2385 = vmatprep.subr.mxu0 0.0
  %2386 = vmatpush1.msra.mxu0 0.0
  %2387 = vmatprep.subr.mxu0 0.0
  %2388 = vmatpush1.msra.mxu0 0.0
  %2389 = vmatprep.subr.mxu0 0.0
  %2390 = vmatpush1.msra.mxu0 0.0
  %2391 = vmatprep.subr.mxu0 0.0
  %2392 = vmatpush1.msra.mxu0 0.0
  %2393 = vmatprep.subr.mxu0 0.0
  %2394 = vmatpush1.msra.mxu0 0.0
  %2395 = vmatprep.subr.mxu0 0.0
  %2396 = vmatpush1.msra.mxu0 0.0
  %2397 = vmatprep.subr.mxu0 0.0
  %2398 = vmatpush1.msra.mxu0 0.0
  %2399 = vmatprep.subr.mxu0 0.0
  %2400 = vmatpush1.msra.mxu0 0.0
  %2401 = vmatprep.subr.mxu0 0.0
  %2402 = vmatpush1.msra.mxu0 %v2369
  %2403 = vmatprep.subr.mxu0 0.0
  %2404 = vmatpush1.msra.mxu0 %v2368
  %2405 = vmatprep.subr.mxu0 0.0
  %2406 = vmatpush1.msra.mxu0 %v2367
  %2407 = vmatprep.subr.mxu0 0.0
  %2408 = vmatpush2.msra.mxu0 0.0
  %2409 = vmatprep.subr.mxu0 0.0
  %2410 = vmatpush2.msra.mxu0 0.0
  %2411 = vmatprep.subr.mxu0 0.0
  %2412 = vmatpush2.msra.mxu0 0.0
  %2413 = vmatprep.subr.mxu0 0.0
  %2414 = vmatpush2.msra.mxu0 0.0
  %2415 = vmatprep.subr.mxu0 0.0
  %2416 = vmatpush2.msra.mxu0 0.0
  %2417 = vmatprep.subr.mxu0 0.0
  %2418 = vmatpush2.msra.mxu0 0.0
  %2419 = vmatprep.subr.mxu0 0.0
  %2420 = vmatpush2.msra.mxu0 0.0
  %2421 = vmatprep.subr.mxu0 0.0
  %2422 = vmatpush2.msra.mxu0 0.0
  %2423 = vmatprep.subr.mxu0 0.0
  %2424 = vmatpush2.msra.mxu0 0.0
  %2425 = vmatprep.subr.mxu0 0.0
  %2426 = vmatpush2.msra.mxu0 0.0
  %2427 = vmatprep.subr.mxu0 0.0
  %2428 = vmatpush2.msra.mxu0 0.0
  %2429 = vmatprep.subr.mxu0 0.0
  %2430 = vmatpush2.msra.mxu0 0.0
  %2431 = vmatprep.subr.mxu0 0.0
  %2432 = vmatpush2.msra.mxu0 0.0
  %2433 = vmatprep.subr.mxu0 0.0
  %2434 = vmatpush2.msra.mxu0 0.0
  %2435 = vmatprep.subr.mxu0 0.0
  %2436 = vmatpush2.msra.mxu0 0.0
  %2437 = vmatprep.subr.mxu0 0.0
  %2438 = vmatpush2.msra.mxu0 0.0
  %2439 = vmatprep.mubr.f32.mxu0 0.0
  %2440 = vmatmul.mubr.f32.gmra.mxu0 %v2373
  %v2441 = vpop.f32.mrf.mxu0
  %v2442 = vadd.f32 0.0, %v2441
  %v2443 = vpop.f32.mrf.mxu0
  %2444 = vdwg.mxu0
  %s2445 = scalar_lea.vmem %s8, 8
  %v2446 = vld [vmem:[%s2445] sm:$0xff]
  %v2448 = vsel %vm2371, %v2446, 0
  %2450 = vmatprep.subr.mxu0 0.0
  %2451 = vmatpush1.msra.mxu0 0.0
  %2452 = vmatprep.subr.mxu0 0.0
  %2453 = vmatpush1.msra.mxu0 0.0
  %2454 = vmatprep.subr.mxu0 0.0
  %2455 = vmatpush1.msra.mxu0 0.0
  %2456 = vmatprep.subr.mxu0 0.0
  %2457 = vmatpush1.msra.mxu0 0.0
  %2458 = vmatprep.subr.mxu0 0.0
  %2459 = vmatpush1.msra.mxu0 0.0
  %2460 = vmatprep.subr.mxu0 0.0
  %2461 = vmatpush1.msra.mxu0 0.0
  %2462 = vmatprep.subr.mxu0 0.0
  %2463 = vmatpush1.msra.mxu0 0.0
  %2464 = vmatprep.subr.mxu0 0.0
  %2465 = vmatpush1.msra.mxu0 0.0
  %2466 = vmatprep.subr.mxu0 0.0
  %2467 = vmatpush1.msra.mxu0 0.0
  %2468 = vmatprep.subr.mxu0 0.0
  %2469 = vmatpush1.msra.mxu0 0.0
  %2470 = vmatprep.subr.mxu0 0.0
  %2471 = vmatpush1.msra.mxu0 0.0
  %2472 = vmatprep.subr.mxu0 0.0
  %2473 = vmatpush1.msra.mxu0 0.0
  %2474 = vmatprep.subr.mxu0 0.0
  %2475 = vmatpush1.msra.mxu0 0.0
  %2476 = vmatprep.subr.mxu0 0.0
  %2477 = vmatpush1.msra.mxu0 %v2369
  %2478 = vmatprep.subr.mxu0 0.0
  %2479 = vmatpush1.msra.mxu0 %v2368
  %2480 = vmatprep.subr.mxu0 0.0
  %2481 = vmatpush1.msra.mxu0 %v2367
  %2482 = vmatprep.subr.mxu0 0.0
  %2483 = vmatpush2.msra.mxu0 0.0
  %2484 = vmatprep.subr.mxu0 0.0
  %2485 = vmatpush2.msra.mxu0 0.0
  %2486 = vmatprep.subr.mxu0 0.0
  %2487 = vmatpush2.msra.mxu0 0.0
  %2488 = vmatprep.subr.mxu0 0.0
  %2489 = vmatpush2.msra.mxu0 0.0
  %2490 = vmatprep.subr.mxu0 0.0
  %2491 = vmatpush2.msra.mxu0 0.0
  %2492 = vmatprep.subr.mxu0 0.0
  %2493 = vmatpush2.msra.mxu0 0.0
  %2494 = vmatprep.subr.mxu0 0.0
  %2495 = vmatpush2.msra.mxu0 0.0
  %2496 = vmatprep.subr.mxu0 0.0
  %2497 = vmatpush2.msra.mxu0 0.0
  %2498 = vmatprep.subr.mxu0 0.0
  %2499 = vmatpush2.msra.mxu0 0.0
  %2500 = vmatprep.subr.mxu0 0.0
  %2501 = vmatpush2.msra.mxu0 0.0
  %2502 = vmatprep.subr.mxu0 0.0
  %2503 = vmatpush2.msra.mxu0 0.0
  %2504 = vmatprep.subr.mxu0 0.0
  %2505 = vmatpush2.msra.mxu0 0.0
  %2506 = vmatprep.subr.mxu0 0.0
  %2507 = vmatpush2.msra.mxu0 0.0
  %2508 = vmatprep.subr.mxu0 0.0
  %2509 = vmatpush2.msra.mxu0 0.0
  %2510 = vmatprep.subr.mxu0 0.0
  %2511 = vmatpush2.msra.mxu0 0.0
  %2512 = vmatprep.subr.mxu0 0.0
  %2513 = vmatpush2.msra.mxu0 0.0
  %2514 = vmatprep.mubr.f32.mxu0 0.0
  %2515 = vmatmul.mubr.f32.gmra.mxu0 %v2448
  %v2516 = vpop.f32.mrf.mxu0
  %v2517 = vadd.f32 0.0, %v2516
  %v2518 = vpop.f32.mrf.mxu0
  %2519 = vdwg.mxu0
  %s2520 = scalar_lea.vmem %s8, 16
  %v2521 = vld [vmem:[%s2520] sm:$0xff]
  %v2523 = vsel %vm2371, %v2521, 0
  %2525 = vmatprep.subr.mxu0 0.0
  %2526 = vmatpush1.msra.mxu0 0.0
  %2527 = vmatprep.subr.mxu0 0.0
  %2528 = vmatpush1.msra.mxu0 0.0
  %2529 = vmatprep.subr.mxu0 0.0
  %2530 = vmatpush1.msra.mxu0 0.0
  %2531 = vmatprep.subr.mxu0 0.0
  %2532 = vmatpush1.msra.mxu0 0.0
  %2533 = vmatprep.subr.mxu0 0.0
  %2534 = vmatpush1.msra.mxu0 0.0
  %2535 = vmatprep.subr.mxu0 0.0
  %2536 = vmatpush1.msra.mxu0 0.0
  %2537 = vmatprep.subr.mxu0 0.0
  %2538 = vmatpush1.msra.mxu0 0.0
  %2539 = vmatprep.subr.mxu0 0.0
  %2540 = vmatpush1.msra.mxu0 0.0
  %2541 = vmatprep.subr.mxu0 0.0
  %2542 = vmatpush1.msra.mxu0 0.0
  %2543 = vmatprep.subr.mxu0 0.0
  %2544 = vmatpush1.msra.mxu0 0.0
  %2545 = vmatprep.subr.mxu0 0.0
  %2546 = vmatpush1.msra.mxu0 0.0
  %2547 = vmatprep.subr.mxu0 0.0
  %2548 = vmatpush1.msra.mxu0 0.0
  %2549 = vmatprep.subr.mxu0 0.0
  %2550 = vmatpush1.msra.mxu0 0.0
  %2551 = vmatprep.subr.mxu0 0.0
  %2552 = vmatpush1.msra.mxu0 %v2369
  %2553 = vmatprep.subr.mxu0 0.0
  %2554 = vmatpush1.msra.mxu0 %v2368
  %2555 = vmatprep.subr.mxu0 0.0
  %2556 = vmatpush1.msra.mxu0 %v2367
  %2557 = vmatprep.subr.mxu0 0.0
  %2558 = vmatpush2.msra.mxu0 0.0
  %2559 = vmatprep.subr.mxu0 0.0
  %2560 = vmatpush2.msra.mxu0 0.0
  %2561 = vmatprep.subr.mxu0 0.0
  %2562 = vmatpush2.msra.mxu0 0.0
  %2563 = vmatprep.subr.mxu0 0.0
  %2564 = vmatpush2.msra.mxu0 0.0
  %2565 = vmatprep.subr.mxu0 0.0
  %2566 = vmatpush2.msra.mxu0 0.0
  %2567 = vmatprep.subr.mxu0 0.0
  %2568 = vmatpush2.msra.mxu0 0.0
  %2569 = vmatprep.subr.mxu0 0.0
  %2570 = vmatpush2.msra.mxu0 0.0
  %2571 = vmatprep.subr.mxu0 0.0
  %2572 = vmatpush2.msra.mxu0 0.0
  %2573 = vmatprep.subr.mxu0 0.0
  %2574 = vmatpush2.msra.mxu0 0.0
  %2575 = vmatprep.subr.mxu0 0.0
  %2576 = vmatpush2.msra.mxu0 0.0
  %2577 = vmatprep.subr.mxu0 0.0
  %2578 = vmatpush2.msra.mxu0 0.0
  %2579 = vmatprep.subr.mxu0 0.0
  %2580 = vmatpush2.msra.mxu0 0.0
  %2581 = vmatprep.subr.mxu0 0.0
  %2582 = vmatpush2.msra.mxu0 0.0
  %2583 = vmatprep.subr.mxu0 0.0
  %2584 = vmatpush2.msra.mxu0 0.0
  %2585 = vmatprep.subr.mxu0 0.0
  %2586 = vmatpush2.msra.mxu0 0.0
  %2587 = vmatprep.subr.mxu0 0.0
  %2588 = vmatpush2.msra.mxu0 0.0
  %2589 = vmatprep.mubr.f32.mxu0 0.0
  %2590 = vmatmul.mubr.f32.gmra.mxu0 %v2523
  %v2591 = vpop.f32.mrf.mxu0
  %v2592 = vadd.f32 0.0, %v2591
  %v2593 = vpop.f32.mrf.mxu0
  %2594 = vdwg.mxu0
  %s2595 = scalar_lea.vmem %s8, 24
  %v2596 = vld [vmem:[%s2595] sm:$0xff]
  %v2598 = vsel %vm2371, %v2596, 0
  %2600 = vmatprep.subr.mxu0 0.0
  %2601 = vmatpush1.msra.mxu0 0.0
  %2602 = vmatprep.subr.mxu0 0.0
  %2603 = vmatpush1.msra.mxu0 0.0
  %2604 = vmatprep.subr.mxu0 0.0
  %2605 = vmatpush1.msra.mxu0 0.0
  %2606 = vmatprep.subr.mxu0 0.0
  %2607 = vmatpush1.msra.mxu0 0.0
  %2608 = vmatprep.subr.mxu0 0.0
  %2609 = vmatpush1.msra.mxu0 0.0
  %2610 = vmatprep.subr.mxu0 0.0
  %2611 = vmatpush1.msra.mxu0 0.0
  %2612 = vmatprep.subr.mxu0 0.0
  %2613 = vmatpush1.msra.mxu0 0.0
  %2614 = vmatprep.subr.mxu0 0.0
  %2615 = vmatpush1.msra.mxu0 0.0
  %2616 = vmatprep.subr.mxu0 0.0
  %2617 = vmatpush1.msra.mxu0 0.0
  %2618 = vmatprep.subr.mxu0 0.0
  %2619 = vmatpush1.msra.mxu0 0.0
  %2620 = vmatprep.subr.mxu0 0.0
  %2621 = vmatpush1.msra.mxu0 0.0
  %2622 = vmatprep.subr.mxu0 0.0
  %2623 = vmatpush1.msra.mxu0 0.0
  %2624 = vmatprep.subr.mxu0 0.0
  %2625 = vmatpush1.msra.mxu0 0.0
  %2626 = vmatprep.subr.mxu0 0.0
  %2627 = vmatpush1.msra.mxu0 %v2369
  %2628 = vmatprep.subr.mxu0 0.0
  %2629 = vmatpush1.msra.mxu0 %v2368
  %2630 = vmatprep.subr.mxu0 0.0
  %2631 = vmatpush1.msra.mxu0 %v2367
  %2632 = vmatprep.subr.mxu0 0.0
  %2633 = vmatpush2.msra.mxu0 0.0
  %2634 = vmatprep.subr.mxu0 0.0
  %2635 = vmatpush2.msra.mxu0 0.0
  %2636 = vmatprep.subr.mxu0 0.0
  %2637 = vmatpush2.msra.mxu0 0.0
  %2638 = vmatprep.subr.mxu0 0.0
  %2639 = vmatpush2.msra.mxu0 0.0
  %2640 = vmatprep.subr.mxu0 0.0
  %2641 = vmatpush2.msra.mxu0 0.0
  %2642 = vmatprep.subr.mxu0 0.0
  %2643 = vmatpush2.msra.mxu0 0.0
  %2644 = vmatprep.subr.mxu0 0.0
  %2645 = vmatpush2.msra.mxu0 0.0
  %2646 = vmatprep.subr.mxu0 0.0
  %2647 = vmatpush2.msra.mxu0 0.0
  %2648 = vmatprep.subr.mxu0 0.0
  %2649 = vmatpush2.msra.mxu0 0.0
  %2650 = vmatprep.subr.mxu0 0.0
  %2651 = vmatpush2.msra.mxu0 0.0
  %2652 = vmatprep.subr.mxu0 0.0
  %2653 = vmatpush2.msra.mxu0 0.0
  %2654 = vmatprep.subr.mxu0 0.0
  %2655 = vmatpush2.msra.mxu0 0.0
  %2656 = vmatprep.subr.mxu0 0.0
  %2657 = vmatpush2.msra.mxu0 0.0
  %2658 = vmatprep.subr.mxu0 0.0
  %2659 = vmatpush2.msra.mxu0 0.0
  %2660 = vmatprep.subr.mxu0 0.0
  %2661 = vmatpush2.msra.mxu0 0.0
  %2662 = vmatprep.subr.mxu0 0.0
  %2663 = vmatpush2.msra.mxu0 0.0
  %2664 = vmatprep.mubr.f32.mxu0 0.0
  %2665 = vmatmul.mubr.f32.gmra.mxu0 %v2598
  %v2666 = vpop.f32.mrf.mxu0
  %v2667 = vadd.f32 0.0, %v2666
  %v2668 = vpop.f32.mrf.mxu0
  %2669 = vdwg.mxu0
  %s2670 = scalar_lea.vmem %s8, 32
  %v2671 = vld [vmem:[%s2670] sm:$0xff]
  %v2673 = vsel %vm2371, %v2671, 0
  %2675 = vmatprep.subr.mxu0 0.0
  %2676 = vmatpush1.msra.mxu0 0.0
  %2677 = vmatprep.subr.mxu0 0.0
  %2678 = vmatpush1.msra.mxu0 0.0
  %2679 = vmatprep.subr.mxu0 0.0
  %2680 = vmatpush1.msra.mxu0 0.0
  %2681 = vmatprep.subr.mxu0 0.0
  %2682 = vmatpush1.msra.mxu0 0.0
  %2683 = vmatprep.subr.mxu0 0.0
  %2684 = vmatpush1.msra.mxu0 0.0
  %2685 = vmatprep.subr.mxu0 0.0
  %2686 = vmatpush1.msra.mxu0 0.0
  %2687 = vmatprep.subr.mxu0 0.0
  %2688 = vmatpush1.msra.mxu0 0.0
  %2689 = vmatprep.subr.mxu0 0.0
  %2690 = vmatpush1.msra.mxu0 0.0
  %2691 = vmatprep.subr.mxu0 0.0
  %2692 = vmatpush1.msra.mxu0 0.0
  %2693 = vmatprep.subr.mxu0 0.0
  %2694 = vmatpush1.msra.mxu0 0.0
  %2695 = vmatprep.subr.mxu0 0.0
  %2696 = vmatpush1.msra.mxu0 0.0
  %2697 = vmatprep.subr.mxu0 0.0
  %2698 = vmatpush1.msra.mxu0 0.0
  %2699 = vmatprep.subr.mxu0 0.0
  %2700 = vmatpush1.msra.mxu0 0.0
  %2701 = vmatprep.subr.mxu0 0.0
  %2702 = vmatpush1.msra.mxu0 %v2369
  %2703 = vmatprep.subr.mxu0 0.0
  %2704 = vmatpush1.msra.mxu0 %v2368
  %2705 = vmatprep.subr.mxu0 0.0
  %2706 = vmatpush1.msra.mxu0 %v2367
  %2707 = vmatprep.subr.mxu0 0.0
  %2708 = vmatpush2.msra.mxu0 0.0
  %2709 = vmatprep.subr.mxu0 0.0
  %2710 = vmatpush2.msra.mxu0 0.0
  %2711 = vmatprep.subr.mxu0 0.0
  %2712 = vmatpush2.msra.mxu0 0.0
  %2713 = vmatprep.subr.mxu0 0.0
  %2714 = vmatpush2.msra.mxu0 0.0
  %2715 = vmatprep.subr.mxu0 0.0
  %2716 = vmatpush2.msra.mxu0 0.0
  %2717 = vmatprep.subr.mxu0 0.0
  %2718 = vmatpush2.msra.mxu0 0.0
  %2719 = vmatprep.subr.mxu0 0.0
  %2720 = vmatpush2.msra.mxu0 0.0
  %2721 = vmatprep.subr.mxu0 0.0
  %2722 = vmatpush2.msra.mxu0 0.0
  %2723 = vmatprep.subr.mxu0 0.0
  %2724 = vmatpush2.msra.mxu0 0.0
  %2725 = vmatprep.subr.mxu0 0.0
  %2726 = vmatpush2.msra.mxu0 0.0
  %2727 = vmatprep.subr.mxu0 0.0
  %2728 = vmatpush2.msra.mxu0 0.0
  %2729 = vmatprep.subr.mxu0 0.0
  %2730 = vmatpush2.msra.mxu0 0.0
  %2731 = vmatprep.subr.mxu0 0.0
  %2732 = vmatpush2.msra.mxu0 0.0
  %2733 = vmatprep.subr.mxu0 0.0
  %2734 = vmatpush2.msra.mxu0 0.0
  %2735 = vmatprep.subr.mxu0 0.0
  %2736 = vmatpush2.msra.mxu0 0.0
  %2737 = vmatprep.subr.mxu0 0.0
  %2738 = vmatpush2.msra.mxu0 0.0
  %2739 = vmatprep.mubr.f32.mxu0 0.0
  %2740 = vmatmul.mubr.f32.gmra.mxu0 %v2673
  %v2741 = vpop.f32.mrf.mxu0
  %v2742 = vadd.f32 0.0, %v2741
  %v2743 = vpop.f32.mrf.mxu0
  %2744 = vdwg.mxu0
  %s2745 = scalar_lea.vmem %s8, 40
  %v2746 = vld [vmem:[%s2745] sm:$0xff]
  %v2748 = vsel %vm2371, %v2746, 0
  %2750 = vmatprep.subr.mxu0 0.0
  %2751 = vmatpush1.msra.mxu0 0.0
  %2752 = vmatprep.subr.mxu0 0.0
  %2753 = vmatpush1.msra.mxu0 0.0
  %2754 = vmatprep.subr.mxu0 0.0
  %2755 = vmatpush1.msra.mxu0 0.0
  %2756 = vmatprep.subr.mxu0 0.0
  %2757 = vmatpush1.msra.mxu0 0.0
  %2758 = vmatprep.subr.mxu0 0.0
  %2759 = vmatpush1.msra.mxu0 0.0
  %2760 = vmatprep.subr.mxu0 0.0
  %2761 = vmatpush1.msra.mxu0 0.0
  %2762 = vmatprep.subr.mxu0 0.0
  %2763 = vmatpush1.msra.mxu0 0.0
  %2764 = vmatprep.subr.mxu0 0.0
  %2765 = vmatpush1.msra.mxu0 0.0
  %2766 = vmatprep.subr.mxu0 0.0
  %2767 = vmatpush1.msra.mxu0 0.0
  %2768 = vmatprep.subr.mxu0 0.0
  %2769 = vmatpush1.msra.mxu0 0.0
  %2770 = vmatprep.subr.mxu0 0.0
  %2771 = vmatpush1.msra.mxu0 0.0
  %2772 = vmatprep.subr.mxu0 0.0
  %2773 = vmatpush1.msra.mxu0 0.0
  %2774 = vmatprep.subr.mxu0 0.0
  %2775 = vmatpush1.msra.mxu0 0.0
  %2776 = vmatprep.subr.mxu0 0.0
  %2777 = vmatpush1.msra.mxu0 %v2369
  %2778 = vmatprep.subr.mxu0 0.0
  %2779 = vmatpush1.msra.mxu0 %v2368
  %2780 = vmatprep.subr.mxu0 0.0
  %2781 = vmatpush1.msra.mxu0 %v2367
  %2782 = vmatprep.subr.mxu0 0.0
  %2783 = vmatpush2.msra.mxu0 0.0
  %2784 = vmatprep.subr.mxu0 0.0
  %2785 = vmatpush2.msra.mxu0 0.0
  %2786 = vmatprep.subr.mxu0 0.0
  %2787 = vmatpush2.msra.mxu0 0.0
  %2788 = vmatprep.subr.mxu0 0.0
  %2789 = vmatpush2.msra.mxu0 0.0
  %2790 = vmatprep.subr.mxu0 0.0
  %2791 = vmatpush2.msra.mxu0 0.0
  %2792 = vmatprep.subr.mxu0 0.0
  %2793 = vmatpush2.msra.mxu0 0.0
  %2794 = vmatprep.subr.mxu0 0.0
  %2795 = vmatpush2.msra.mxu0 0.0
  %2796 = vmatprep.subr.mxu0 0.0
  %2797 = vmatpush2.msra.mxu0 0.0
  %2798 = vmatprep.subr.mxu0 0.0
  %2799 = vmatpush2.msra.mxu0 0.0
  %2800 = vmatprep.subr.mxu0 0.0
  %2801 = vmatpush2.msra.mxu0 0.0
  %2802 = vmatprep.subr.mxu0 0.0
  %2803 = vmatpush2.msra.mxu0 0.0
  %2804 = vmatprep.subr.mxu0 0.0
  %2805 = vmatpush2.msra.mxu0 0.0
  %2806 = vmatprep.subr.mxu0 0.0
  %2807 = vmatpush2.msra.mxu0 0.0
  %2808 = vmatprep.subr.mxu0 0.0
  %2809 = vmatpush2.msra.mxu0 0.0
  %2810 = vmatprep.subr.mxu0 0.0
  %2811 = vmatpush2.msra.mxu0 0.0
  %2812 = vmatprep.subr.mxu0 0.0
  %2813 = vmatpush2.msra.mxu0 0.0
  %2814 = vmatprep.mubr.f32.mxu0 0.0
  %2815 = vmatmul.mubr.f32.gmra.mxu0 %v2748
  %v2816 = vpop.f32.mrf.mxu0
  %v2817 = vadd.f32 0.0, %v2816
  %v2818 = vpop.f32.mrf.mxu0
  %2819 = vdwg.mxu0
  %s2820 = scalar_lea.vmem %s8, 48
  %v2821 = vld [vmem:[%s2820] sm:$0xff]
  %v2823 = vsel %vm2371, %v2821, 0
  %2825 = vmatprep.subr.mxu0 0.0
  %2826 = vmatpush1.msra.mxu0 0.0
  %2827 = vmatprep.subr.mxu0 0.0
  %2828 = vmatpush1.msra.mxu0 0.0
  %2829 = vmatprep.subr.mxu0 0.0
  %2830 = vmatpush1.msra.mxu0 0.0
  %2831 = vmatprep.subr.mxu0 0.0
  %2832 = vmatpush1.msra.mxu0 0.0
  %2833 = vmatprep.subr.mxu0 0.0
  %2834 = vmatpush1.msra.mxu0 0.0
  %2835 = vmatprep.subr.mxu0 0.0
  %2836 = vmatpush1.msra.mxu0 0.0
  %2837 = vmatprep.subr.mxu0 0.0
  %2838 = vmatpush1.msra.mxu0 0.0
  %2839 = vmatprep.subr.mxu0 0.0
  %2840 = vmatpush1.msra.mxu0 0.0
  %2841 = vmatprep.subr.mxu0 0.0
  %2842 = vmatpush1.msra.mxu0 0.0
  %2843 = vmatprep.subr.mxu0 0.0
  %2844 = vmatpush1.msra.mxu0 0.0
  %2845 = vmatprep.subr.mxu0 0.0
  %2846 = vmatpush1.msra.mxu0 0.0
  %2847 = vmatprep.subr.mxu0 0.0
  %2848 = vmatpush1.msra.mxu0 0.0
  %2849 = vmatprep.subr.mxu0 0.0
  %2850 = vmatpush1.msra.mxu0 0.0
  %2851 = vmatprep.subr.mxu0 0.0
  %2852 = vmatpush1.msra.mxu0 %v2369
  %2853 = vmatprep.subr.mxu0 0.0
  %2854 = vmatpush1.msra.mxu0 %v2368
  %2855 = vmatprep.subr.mxu0 0.0
  %2856 = vmatpush1.msra.mxu0 %v2367
  %2857 = vmatprep.subr.mxu0 0.0
  %2858 = vmatpush2.msra.mxu0 0.0
  %2859 = vmatprep.subr.mxu0 0.0
  %2860 = vmatpush2.msra.mxu0 0.0
  %2861 = vmatprep.subr.mxu0 0.0
  %2862 = vmatpush2.msra.mxu0 0.0
  %2863 = vmatprep.subr.mxu0 0.0
  %2864 = vmatpush2.msra.mxu0 0.0
  %2865 = vmatprep.subr.mxu0 0.0
  %2866 = vmatpush2.msra.mxu0 0.0
  %2867 = vmatprep.subr.mxu0 0.0
  %2868 = vmatpush2.msra.mxu0 0.0
  %2869 = vmatprep.subr.mxu0 0.0
  %2870 = vmatpush2.msra.mxu0 0.0
  %2871 = vmatprep.subr.mxu0 0.0
  %2872 = vmatpush2.msra.mxu0 0.0
  %2873 = vmatprep.subr.mxu0 0.0
  %2874 = vmatpush2.msra.mxu0 0.0
  %2875 = vmatprep.subr.mxu0 0.0
  %2876 = vmatpush2.msra.mxu0 0.0
  %2877 = vmatprep.subr.mxu0 0.0
  %2878 = vmatpush2.msra.mxu0 0.0
  %2879 = vmatprep.subr.mxu0 0.0
  %2880 = vmatpush2.msra.mxu0 0.0
  %2881 = vmatprep.subr.mxu0 0.0
  %2882 = vmatpush2.msra.mxu0 0.0
  %2883 = vmatprep.subr.mxu0 0.0
  %2884 = vmatpush2.msra.mxu0 0.0
  %2885 = vmatprep.subr.mxu0 0.0
  %2886 = vmatpush2.msra.mxu0 0.0
  %2887 = vmatprep.subr.mxu0 0.0
  %2888 = vmatpush2.msra.mxu0 0.0
  %2889 = vmatprep.mubr.f32.mxu0 0.0
  %2890 = vmatmul.mubr.f32.gmra.mxu0 %v2823
  %v2891 = vpop.f32.mrf.mxu0
  %v2892 = vadd.f32 0.0, %v2891
  %v2893 = vpop.f32.mrf.mxu0
  %2894 = vdwg.mxu0
  %s2895 = scalar_lea.vmem %s8, 56
  %v2896 = vld [vmem:[%s2895] sm:$0xff]
  %v2898 = vsel %vm2371, %v2896, 0
  %2900 = vmatprep.subr.mxu0 0.0
  %2901 = vmatpush1.msra.mxu0 0.0
  %2902 = vmatprep.subr.mxu0 0.0
  %2903 = vmatpush1.msra.mxu0 0.0
  %2904 = vmatprep.subr.mxu0 0.0
  %2905 = vmatpush1.msra.mxu0 0.0
  %2906 = vmatprep.subr.mxu0 0.0
  %2907 = vmatpush1.msra.mxu0 0.0
  %2908 = vmatprep.subr.mxu0 0.0
  %2909 = vmatpush1.msra.mxu0 0.0
  %2910 = vmatprep.subr.mxu0 0.0
  %2911 = vmatpush1.msra.mxu0 0.0
  %2912 = vmatprep.subr.mxu0 0.0
  %2913 = vmatpush1.msra.mxu0 0.0
  %2914 = vmatprep.subr.mxu0 0.0
  %2915 = vmatpush1.msra.mxu0 0.0
  %2916 = vmatprep.subr.mxu0 0.0
  %2917 = vmatpush1.msra.mxu0 0.0
  %2918 = vmatprep.subr.mxu0 0.0
  %2919 = vmatpush1.msra.mxu0 0.0
  %2920 = vmatprep.subr.mxu0 0.0
  %2921 = vmatpush1.msra.mxu0 0.0
  %2922 = vmatprep.subr.mxu0 0.0
  %2923 = vmatpush1.msra.mxu0 0.0
  %2924 = vmatprep.subr.mxu0 0.0
  %2925 = vmatpush1.msra.mxu0 0.0
  %2926 = vmatprep.subr.mxu0 0.0
  %2927 = vmatpush1.msra.mxu0 %v2369
  %2928 = vmatprep.subr.mxu0 0.0
  %2929 = vmatpush1.msra.mxu0 %v2368
  %2930 = vmatprep.subr.mxu0 0.0
  %2931 = vmatpush1.msra.mxu0 %v2367
  %2932 = vmatprep.subr.mxu0 0.0
  %2933 = vmatpush2.msra.mxu0 0.0
  %2934 = vmatprep.subr.mxu0 0.0
  %2935 = vmatpush2.msra.mxu0 0.0
  %2936 = vmatprep.subr.mxu0 0.0
  %2937 = vmatpush2.msra.mxu0 0.0
  %2938 = vmatprep.subr.mxu0 0.0
  %2939 = vmatpush2.msra.mxu0 0.0
  %2940 = vmatprep.subr.mxu0 0.0
  %2941 = vmatpush2.msra.mxu0 0.0
  %2942 = vmatprep.subr.mxu0 0.0
  %2943 = vmatpush2.msra.mxu0 0.0
  %2944 = vmatprep.subr.mxu0 0.0
  %2945 = vmatpush2.msra.mxu0 0.0
  %2946 = vmatprep.subr.mxu0 0.0
  %2947 = vmatpush2.msra.mxu0 0.0
  %2948 = vmatprep.subr.mxu0 0.0
  %2949 = vmatpush2.msra.mxu0 0.0
  %2950 = vmatprep.subr.mxu0 0.0
  %2951 = vmatpush2.msra.mxu0 0.0
  %2952 = vmatprep.subr.mxu0 0.0
  %2953 = vmatpush2.msra.mxu0 0.0
  %2954 = vmatprep.subr.mxu0 0.0
  %2955 = vmatpush2.msra.mxu0 0.0
  %2956 = vmatprep.subr.mxu0 0.0
  %2957 = vmatpush2.msra.mxu0 0.0
  %2958 = vmatprep.subr.mxu0 0.0
  %2959 = vmatpush2.msra.mxu0 0.0
  %2960 = vmatprep.subr.mxu0 0.0
  %2961 = vmatpush2.msra.mxu0 0.0
  %2962 = vmatprep.subr.mxu0 0.0
  %2963 = vmatpush2.msra.mxu0 0.0
  %2964 = vmatprep.mubr.f32.mxu0 0.0
  %2965 = vmatmul.mubr.f32.gmra.mxu0 %v2898
  %v2966 = vpop.f32.mrf.mxu0
  %v2967 = vadd.f32 0.0, %v2966
  %v2968 = vpop.f32.mrf.mxu0
  %2969 = vdwg.mxu0
  %s2970 = scalar_lea.vmem %s8, 64
  %v2971 = vld [vmem:[%s2970] sm:$0xff]
  %v2973 = vsel %vm2371, %v2971, 0
  %2975 = vmatprep.subr.mxu0 0.0
  %2976 = vmatpush1.msra.mxu0 0.0
  %2977 = vmatprep.subr.mxu0 0.0
  %2978 = vmatpush1.msra.mxu0 0.0
  %2979 = vmatprep.subr.mxu0 0.0
  %2980 = vmatpush1.msra.mxu0 0.0
  %2981 = vmatprep.subr.mxu0 0.0
  %2982 = vmatpush1.msra.mxu0 0.0
  %2983 = vmatprep.subr.mxu0 0.0
  %2984 = vmatpush1.msra.mxu0 0.0
  %2985 = vmatprep.subr.mxu0 0.0
  %2986 = vmatpush1.msra.mxu0 0.0
  %2987 = vmatprep.subr.mxu0 0.0
  %2988 = vmatpush1.msra.mxu0 0.0
  %2989 = vmatprep.subr.mxu0 0.0
  %2990 = vmatpush1.msra.mxu0 0.0
  %2991 = vmatprep.subr.mxu0 0.0
  %2992 = vmatpush1.msra.mxu0 0.0
  %2993 = vmatprep.subr.mxu0 0.0
  %2994 = vmatpush1.msra.mxu0 0.0
  %2995 = vmatprep.subr.mxu0 0.0
  %2996 = vmatpush1.msra.mxu0 0.0
  %2997 = vmatprep.subr.mxu0 0.0
  %2998 = vmatpush1.msra.mxu0 0.0
  %2999 = vmatprep.subr.mxu0 0.0
  %3000 = vmatpush1.msra.mxu0 0.0
  %3001 = vmatprep.subr.mxu0 0.0
  %3002 = vmatpush1.msra.mxu0 %v2369
  %3003 = vmatprep.subr.mxu0 0.0
  %3004 = vmatpush1.msra.mxu0 %v2368
  %3005 = vmatprep.subr.mxu0 0.0
  %3006 = vmatpush1.msra.mxu0 %v2367
  %3007 = vmatprep.subr.mxu0 0.0
  %3008 = vmatpush2.msra.mxu0 0.0
  %3009 = vmatprep.subr.mxu0 0.0
  %3010 = vmatpush2.msra.mxu0 0.0
  %3011 = vmatprep.subr.mxu0 0.0
  %3012 = vmatpush2.msra.mxu0 0.0
  %3013 = vmatprep.subr.mxu0 0.0
  %3014 = vmatpush2.msra.mxu0 0.0
  %3015 = vmatprep.subr.mxu0 0.0
  %3016 = vmatpush2.msra.mxu0 0.0
  %3017 = vmatprep.subr.mxu0 0.0
  %3018 = vmatpush2.msra.mxu0 0.0
  %3019 = vmatprep.subr.mxu0 0.0
  %3020 = vmatpush2.msra.mxu0 0.0
  %3021 = vmatprep.subr.mxu0 0.0
  %3022 = vmatpush2.msra.mxu0 0.0
  %3023 = vmatprep.subr.mxu0 0.0
  %3024 = vmatpush2.msra.mxu0 0.0
  %3025 = vmatprep.subr.mxu0 0.0
  %3026 = vmatpush2.msra.mxu0 0.0
  %3027 = vmatprep.subr.mxu0 0.0
  %3028 = vmatpush2.msra.mxu0 0.0
  %3029 = vmatprep.subr.mxu0 0.0
  %3030 = vmatpush2.msra.mxu0 0.0
  %3031 = vmatprep.subr.mxu0 0.0
  %3032 = vmatpush2.msra.mxu0 0.0
  %3033 = vmatprep.subr.mxu0 0.0
  %3034 = vmatpush2.msra.mxu0 0.0
  %3035 = vmatprep.subr.mxu0 0.0
  %3036 = vmatpush2.msra.mxu0 0.0
  %3037 = vmatprep.subr.mxu0 0.0
  %3038 = vmatpush2.msra.mxu0 0.0
  %3039 = vmatprep.mubr.f32.mxu0 0.0
  %3040 = vmatmul.mubr.f32.gmra.mxu0 %v2973
  %v3041 = vpop.f32.mrf.mxu0
  %v3042 = vadd.f32 0.0, %v3041
  %v3043 = vpop.f32.mrf.mxu0
  %3044 = vdwg.mxu0
  %v3045 = vld [vmem:[%s9] sm:$0xff]
  %v3046 = vld [vmem:[%s9 + $0x8] sm:$0xff]
  %v3047 = vld [vmem:[%s9 + $0x10] sm:$0xff]
  %v3048 = vld [vmem:[%s9 + $0x18] sm:$0xff]
  %v3049 = vld [vmem:[%s9 + $0x20] sm:$0xff]
  %v3050 = vld [vmem:[%s9 + $0x28] sm:$0xff]
  %v3051 = vld [vmem:[%s9 + $0x30] sm:$0xff]
  %v3052 = vld [vmem:[%s9 + $0x38] sm:$0xff]
  %v3053 = vld [vmem:[%s9 + $0x40] sm:$0xff]
  %v3054 = vld [vmem:[%s9 + $0x48] sm:$0xff]
  %v3055 = vld [vmem:[%s9 + $0x50] sm:$0xff]
  %v3056 = vld [vmem:[%s9 + $0x58] sm:$0xff]
  %v3057 = vld [vmem:[%s9 + $0x60] sm:$0xff]
  %v3058 = vld [vmem:[%s9 + $0x68] sm:$0xff]
  %v3059 = vld [vmem:[%s9 + $0x70] sm:$0xff]
  %v3060 = vld [vmem:[%s9 + $0x78] sm:$0xff]
  %v3061 = vld [vmem:[%s9 + $0x80] sm:$0xff]
  %v3062 = vld [vmem:[%s9 + $0x88] sm:$0xff]
  %v3063 = vld [vmem:[%s9 + $0x90] sm:$0xff]
  %v3064 = vld [vmem:[%s9 + $0x98] sm:$0xff]
  %v3065 = vld [vmem:[%s9 + $0xa0] sm:$0xff]
  %v3066 = vld [vmem:[%s9 + $0xa8] sm:$0xff]
  %v3067 = vld [vmem:[%s9 + $0xb0] sm:$0xff]
  %v3068 = vld [vmem:[%s9 + $0xb8] sm:$0xff]
  %v3069 = vld [vmem:[%s9 + $0xc0] sm:$0xff]
  %v3070 = vld [vmem:[%s9 + $0xc8] sm:$0xff]
  %v3071 = vld [vmem:[%s9 + $0xd0] sm:$0xff]
  %v3072 = vld [vmem:[%s9 + $0xd8] sm:$0xff]
  %v3073 = vld [vmem:[%s9 + $0xe0] sm:$0xff]
  %v3074 = vld [vmem:[%s9 + $0xe8] sm:$0xff]
  %v3075 = vld [vmem:[%s9 + $0xf0] sm:$0xff]
  %v3076 = vld [vmem:[%s9 + $0xf8] sm:$0xff]
  %v3077 = vld [vmem:[%s9 + $0x100] sm:$0xff]
  %v3078 = vld [vmem:[%s9 + $0x108] sm:$0xff]
  %v3079 = vld [vmem:[%s9 + $0x110] sm:$0xff]
  %v3080 = vld [vmem:[%s9 + $0x118] sm:$0xff]
  %v3081 = vld [vmem:[%s9 + $0x120] sm:$0xff]
  %v3082 = vld [vmem:[%s9 + $0x128] sm:$0xff]
  %v3083 = vld [vmem:[%s9 + $0x130] sm:$0xff]
  %v3084 = vld [vmem:[%s9 + $0x138] sm:$0xff]
  %v3085 = vld [vmem:[%s9 + $0x140] sm:$0xff]
  %v3086 = vld [vmem:[%s9 + $0x148] sm:$0xff]
  %v3087 = vld [vmem:[%s9 + $0x150] sm:$0xff]
  %v3088 = vld [vmem:[%s9 + $0x158] sm:$0xff]
  %v3089 = vld [vmem:[%s9 + $0x160] sm:$0xff]
  %v3090 = vld [vmem:[%s9 + $0x168] sm:$0xff]
  %v3091 = vld [vmem:[%s9 + $0x170] sm:$0xff]
  %v3092 = vld [vmem:[%s9 + $0x178] sm:$0xff]
  %v3093 = vld [vmem:[%s9 + $0x180] sm:$0xff]
  %v3094 = vld [vmem:[%s9 + $0x188] sm:$0xff]
  %v3095 = vld [vmem:[%s9 + $0x190] sm:$0xff]
  %v3096 = vld [vmem:[%s9 + $0x198] sm:$0xff]
  %v3097 = vld [vmem:[%s9 + $0x1a0] sm:$0xff]
  %v3098 = vld [vmem:[%s9 + $0x1a8] sm:$0xff]
  %v3099 = vld [vmem:[%s9 + $0x1b0] sm:$0xff]
  %v3100 = vld [vmem:[%s9 + $0x1b8] sm:$0xff]
  %v3101 = vld [vmem:[%s9 + $0x1c0] sm:$0xff]
  %v3102 = vld [vmem:[%s9 + $0x1c8] sm:$0xff]
  %v3103 = vld [vmem:[%s9 + $0x1d0] sm:$0xff]
  %v3104 = vld [vmem:[%s9 + $0x1d8] sm:$0xff]
  %v3105 = vld [vmem:[%s9 + $0x1e0] sm:$0xff]
  %v3106 = vld [vmem:[%s9 + $0x1e8] sm:$0xff]
  %v3107 = vld [vmem:[%s9 + $0x1f0] sm:$0xff]
  %v3108 = vld [vmem:[%s9 + $0x1f8] sm:$0xff]
  %v3109 = vld [vmem:[%s9 + $0x200] sm:$0xff]
  %v3110 = vld [vmem:[%s9 + $0x208] sm:$0xff]
  %v3111 = vld [vmem:[%s9 + $0x210] sm:$0xff]
  %v3112 = vld [vmem:[%s9 + $0x218] sm:$0xff]
  %v3113 = vld [vmem:[%s9 + $0x220] sm:$0xff]
  %v3114 = vld [vmem:[%s9 + $0x228] sm:$0xff]
  %v3115 = vld [vmem:[%s9 + $0x230] sm:$0xff]
  %v3116 = vld [vmem:[%s9 + $0x238] sm:$0xff]
  %v3117 = vld [vmem:[%s9 + $0x240] sm:$0xff]
  %v3118 = vld [vmem:[%s9 + $0x248] sm:$0xff]
  %v3119 = vld [vmem:[%s9 + $0x250] sm:$0xff]
  %v3120 = vld [vmem:[%s9 + $0x258] sm:$0xff]
  %v3121 = vld [vmem:[%s9 + $0x260] sm:$0xff]
  %v3122 = vld [vmem:[%s9 + $0x268] sm:$0xff]
  %v3123 = vld [vmem:[%s9 + $0x270] sm:$0xff]
  %v3124 = vld [vmem:[%s9 + $0x278] sm:$0xff]
  %v3125 = vld [vmem:[%s9 + $0x280] sm:$0xff]
  %v3126 = vld [vmem:[%s9 + $0x288] sm:$0xff]
  %v3127 = vld [vmem:[%s9 + $0x290] sm:$0xff]
  %v3128 = vld [vmem:[%s9 + $0x298] sm:$0xff]
  %v3129 = vld [vmem:[%s9 + $0x2a0] sm:$0xff]
  %v3130 = vld [vmem:[%s9 + $0x2a8] sm:$0xff]
  %v3131 = vld [vmem:[%s9 + $0x2b0] sm:$0xff]
  %v3132 = vld [vmem:[%s9 + $0x2b8] sm:$0xff]
  %v3133 = vld [vmem:[%s9 + $0x2c0] sm:$0xff]
  %v3134 = vld [vmem:[%s9 + $0x2c8] sm:$0xff]
  %v3135 = vld [vmem:[%s9 + $0x2d0] sm:$0xff]
  %v3136 = vld [vmem:[%s9 + $0x2d8] sm:$0xff]
  %v3137 = vld [vmem:[%s9 + $0x2e0] sm:$0xff]
  %v3138 = vld [vmem:[%s9 + $0x2e8] sm:$0xff]
  %v3139 = vld [vmem:[%s9 + $0x2f0] sm:$0xff]
  %v3140 = vld [vmem:[%s9 + $0x2f8] sm:$0xff]
  %v3141 = vld [vmem:[%s9 + $0x300] sm:$0xff]
  %v3142 = vld [vmem:[%s9 + $0x308] sm:$0xff]
  %v3143 = vld [vmem:[%s9 + $0x310] sm:$0xff]
  %v3144 = vld [vmem:[%s9 + $0x318] sm:$0xff]
  %v3145 = vld [vmem:[%s9 + $0x320] sm:$0xff]
  %v3146 = vld [vmem:[%s9 + $0x328] sm:$0xff]
  %v3147 = vld [vmem:[%s9 + $0x330] sm:$0xff]
  %v3148 = vld [vmem:[%s9 + $0x338] sm:$0xff]
  %v3149 = vld [vmem:[%s9 + $0x340] sm:$0xff]
  %v3150 = vld [vmem:[%s9 + $0x348] sm:$0xff]
  %v3151 = vld [vmem:[%s9 + $0x350] sm:$0xff]
  %v3152 = vld [vmem:[%s9 + $0x358] sm:$0xff]
  %v3153 = vld [vmem:[%s9 + $0x360] sm:$0xff]
  %v3154 = vld [vmem:[%s9 + $0x368] sm:$0xff]
  %v3155 = vld [vmem:[%s9 + $0x370] sm:$0xff]
  %v3156 = vld [vmem:[%s9 + $0x378] sm:$0xff]
  %v3157 = vld [vmem:[%s9 + $0x380] sm:$0xff]
  %v3158 = vld [vmem:[%s9 + $0x388] sm:$0xff]
  %v3159 = vld [vmem:[%s9 + $0x390] sm:$0xff]
  %v3160 = vld [vmem:[%s9 + $0x398] sm:$0xff]
  %v3161 = vld [vmem:[%s9 + $0x3a0] sm:$0xff]
  %v3162 = vld [vmem:[%s9 + $0x3a8] sm:$0xff]
  %v3163 = vld [vmem:[%s9 + $0x3b0] sm:$0xff]
  %v3164 = vld [vmem:[%s9 + $0x3b8] sm:$0xff]
  %v3165 = vld [vmem:[%s9 + $0x3c0] sm:$0xff]
  %v3166 = vld [vmem:[%s9 + $0x3c8] sm:$0xff]
  %v3167 = vld [vmem:[%s9 + $0x3d0] sm:$0xff]
  %v3168 = vld [vmem:[%s9 + $0x3d8] sm:$0xff]
  %v3169 = vld [vmem:[%s9 + $0x3e0] sm:$0xff]
  %v3170 = vld [vmem:[%s9 + $0x3e8] sm:$0xff]
  %v3171 = vld [vmem:[%s9 + $0x3f0] sm:$0xff]
  %v3172 = vld [vmem:[%s9 + $0x3f8] sm:$0xff]
  %v3173 = vld [vmem:[%s9 + $0x400] sm:$0xff]
  %v3174 = vld [vmem:[%s9 + $0x408] sm:$0xff]
  %v3175 = vld [vmem:[%s9 + $0x410] sm:$0xff]
  %v3176 = vld [vmem:[%s9 + $0x418] sm:$0xff]
  %v3177 = vld [vmem:[%s9 + $0x420] sm:$0xff]
  %v3178 = vld [vmem:[%s9 + $0x428] sm:$0xff]
  %v3179 = vld [vmem:[%s9 + $0x430] sm:$0xff]
  %v3180 = vld [vmem:[%s9 + $0x438] sm:$0xff]
  %v3181 = vld [vmem:[%s9 + $0x440] sm:$0xff]
  %v3182 = vld [vmem:[%s9 + $0x448] sm:$0xff]
  %v3183 = vld [vmem:[%s9 + $0x450] sm:$0xff]
  %v3184 = vld [vmem:[%s9 + $0x458] sm:$0xff]
  %v3185 = vld [vmem:[%s9 + $0x460] sm:$0xff]
  %v3186 = vld [vmem:[%s9 + $0x468] sm:$0xff]
  %v3187 = vld [vmem:[%s9 + $0x470] sm:$0xff]
  %v3188 = vld [vmem:[%s9 + $0x478] sm:$0xff]
  %v3189 = vld [vmem:[%s10] sm:$0x1]
  %v3191 = vlaneseq
  %v3192 = vshrl.u32 %v3191, 7
  %v3193 = vsub.s32 0, %v3192
  %v3194 = vrot.slane %v3189, %v3193
  %3196 = vmatprep.subr.mxu0 0.0
  %3197 = vmatpush1.msra.mxu0 %v3060
  %3198 = vmatprep.subr.mxu0 0.0
  %3199 = vmatpush1.msra.mxu0 %v3059
  %3200 = vmatprep.subr.mxu0 0.0
  %3201 = vmatpush1.msra.mxu0 %v3058
  %3202 = vmatprep.subr.mxu0 0.0
  %3203 = vmatpush1.msra.mxu0 %v3057
  %3204 = vmatprep.subr.mxu0 0.0
  %3205 = vmatpush1.msra.mxu0 %v3056
  %3206 = vmatprep.subr.mxu0 0.0
  %3207 = vmatpush1.msra.mxu0 %v3055
  %3208 = vmatprep.subr.mxu0 0.0
  %3209 = vmatpush1.msra.mxu0 %v3054
  %3210 = vmatprep.subr.mxu0 0.0
  %3211 = vmatpush1.msra.mxu0 %v3053
  %3212 = vmatprep.subr.mxu0 0.0
  %3213 = vmatpush1.msra.mxu0 %v3052
  %3214 = vmatprep.subr.mxu0 0.0
  %3215 = vmatpush1.msra.mxu0 %v3051
  %3216 = vmatprep.subr.mxu0 0.0
  %3217 = vmatpush1.msra.mxu0 %v3050
  %3218 = vmatprep.subr.mxu0 0.0
  %3219 = vmatpush1.msra.mxu0 %v3049
  %3220 = vmatprep.subr.mxu0 0.0
  %3221 = vmatpush1.msra.mxu0 %v3048
  %3222 = vmatprep.subr.mxu0 0.0
  %3223 = vmatpush1.msra.mxu0 %v3047
  %3224 = vmatprep.subr.mxu0 0.0
  %3225 = vmatpush1.msra.mxu0 %v3046
  %3226 = vmatprep.subr.mxu0 0.0
  %3227 = vmatpush1.msra.mxu0 %v3045
  %3228 = vmatprep.subr.mxu0 0.0
  %3229 = vmatpush2.msra.mxu0 %v3076
  %3230 = vmatprep.subr.mxu0 0.0
  %3231 = vmatpush2.msra.mxu0 %v3075
  %3232 = vmatprep.subr.mxu0 0.0
  %3233 = vmatpush2.msra.mxu0 %v3074
  %3234 = vmatprep.subr.mxu0 0.0
  %3235 = vmatpush2.msra.mxu0 %v3073
  %3236 = vmatprep.subr.mxu0 0.0
  %3237 = vmatpush2.msra.mxu0 %v3072
  %3238 = vmatprep.subr.mxu0 0.0
  %3239 = vmatpush2.msra.mxu0 %v3071
  %3240 = vmatprep.subr.mxu0 0.0
  %3241 = vmatpush2.msra.mxu0 %v3070
  %3242 = vmatprep.subr.mxu0 0.0
  %3243 = vmatpush2.msra.mxu0 %v3069
  %3244 = vmatprep.subr.mxu0 0.0
  %3245 = vmatpush2.msra.mxu0 %v3068
  %3246 = vmatprep.subr.mxu0 0.0
  %3247 = vmatpush2.msra.mxu0 %v3067
  %3248 = vmatprep.subr.mxu0 0.0
  %3249 = vmatpush2.msra.mxu0 %v3066
  %3250 = vmatprep.subr.mxu0 0.0
  %3251 = vmatpush2.msra.mxu0 %v3065
  %3252 = vmatprep.subr.mxu0 0.0
  %3253 = vmatpush2.msra.mxu0 %v3064
  %3254 = vmatprep.subr.mxu0 0.0
  %3255 = vmatpush2.msra.mxu0 %v3063
  %3256 = vmatprep.subr.mxu0 0.0
  %3257 = vmatpush2.msra.mxu0 %v3062
  %3258 = vmatprep.subr.mxu0 0.0
  %3259 = vmatpush2.msra.mxu0 %v3061
  %3260 = vmatprep.mubr.f32.mxu0 %v2517
  %3261 = vmatmul.mubr.f32.gmra.mxu0 %v2442
  %v3262 = vpop.f32.mrf.mxu0
  %v3263 = vadd.f32 %v3194, %v3262
  %v3264 = vpop.f32.mrf.mxu0
  %3265 = vdwg.mxu0
  %3266 = vmatprep.subr.mxu0 0.0
  %3267 = vmatpush1.msra.mxu0 %v3092
  %3268 = vmatprep.subr.mxu0 0.0
  %3269 = vmatpush1.msra.mxu0 %v3091
  %3270 = vmatprep.subr.mxu0 0.0
  %3271 = vmatpush1.msra.mxu0 %v3090
  %3272 = vmatprep.subr.mxu0 0.0
  %3273 = vmatpush1.msra.mxu0 %v3089
  %3274 = vmatprep.subr.mxu0 0.0
  %3275 = vmatpush1.msra.mxu0 %v3088
  %3276 = vmatprep.subr.mxu0 0.0
  %3277 = vmatpush1.msra.mxu0 %v3087
  %3278 = vmatprep.subr.mxu0 0.0
  %3279 = vmatpush1.msra.mxu0 %v3086
  %3280 = vmatprep.subr.mxu0 0.0
  %3281 = vmatpush1.msra.mxu0 %v3085
  %3282 = vmatprep.subr.mxu0 0.0
  %3283 = vmatpush1.msra.mxu0 %v3084
  %3284 = vmatprep.subr.mxu0 0.0
  %3285 = vmatpush1.msra.mxu0 %v3083
  %3286 = vmatprep.subr.mxu0 0.0
  %3287 = vmatpush1.msra.mxu0 %v3082
  %3288 = vmatprep.subr.mxu0 0.0
  %3289 = vmatpush1.msra.mxu0 %v3081
  %3290 = vmatprep.subr.mxu0 0.0
  %3291 = vmatpush1.msra.mxu0 %v3080
  %3292 = vmatprep.subr.mxu0 0.0
  %3293 = vmatpush1.msra.mxu0 %v3079
  %3294 = vmatprep.subr.mxu0 0.0
  %3295 = vmatpush1.msra.mxu0 %v3078
  %3296 = vmatprep.subr.mxu0 0.0
  %3297 = vmatpush1.msra.mxu0 %v3077
  %3298 = vmatprep.subr.mxu0 0.0
  %3299 = vmatpush2.msra.mxu0 %v3108
  %3300 = vmatprep.subr.mxu0 0.0
  %3301 = vmatpush2.msra.mxu0 %v3107
  %3302 = vmatprep.subr.mxu0 0.0
  %3303 = vmatpush2.msra.mxu0 %v3106
  %3304 = vmatprep.subr.mxu0 0.0
  %3305 = vmatpush2.msra.mxu0 %v3105
  %3306 = vmatprep.subr.mxu0 0.0
  %3307 = vmatpush2.msra.mxu0 %v3104
  %3308 = vmatprep.subr.mxu0 0.0
  %3309 = vmatpush2.msra.mxu0 %v3103
  %3310 = vmatprep.subr.mxu0 0.0
  %3311 = vmatpush2.msra.mxu0 %v3102
  %3312 = vmatprep.subr.mxu0 0.0
  %3313 = vmatpush2.msra.mxu0 %v3101
  %3314 = vmatprep.subr.mxu0 0.0
  %3315 = vmatpush2.msra.mxu0 %v3100
  %3316 = vmatprep.subr.mxu0 0.0
  %3317 = vmatpush2.msra.mxu0 %v3099
  %3318 = vmatprep.subr.mxu0 0.0
  %3319 = vmatpush2.msra.mxu0 %v3098
  %3320 = vmatprep.subr.mxu0 0.0
  %3321 = vmatpush2.msra.mxu0 %v3097
  %3322 = vmatprep.subr.mxu0 0.0
  %3323 = vmatpush2.msra.mxu0 %v3096
  %3324 = vmatprep.subr.mxu0 0.0
  %3325 = vmatpush2.msra.mxu0 %v3095
  %3326 = vmatprep.subr.mxu0 0.0
  %3327 = vmatpush2.msra.mxu0 %v3094
  %3328 = vmatprep.subr.mxu0 0.0
  %3329 = vmatpush2.msra.mxu0 %v3093
  %3330 = vmatprep.mubr.f32.mxu0 %v2667
  %3331 = vmatmul.mubr.f32.gmra.mxu0 %v2592
  %v3332 = vpop.f32.mrf.mxu0
  %v3333 = vadd.f32 %v3263, %v3332
  %v3334 = vpop.f32.mrf.mxu0
  %3335 = vdwg.mxu0
  %3336 = vmatprep.subr.mxu0 0.0
  %3337 = vmatpush1.msra.mxu0 %v3124
  %3338 = vmatprep.subr.mxu0 0.0
  %3339 = vmatpush1.msra.mxu0 %v3123
  %3340 = vmatprep.subr.mxu0 0.0
  %3341 = vmatpush1.msra.mxu0 %v3122
  %3342 = vmatprep.subr.mxu0 0.0
  %3343 = vmatpush1.msra.mxu0 %v3121
  %3344 = vmatprep.subr.mxu0 0.0
  %3345 = vmatpush1.msra.mxu0 %v3120
  %3346 = vmatprep.subr.mxu0 0.0
  %3347 = vmatpush1.msra.mxu0 %v3119
  %3348 = vmatprep.subr.mxu0 0.0
  %3349 = vmatpush1.msra.mxu0 %v3118
  %3350 = vmatprep.subr.mxu0 0.0
  %3351 = vmatpush1.msra.mxu0 %v3117
  %3352 = vmatprep.subr.mxu0 0.0
  %3353 = vmatpush1.msra.mxu0 %v3116
  %3354 = vmatprep.subr.mxu0 0.0
  %3355 = vmatpush1.msra.mxu0 %v3115
  %3356 = vmatprep.subr.mxu0 0.0
  %3357 = vmatpush1.msra.mxu0 %v3114
  %3358 = vmatprep.subr.mxu0 0.0
  %3359 = vmatpush1.msra.mxu0 %v3113
  %3360 = vmatprep.subr.mxu0 0.0
  %3361 = vmatpush1.msra.mxu0 %v3112
  %3362 = vmatprep.subr.mxu0 0.0
  %3363 = vmatpush1.msra.mxu0 %v3111
  %3364 = vmatprep.subr.mxu0 0.0
  %3365 = vmatpush1.msra.mxu0 %v3110
  %3366 = vmatprep.subr.mxu0 0.0
  %3367 = vmatpush1.msra.mxu0 %v3109
  %3368 = vmatprep.subr.mxu0 0.0
  %3369 = vmatpush2.msra.mxu0 %v3140
  %3370 = vmatprep.subr.mxu0 0.0
  %3371 = vmatpush2.msra.mxu0 %v3139
  %3372 = vmatprep.subr.mxu0 0.0
  %3373 = vmatpush2.msra.mxu0 %v3138
  %3374 = vmatprep.subr.mxu0 0.0
  %3375 = vmatpush2.msra.mxu0 %v3137
  %3376 = vmatprep.subr.mxu0 0.0
  %3377 = vmatpush2.msra.mxu0 %v3136
  %3378 = vmatprep.subr.mxu0 0.0
  %3379 = vmatpush2.msra.mxu0 %v3135
  %3380 = vmatprep.subr.mxu0 0.0
  %3381 = vmatpush2.msra.mxu0 %v3134
  %3382 = vmatprep.subr.mxu0 0.0
  %3383 = vmatpush2.msra.mxu0 %v3133
  %3384 = vmatprep.subr.mxu0 0.0
  %3385 = vmatpush2.msra.mxu0 %v3132
  %3386 = vmatprep.subr.mxu0 0.0
  %3387 = vmatpush2.msra.mxu0 %v3131
  %3388 = vmatprep.subr.mxu0 0.0
  %3389 = vmatpush2.msra.mxu0 %v3130
  %3390 = vmatprep.subr.mxu0 0.0
  %3391 = vmatpush2.msra.mxu0 %v3129
  %3392 = vmatprep.subr.mxu0 0.0
  %3393 = vmatpush2.msra.mxu0 %v3128
  %3394 = vmatprep.subr.mxu0 0.0
  %3395 = vmatpush2.msra.mxu0 %v3127
  %3396 = vmatprep.subr.mxu0 0.0
  %3397 = vmatpush2.msra.mxu0 %v3126
  %3398 = vmatprep.subr.mxu0 0.0
  %3399 = vmatpush2.msra.mxu0 %v3125
  %3400 = vmatprep.mubr.f32.mxu0 %v2817
  %3401 = vmatmul.mubr.f32.gmra.mxu0 %v2742
  %v3402 = vpop.f32.mrf.mxu0
  %v3403 = vadd.f32 %v3333, %v3402
  %v3404 = vpop.f32.mrf.mxu0
  %3405 = vdwg.mxu0
  %3406 = vmatprep.subr.mxu0 0.0
  %3407 = vmatpush1.msra.mxu0 %v3156
  %3408 = vmatprep.subr.mxu0 0.0
  %3409 = vmatpush1.msra.mxu0 %v3155
  %3410 = vmatprep.subr.mxu0 0.0
  %3411 = vmatpush1.msra.mxu0 %v3154
  %3412 = vmatprep.subr.mxu0 0.0
  %3413 = vmatpush1.msra.mxu0 %v3153
  %3414 = vmatprep.subr.mxu0 0.0
  %3415 = vmatpush1.msra.mxu0 %v3152
  %3416 = vmatprep.subr.mxu0 0.0
  %3417 = vmatpush1.msra.mxu0 %v3151
  %3418 = vmatprep.subr.mxu0 0.0
  %3419 = vmatpush1.msra.mxu0 %v3150
  %3420 = vmatprep.subr.mxu0 0.0
  %3421 = vmatpush1.msra.mxu0 %v3149
  %3422 = vmatprep.subr.mxu0 0.0
  %3423 = vmatpush1.msra.mxu0 %v3148
  %3424 = vmatprep.subr.mxu0 0.0
  %3425 = vmatpush1.msra.mxu0 %v3147
  %3426 = vmatprep.subr.mxu0 0.0
  %3427 = vmatpush1.msra.mxu0 %v3146
  %3428 = vmatprep.subr.mxu0 0.0
  %3429 = vmatpush1.msra.mxu0 %v3145
  %3430 = vmatprep.subr.mxu0 0.0
  %3431 = vmatpush1.msra.mxu0 %v3144
  %3432 = vmatprep.subr.mxu0 0.0
  %3433 = vmatpush1.msra.mxu0 %v3143
  %3434 = vmatprep.subr.mxu0 0.0
  %3435 = vmatpush1.msra.mxu0 %v3142
  %3436 = vmatprep.subr.mxu0 0.0
  %3437 = vmatpush1.msra.mxu0 %v3141
  %3438 = vmatprep.subr.mxu0 0.0
  %3439 = vmatpush2.msra.mxu0 %v3172
  %3440 = vmatprep.subr.mxu0 0.0
  %3441 = vmatpush2.msra.mxu0 %v3171
  %3442 = vmatprep.subr.mxu0 0.0
  %3443 = vmatpush2.msra.mxu0 %v3170
  %3444 = vmatprep.subr.mxu0 0.0
  %3445 = vmatpush2.msra.mxu0 %v3169
  %3446 = vmatprep.subr.mxu0 0.0
  %3447 = vmatpush2.msra.mxu0 %v3168
  %3448 = vmatprep.subr.mxu0 0.0
  %3449 = vmatpush2.msra.mxu0 %v3167
  %3450 = vmatprep.subr.mxu0 0.0
  %3451 = vmatpush2.msra.mxu0 %v3166
  %3452 = vmatprep.subr.mxu0 0.0
  %3453 = vmatpush2.msra.mxu0 %v3165
  %3454 = vmatprep.subr.mxu0 0.0
  %3455 = vmatpush2.msra.mxu0 %v3164
  %3456 = vmatprep.subr.mxu0 0.0
  %3457 = vmatpush2.msra.mxu0 %v3163
  %3458 = vmatprep.subr.mxu0 0.0
  %3459 = vmatpush2.msra.mxu0 %v3162
  %3460 = vmatprep.subr.mxu0 0.0
  %3461 = vmatpush2.msra.mxu0 %v3161
  %3462 = vmatprep.subr.mxu0 0.0
  %3463 = vmatpush2.msra.mxu0 %v3160
  %3464 = vmatprep.subr.mxu0 0.0
  %3465 = vmatpush2.msra.mxu0 %v3159
  %3466 = vmatprep.subr.mxu0 0.0
  %3467 = vmatpush2.msra.mxu0 %v3158
  %3468 = vmatprep.subr.mxu0 0.0
  %3469 = vmatpush2.msra.mxu0 %v3157
  %3470 = vmatprep.mubr.f32.mxu0 %v2967
  %3471 = vmatmul.mubr.f32.gmra.mxu0 %v2892
  %v3472 = vpop.f32.mrf.mxu0
  %v3473 = vadd.f32 %v3403, %v3472
  %v3474 = vpop.f32.mrf.mxu0
  %3475 = vdwg.mxu0
  %3476 = vmatprep.subr.mxu0 0.0
  %3477 = vmatpush1.msra.mxu0 %v3188
  %3478 = vmatprep.subr.mxu0 0.0
  %3479 = vmatpush1.msra.mxu0 %v3187
  %3480 = vmatprep.subr.mxu0 0.0
  %3481 = vmatpush1.msra.mxu0 %v3186
  %3482 = vmatprep.subr.mxu0 0.0
  %3483 = vmatpush1.msra.mxu0 %v3185
  %3484 = vmatprep.subr.mxu0 0.0
  %3485 = vmatpush1.msra.mxu0 %v3184
  %3486 = vmatprep.subr.mxu0 0.0
  %3487 = vmatpush1.msra.mxu0 %v3183
  %3488 = vmatprep.subr.mxu0 0.0
  %3489 = vmatpush1.msra.mxu0 %v3182
  %3490 = vmatprep.subr.mxu0 0.0
  %3491 = vmatpush1.msra.mxu0 %v3181
  %3492 = vmatprep.subr.mxu0 0.0
  %3493 = vmatpush1.msra.mxu0 %v3180
  %3494 = vmatprep.subr.mxu0 0.0
  %3495 = vmatpush1.msra.mxu0 %v3179
  %3496 = vmatprep.subr.mxu0 0.0
  %3497 = vmatpush1.msra.mxu0 %v3178
  %3498 = vmatprep.subr.mxu0 0.0
  %3499 = vmatpush1.msra.mxu0 %v3177
  %3500 = vmatprep.subr.mxu0 0.0
  %3501 = vmatpush1.msra.mxu0 %v3176
  %3502 = vmatprep.subr.mxu0 0.0
  %3503 = vmatpush1.msra.mxu0 %v3175
  %3504 = vmatprep.subr.mxu0 0.0
  %3505 = vmatpush1.msra.mxu0 %v3174
  %3506 = vmatprep.subr.mxu0 0.0
  %3507 = vmatpush1.msra.mxu0 %v3173
  %3508 = vmatprep.subr.mxu0 0.0
  %3509 = vmatpush2.msra.mxu0 0.0
  %3510 = vmatprep.subr.mxu0 0.0
  %3511 = vmatpush2.msra.mxu0 0.0
  %3512 = vmatprep.subr.mxu0 0.0
  %3513 = vmatpush2.msra.mxu0 0.0
  %3514 = vmatprep.subr.mxu0 0.0
  %3515 = vmatpush2.msra.mxu0 0.0
  %3516 = vmatprep.subr.mxu0 0.0
  %3517 = vmatpush2.msra.mxu0 0.0
  %3518 = vmatprep.subr.mxu0 0.0
  %3519 = vmatpush2.msra.mxu0 0.0
  %3520 = vmatprep.subr.mxu0 0.0
  %3521 = vmatpush2.msra.mxu0 0.0
  %3522 = vmatprep.subr.mxu0 0.0
  %3523 = vmatpush2.msra.mxu0 0.0
  %3524 = vmatprep.subr.mxu0 0.0
  %3525 = vmatpush2.msra.mxu0 0.0
  %3526 = vmatprep.subr.mxu0 0.0
  %3527 = vmatpush2.msra.mxu0 0.0
  %3528 = vmatprep.subr.mxu0 0.0
  %3529 = vmatpush2.msra.mxu0 0.0
  %3530 = vmatprep.subr.mxu0 0.0
  %3531 = vmatpush2.msra.mxu0 0.0
  %3532 = vmatprep.subr.mxu0 0.0
  %3533 = vmatpush2.msra.mxu0 0.0
  %3534 = vmatprep.subr.mxu0 0.0
  %3535 = vmatpush2.msra.mxu0 0.0
  %3536 = vmatprep.subr.mxu0 0.0
  %3537 = vmatpush2.msra.mxu0 0.0
  %3538 = vmatprep.subr.mxu0 0.0
  %3539 = vmatpush2.msra.mxu0 0.0
  %3540 = vmatprep.mubr.f32.mxu0 0.0
  %3541 = vmatmul.mubr.f32.gmra.mxu0 %v3042
  %v3542 = vpop.f32.mrf.mxu0
  %v3543 = vadd.f32 %v3473, %v3542
  %v3544 = vpop.f32.mrf.mxu0
  %3545 = vdwg.mxu0
  %v3546 = vmax.f32 %v3543, 0.0
  %v3547 = vld [vmem:[%s11] sm:$0xff]
  %v3548 = vld [vmem:[%s11 + $0x8] sm:$0xff]
  %v3549 = vld [vmem:[%s11 + $0x10] sm:$0xff]
  %v3550 = vld [vmem:[%s11 + $0x18] sm:$0xff]
  %v3551 = vld [vmem:[%s11 + $0x20] sm:$0xff]
  %v3552 = vld [vmem:[%s11 + $0x28] sm:$0xff]
  %v3553 = vld [vmem:[%s11 + $0x30] sm:$0xff]
  %v3554 = vld [vmem:[%s11 + $0x38] sm:$0xff]
  %v3555 = vld [vmem:[%s11 + $0x40] sm:$0xff]
  %v3556 = vld [vmem:[%s11 + $0x48] sm:$0xff]
  %v3557 = vld [vmem:[%s11 + $0x50] sm:$0xff]
  %v3558 = vld [vmem:[%s11 + $0x58] sm:$0xff]
  %v3559 = vld [vmem:[%s11 + $0x60] sm:$0xff]
  %v3560 = vld [vmem:[%s11 + $0x68] sm:$0xff]
  %v3561 = vld [vmem:[%s11 + $0x70] sm:$0xff]
  %v3562 = vld [vmem:[%s11 + $0x78] sm:$0xff]
  %v3563 = vld [vmem:[%s11 + $0x80] sm:$0xff]
  %v3564 = vld [vmem:[%s11 + $0x88] sm:$0xff]
  %v3565 = vld [vmem:[%s11 + $0x90] sm:$0xff]
  %v3566 = vld [vmem:[%s11 + $0x98] sm:$0xff]
  %v3567 = vld [vmem:[%s11 + $0xa0] sm:$0xff]
  %v3568 = vld [vmem:[%s11 + $0xa8] sm:$0xff]
  %v3569 = vld [vmem:[%s11 + $0xb0] sm:$0xff]
  %v3570 = vld [vmem:[%s11 + $0xb8] sm:$0xff]
  %v3571 = vld [vmem:[%s11 + $0xc0] sm:$0xff]
  %v3572 = vld [vmem:[%s11 + $0xc8] sm:$0xff]
  %v3573 = vld [vmem:[%s11 + $0xd0] sm:$0xff]
  %v3574 = vld [vmem:[%s11 + $0xd8] sm:$0xff]
  %v3575 = vld [vmem:[%s11 + $0xe0] sm:$0xff]
  %v3576 = vld [vmem:[%s11 + $0xe8] sm:$0xff]
  %v3577 = vld [vmem:[%s11 + $0xf0] sm:$0xff]
  %v3578 = vld [vmem:[%s11 + $0xf8] sm:$0xff]
  %v3579 = vld [vmem:[%s12] sm:$0x3]
  %v3581 = vlaneseq
  %v3582 = vshrl.u32 %v3581, 7
  %v3583 = vsub.s32 0, %v3582
  %v3584 = vrot.slane %v3579, %v3583
  %v3585 = vlaneseq
  %v3586 = vshrl.u32 %v3585, 7
  %v3587 = vsub.s32 1, %v3586
  %v3588 = vrot.slane %v3579, %v3587
  %3591 = vmatprep.subr.mxu0 %v3578
  %3592 = vmatpush1.msra.mxu0 %v3577
  %3593 = vmatprep.subr.mxu0 %v3576
  %3594 = vmatpush1.msra.mxu0 %v3575
  %3595 = vmatprep.subr.mxu0 %v3574
  %3596 = vmatpush1.msra.mxu0 %v3573
  %3597 = vmatprep.subr.mxu0 %v3572
  %3598 = vmatpush1.msra.mxu0 %v3571
  %3599 = vmatprep.subr.mxu0 %v3570
  %3600 = vmatpush1.msra.mxu0 %v3569
  %3601 = vmatprep.subr.mxu0 %v3568
  %3602 = vmatpush1.msra.mxu0 %v3567
  %3603 = vmatprep.subr.mxu0 %v3566
  %3604 = vmatpush1.msra.mxu0 %v3565
  %3605 = vmatprep.subr.mxu0 %v3564
  %3606 = vmatpush1.msra.mxu0 %v3563
  %3607 = vmatprep.subr.mxu0 %v3562
  %3608 = vmatpush1.msra.mxu0 %v3561
  %3609 = vmatprep.subr.mxu0 %v3560
  %3610 = vmatpush1.msra.mxu0 %v3559
  %3611 = vmatprep.subr.mxu0 %v3558
  %3612 = vmatpush1.msra.mxu0 %v3557
  %3613 = vmatprep.subr.mxu0 %v3556
  %3614 = vmatpush1.msra.mxu0 %v3555
  %3615 = vmatprep.subr.mxu0 %v3554
  %3616 = vmatpush1.msra.mxu0 %v3553
  %3617 = vmatprep.subr.mxu0 %v3552
  %3618 = vmatpush1.msra.mxu0 %v3551
  %3619 = vmatprep.subr.mxu0 %v3550
  %3620 = vmatpush1.msra.mxu0 %v3549
  %3621 = vmatprep.subr.mxu0 %v3548
  %3622 = vmatpush1.msra.mxu0 %v3547
  %3623 = vmatprep.subr.mxu0 0.0
  %3624 = vmatpush2.msra.mxu0 0.0
  %3625 = vmatprep.subr.mxu0 0.0
  %3626 = vmatpush2.msra.mxu0 0.0
  %3627 = vmatprep.subr.mxu0 0.0
  %3628 = vmatpush2.msra.mxu0 0.0
  %3629 = vmatprep.subr.mxu0 0.0
  %3630 = vmatpush2.msra.mxu0 0.0
  %3631 = vmatprep.subr.mxu0 0.0
  %3632 = vmatpush2.msra.mxu0 0.0
  %3633 = vmatprep.subr.mxu0 0.0
  %3634 = vmatpush2.msra.mxu0 0.0
  %3635 = vmatprep.subr.mxu0 0.0
  %3636 = vmatpush2.msra.mxu0 0.0
  %3637 = vmatprep.subr.mxu0 0.0
  %3638 = vmatpush2.msra.mxu0 0.0
  %3639 = vmatprep.subr.mxu0 0.0
  %3640 = vmatpush2.msra.mxu0 0.0
  %3641 = vmatprep.subr.mxu0 0.0
  %3642 = vmatpush2.msra.mxu0 0.0
  %3643 = vmatprep.subr.mxu0 0.0
  %3644 = vmatpush2.msra.mxu0 0.0
  %3645 = vmatprep.subr.mxu0 0.0
  %3646 = vmatpush2.msra.mxu0 0.0
  %3647 = vmatprep.subr.mxu0 0.0
  %3648 = vmatpush2.msra.mxu0 0.0
  %3649 = vmatprep.subr.mxu0 0.0
  %3650 = vmatpush2.msra.mxu0 0.0
  %3651 = vmatprep.subr.mxu0 0.0
  %3652 = vmatpush2.msra.mxu0 0.0
  %3653 = vmatprep.subr.mxu0 0.0
  %3654 = vmatpush2.msra.mxu0 0.0
  %3655 = vmatprep.mubr.f32.mxu0 0.0
  %3656 = vmatmul.mubr.f32.gmra.mxu0 %v3546
  %v3657 = vpop.f32.mrf.mxu0
  %v3658 = vadd.f32 %v3584, %v3657
  %v3659 = vpop.f32.mrf.mxu0
  %v3660 = vadd.f32 %v3588, %v3659
  %3661 = vdwg.mxu0
  %v3662 = vmax.f32 %v3658, 0.0
  %v3663 = vld [vmem:[%s13] sm:$0xff]
  %v3664 = vld [vmem:[%s13 + $0x8] sm:$0xff]
  %v3665 = vld [vmem:[%s13 + $0x10] sm:$0xff]
  %v3666 = vld [vmem:[%s13 + $0x18] sm:$0xff]
  %v3667 = vld [vmem:[%s13 + $0x20] sm:$0xff]
  %v3668 = vld [vmem:[%s13 + $0x28] sm:$0xff]
  %v3669 = vld [vmem:[%s13 + $0x30] sm:$0xff]
  %v3670 = vld [vmem:[%s13 + $0x38] sm:$0xff]
  %v3671 = vld [vmem:[%s13 + $0x40] sm:$0xff]
  %v3672 = vld [vmem:[%s13 + $0x48] sm:$0xff]
  %v3673 = vld [vmem:[%s13 + $0x50] sm:$0xff]
  %v3674 = vld [vmem:[%s13 + $0x58] sm:$0xff]
  %v3675 = vld [vmem:[%s13 + $0x60] sm:$0xff]
  %v3676 = vld [vmem:[%s13 + $0x68] sm:$0xff]
  %v3677 = vld [vmem:[%s13 + $0x70] sm:$0xff]
  %v3678 = vld [vmem:[%s13 + $0x78] sm:$0xff]
  %v3679 = vld [vmem:[%s14] sm:$0x1]
  %v3681 = vlaneseq
  %v3682 = vshrl.u32 %v3681, 7
  %v3683 = vsub.s32 0, %v3682
  %v3684 = vrot.slane %v3679, %v3683
  %3686 = vmatprep.subr.mxu0 0.0
  %3687 = vmatpush1.msra.mxu0 %v3678
  %3688 = vmatprep.subr.mxu0 0.0
  %3689 = vmatpush1.msra.mxu0 %v3677
  %3690 = vmatprep.subr.mxu0 0.0
  %3691 = vmatpush1.msra.mxu0 %v3676
  %3692 = vmatprep.subr.mxu0 0.0
  %3693 = vmatpush1.msra.mxu0 %v3675
  %3694 = vmatprep.subr.mxu0 0.0
  %3695 = vmatpush1.msra.mxu0 %v3674
  %3696 = vmatprep.subr.mxu0 0.0
  %3697 = vmatpush1.msra.mxu0 %v3673
  %3698 = vmatprep.subr.mxu0 0.0
  %3699 = vmatpush1.msra.mxu0 %v3672
  %3700 = vmatprep.subr.mxu0 0.0
  %3701 = vmatpush1.msra.mxu0 %v3671
  %3702 = vmatprep.subr.mxu0 0.0
  %3703 = vmatpush1.msra.mxu0 %v3670
  %3704 = vmatprep.subr.mxu0 0.0
  %3705 = vmatpush1.msra.mxu0 %v3669
  %3706 = vmatprep.subr.mxu0 0.0
  %3707 = vmatpush1.msra.mxu0 %v3668
  %3708 = vmatprep.subr.mxu0 0.0
  %3709 = vmatpush1.msra.mxu0 %v3667
  %3710 = vmatprep.subr.mxu0 0.0
  %3711 = vmatpush1.msra.mxu0 %v3666
  %3712 = vmatprep.subr.mxu0 0.0
  %3713 = vmatpush1.msra.mxu0 %v3665
  %3714 = vmatprep.subr.mxu0 0.0
  %3715 = vmatpush1.msra.mxu0 %v3664
  %3716 = vmatprep.subr.mxu0 0.0
  %3717 = vmatpush1.msra.mxu0 %v3663
  %3718 = vmatprep.subr.mxu0 0.0
  %3719 = vmatpush2.msra.mxu0 0.0
  %3720 = vmatprep.subr.mxu0 0.0
  %3721 = vmatpush2.msra.mxu0 0.0
  %3722 = vmatprep.subr.mxu0 0.0
  %3723 = vmatpush2.msra.mxu0 0.0
  %3724 = vmatprep.subr.mxu0 0.0
  %3725 = vmatpush2.msra.mxu0 0.0
  %3726 = vmatprep.subr.mxu0 0.0
  %3727 = vmatpush2.msra.mxu0 0.0
  %3728 = vmatprep.subr.mxu0 0.0
  %3729 = vmatpush2.msra.mxu0 0.0
  %3730 = vmatprep.subr.mxu0 0.0
  %3731 = vmatpush2.msra.mxu0 0.0
  %3732 = vmatprep.subr.mxu0 0.0
  %3733 = vmatpush2.msra.mxu0 0.0
  %3734 = vmatprep.subr.mxu0 0.0
  %3735 = vmatpush2.msra.mxu0 0.0
  %3736 = vmatprep.subr.mxu0 0.0
  %3737 = vmatpush2.msra.mxu0 0.0
  %3738 = vmatprep.subr.mxu0 0.0
  %3739 = vmatpush2.msra.mxu0 0.0
  %3740 = vmatprep.subr.mxu0 0.0
  %3741 = vmatpush2.msra.mxu0 0.0
  %3742 = vmatprep.subr.mxu0 0.0
  %3743 = vmatpush2.msra.mxu0 0.0
  %3744 = vmatprep.subr.mxu0 0.0
  %3745 = vmatpush2.msra.mxu0 0.0
  %3746 = vmatprep.subr.mxu0 0.0
  %3747 = vmatpush2.msra.mxu0 0.0
  %3748 = vmatprep.subr.mxu0 0.0
  %3749 = vmatpush2.msra.mxu0 0.0
  %3750 = vmatprep.mubr.f32.mxu0 0.0
  %3751 = vmatmul.mubr.f32.gmra.mxu0 %v3662
  %v3752 = vpop.f32.mrf.mxu0
  %v3753 = vadd.f32 %v3684, %v3752
  %v3754 = vpop.f32.mrf.mxu0
  %3755 = vdwg.mxu0
  %v3756 = vmax.f32 %v3753, 0.0
  %v3757 = vld [vmem:[%s15] sm:$0xff]
  %v3758 = vld [vmem:[%s15 + $0x8] sm:$0xff]
  %v3759 = vld [vmem:[%s15 + $0x10] sm:$0xff]
  %v3760 = vld [vmem:[%s15 + $0x18] sm:$0xff]
  %v3761 = vld [vmem:[%s15 + $0x20] sm:$0xff]
  %v3762 = vld [vmem:[%s15 + $0x28] sm:$0xff]
  %v3763 = vld [vmem:[%s15 + $0x30] sm:$0xff]
  %v3764 = vld [vmem:[%s15 + $0x38] sm:$0xff]
  %v3765 = vld [vmem:[%s15 + $0x40] sm:$0xff]
  %v3766 = vld [vmem:[%s15 + $0x48] sm:$0xff]
  %v3767 = vld [vmem:[%s15 + $0x50] sm:$0xff]
  %v3768 = vld [vmem:[%s15 + $0x58] sm:$0xff]
  %v3769 = vld [vmem:[%s15 + $0x60] sm:$0xff]
  %v3770 = vld [vmem:[%s15 + $0x68] sm:$0xff]
  %v3771 = vld [vmem:[%s15 + $0x70] sm:$0xff]
  %v3772 = vld [vmem:[%s15 + $0x78] sm:$0xff]
  %v3773 = vld [vmem:[%s16] sm:$0x1]
  %v3775 = vlaneseq
  %v3776 = vshrl.u32 %v3775, 7
  %v3777 = vsub.s32 0, %v3776
  %v3778 = vrot.slane %v3773, %v3777
  %3780 = vmatprep.subr.mxu0 0.0
  %3781 = vmatpush1.msra.mxu0 %v3772
  %3782 = vmatprep.subr.mxu0 0.0
  %3783 = vmatpush1.msra.mxu0 %v3771
  %3784 = vmatprep.subr.mxu0 0.0
  %3785 = vmatpush1.msra.mxu0 %v3770
  %3786 = vmatprep.subr.mxu0 0.0
  %3787 = vmatpush1.msra.mxu0 %v3769
  %3788 = vmatprep.subr.mxu0 0.0
  %3789 = vmatpush1.msra.mxu0 %v3768
  %3790 = vmatprep.subr.mxu0 0.0
  %3791 = vmatpush1.msra.mxu0 %v3767
  %3792 = vmatprep.subr.mxu0 0.0
  %3793 = vmatpush1.msra.mxu0 %v3766
  %3794 = vmatprep.subr.mxu0 0.0
  %3795 = vmatpush1.msra.mxu0 %v3765
  %3796 = vmatprep.subr.mxu0 0.0
  %3797 = vmatpush1.msra.mxu0 %v3764
  %3798 = vmatprep.subr.mxu0 0.0
  %3799 = vmatpush1.msra.mxu0 %v3763
  %3800 = vmatprep.subr.mxu0 0.0
  %3801 = vmatpush1.msra.mxu0 %v3762
  %3802 = vmatprep.subr.mxu0 0.0
  %3803 = vmatpush1.msra.mxu0 %v3761
  %3804 = vmatprep.subr.mxu0 0.0
  %3805 = vmatpush1.msra.mxu0 %v3760
  %3806 = vmatprep.subr.mxu0 0.0
  %3807 = vmatpush1.msra.mxu0 %v3759
  %3808 = vmatprep.subr.mxu0 0.0
  %3809 = vmatpush1.msra.mxu0 %v3758
  %3810 = vmatprep.subr.mxu0 0.0
  %3811 = vmatpush1.msra.mxu0 %v3757
  %3812 = vmatprep.subr.mxu0 0.0
  %3813 = vmatpush2.msra.mxu0 0.0
  %3814 = vmatprep.subr.mxu0 0.0
  %3815 = vmatpush2.msra.mxu0 0.0
  %3816 = vmatprep.subr.mxu0 0.0
  %3817 = vmatpush2.msra.mxu0 0.0
  %3818 = vmatprep.subr.mxu0 0.0
  %3819 = vmatpush2.msra.mxu0 0.0
  %3820 = vmatprep.subr.mxu0 0.0
  %3821 = vmatpush2.msra.mxu0 0.0
  %3822 = vmatprep.subr.mxu0 0.0
  %3823 = vmatpush2.msra.mxu0 0.0
  %3824 = vmatprep.subr.mxu0 0.0
  %3825 = vmatpush2.msra.mxu0 0.0
  %3826 = vmatprep.subr.mxu0 0.0
  %3827 = vmatpush2.msra.mxu0 0.0
  %3828 = vmatprep.subr.mxu0 0.0
  %3829 = vmatpush2.msra.mxu0 0.0
  %3830 = vmatprep.subr.mxu0 0.0
  %3831 = vmatpush2.msra.mxu0 0.0
  %3832 = vmatprep.subr.mxu0 0.0
  %3833 = vmatpush2.msra.mxu0 0.0
  %3834 = vmatprep.subr.mxu0 0.0
  %3835 = vmatpush2.msra.mxu0 0.0
  %3836 = vmatprep.subr.mxu0 0.0
  %3837 = vmatpush2.msra.mxu0 0.0
  %3838 = vmatprep.subr.mxu0 0.0
  %3839 = vmatpush2.msra.mxu0 0.0
  %3840 = vmatprep.subr.mxu0 0.0
  %3841 = vmatpush2.msra.mxu0 0.0
  %3842 = vmatprep.subr.mxu0 0.0
  %3843 = vmatpush2.msra.mxu0 0.0
  %3844 = vmatprep.mubr.f32.mxu0 0.0
  %3845 = vmatmul.mubr.f32.gmra.mxu0 %v3756
  %v3846 = vpop.f32.mrf.mxu0
  %v3847 = vadd.f32 %v3778, %v3846
  %v3848 = vpop.f32.mrf.mxu0
  %3849 = vdwg.mxu0
  %v3850 = vsub.f32 %v3847, %v3660
  %v3851 = vmul.f32 %v3850, %v3850
  %3852 = vadd.xlane.f32.xlu0 %v3851
  %v3853 = vpop.xlane.xlu0 %3852
  %3854 = vst [vmem:[%s17] sm:$0xff] %v3853
  // Predicated region
  $region70: #{rnd_cnn_forward.1} parent=0 // pred_check
    _
  $region71: #{rnd_cnn_forward.1} parent=0 // pred_check_branch
    %3856 = sbr.rel (0) target = $region73
  $region72: #{rnd_cnn_forward.1} parent=0 // pred_region
    _
  $region73: #{rnd_cnn_forward.1} parent=0 // pred_fallthru
    _
  // Predicated region
  $region74: #{rnd_cnn_forward.1} parent=0 // pred_check
    _
  $region75: #{rnd_cnn_forward.1} parent=0 // pred_check_branch
    %3858 = sbr.rel (0) target = $region77
  $region76: #{rnd_cnn_forward.1} parent=0 // pred_region
    _
  $region77: #{rnd_cnn_forward.1} parent=0 // pred_fallthru
    _

</llo_original>
